<compile_context>
chip_gen: v6e
topology: v6e:2x2x1
jax: 0.10.0
libtpu: 0.0.40
codegen_flags: <defaults>
</compile_context>

<pallas_src>
import math

import jax
import jax.numpy as jnp
import numpy as np
from jax.experimental import pallas as pl
from jax.experimental.pallas import tpu as pltpu

# ----------------------------- model config ---------------------------------
X_DIM = 16
H_DIM = 32
Y_DIM = 8                # num_classes_per_task
SHARED_H_DIMS = (32, 32)
N_HEADS = 2              # num_tasks
HEAD_IDX = 1             # task_idx
IPV = 1e-6               # initial posterior variance
MC_N = 10                # mc_sampling_n
BATCH = 8

PAD = 32                 # uniform padded feature width (all layer dims <= 32)
N_SPLIT = 2              # MC samples split over 2 grid steps (v7x: one per TensorCore)
assert MC_N % N_SPLIT == 0
S_PER_STEP = MC_N // N_SPLIT

SHARED_DIMS = [X_DIM] + list(SHARED_H_DIMS) + [H_DIM]              # [16, 32, 32, 32]
N_SHARED = len(SHARED_DIMS) - 1                                    # 3 shared layers
LAYER_DIMS = [(SHARED_DIMS[i], SHARED_DIMS[i + 1]) for i in range(N_SHARED)] + [(H_DIM, Y_DIM)]
N_LAYERS = len(LAYER_DIMS)                                         # 4 (3 shared + head)


# ------------------------------ Pallas kernel --------------------------------
def _vcl_kernel(x_ref, w_ref, b_ref, ew_ref, eb_ref, out_ref):
    """One grid step processes S_PER_STEP MC samples for the whole network.

    x_ref  : [B, PAD]                          zero-padded input
    w_ref  : [2, N_LAYERS, PAD, PAD]           (mu, logvar) weight slabs, zero-padded
    b_ref  : [2, N_LAYERS, 1, PAD]             (mu, logvar) bias slabs, zero-padded
    ew_ref : [N_LAYERS, S_PER_STEP, PAD, PAD]  weight eps for this step's samples
    eb_ref : [N_LAYERS, S_PER_STEP, 1, PAD]    bias eps for this step's samples
    out_ref: [1, B, Y_DIM]                     sum of softmax probs over this step's samples
    """
    x = x_ref[...].astype(jnp.float32)                         # [B, PAD]
    # Carry all MC samples of this step together as one stacked tensor.
    h = jnp.broadcast_to(x[None], (S_PER_STEP,) + x.shape)     # [S, B, PAD]

    for l in range(N_LAYERS):                                  # 4 layers, static unroll
        # sigma computed ONCE per layer (hoisted out of any per-sample work).
        sigma_w = jnp.exp(0.5 * w_ref[1, l])                   # [PAD, PAD]
        sigma_b = jnp.exp(0.5 * b_ref[1, l])                   # [1, PAD]
        # Reparameterised samples for all S_PER_STEP draws at once.
        # (Padded regions: mu = 0 and eps = 0, so sampled W/b are exactly 0 there.)
        w = w_ref[0, l][None] + ew_ref[l] * sigma_w[None]      # [S, PAD, PAD]
        b = b_ref[0, l][None] + eb_ref[l] * sigma_b[None]      # [S, 1, PAD]
        # One batched contraction per layer instead of S tiny dots.
        h = jnp.einsum('sbd,sde->sbe', h, w,
                       preferred_element_type=jnp.float32) + b
        if l < N_LAYERS - 1:                                   # ReLU on shared layers only
            h = jnp.maximum(h, 0.0)

    # Softmax over the real class columns only (padded head columns hold zeros and
    # would otherwise contaminate the normaliser).
    logits = h[:, :, :Y_DIM]                                   # [S, B, Y]
    m = jnp.max(logits, axis=-1, keepdims=True)
    e = jnp.exp(logits - m)
    denom = jnp.sum(e, axis=-1, keepdims=True)
    p = e * pl.reciprocal(denom, approx=False)                 # divide -> reciprocal*mul
    # Partial sum over this step's samples; the 1/MC_N normalisation is folded into a
    # single constant multiply in the wrapper.
    out_ref[...] = jnp.sum(p, axis=0)[None]


# ------------------------------ wrapper / packing -----------------------------
def _pad_to(a, shape):
    return jnp.pad(a, [(0, t - s) for s, t in zip(a.shape, shape)])


def _pack_inputs(x, layer_params, eps):
    """Pack x, parameters and eps into 5 lane-friendly slabs (5 DMAs instead of 25)."""
    wmu = jnp.stack([_pad_to(p[0], (PAD, PAD)) for p in layer_params])
    wlv = jnp.stack([_pad_to(p[1], (PAD, PAD)) for p in layer_params])
    bmu = jnp.stack([_pad_to(p[2], (1, PAD)) for p in layer_params])
    blv = jnp.stack([_pad_to(p[3], (1, PAD)) for p in layer_params])
    w_params = jnp.stack([wmu, wlv])                                   # [2, L, PAD, PAD]
    b_params = jnp.stack([bmu, blv])                                   # [2, L, 1, PAD]
    eps_w = jnp.stack([_pad_to(e[0], (MC_N, PAD, PAD)) for e in eps])  # [L, MC_N, PAD, PAD]
    eps_b = jnp.stack([_pad_to(e[1], (MC_N, 1, PAD)) for e in eps])    # [L, MC_N, 1, PAD]
    x_pad = _pad_to(x, (x.shape[0], PAD))                              # [B, PAD]
    return x_pad, w_params, b_params, eps_w, eps_b


@jax.jit
def vcl_forward(x, layer_params, eps):
    """x: [B, X_DIM]; layer_params[l] = (wm, wlv, bm, blv); eps[l] = (eps_w, eps_b)."""
    x_pad, w_params, b_params, eps_w, eps_b = _pack_inputs(x, layer_params, eps)
    B = x.shape[0]

    partial = pl.pallas_call(
        _vcl_kernel,
        grid=(N_SPLIT,),
        in_specs=[
            pl.BlockSpec((B, PAD), lambda c: (0, 0)),
            pl.BlockSpec((2, N_LAYERS, PAD, PAD), lambda c: (0, 0, 0, 0)),
            pl.BlockSpec((2, N_LAYERS, 1, PAD), lambda c: (0, 0, 0, 0)),
            pl.BlockSpec((N_LAYERS, S_PER_STEP, PAD, PAD), lambda c: (0, c, 0, 0)),
            pl.BlockSpec((N_LAYERS, S_PER_STEP, 1, PAD), lambda c: (0, c, 0, 0)),
        ],
        out_specs=pl.BlockSpec((1, B, Y_DIM), lambda c: (c, 0, 0)),
        out_shape=jax.ShapeDtypeStruct((N_SPLIT, B, Y_DIM), jnp.float32),
        compiler_params=pltpu.CompilerParams(
            dimension_semantics=("parallel",)),
    )(x_pad, w_params, b_params, eps_w, eps_b)

    # Combine the per-core partial sums; fold 1/MC_N into one constant multiply.
    return jnp.sum(partial, axis=0) * (1.0 / MC_N)


# ------------------------------ reference (pure JAX) --------------------------
def vcl_reference(x, layer_params, eps):
    acc = jnp.zeros((x.shape[0], Y_DIM), jnp.float32)
    for s in range(MC_N):
        h = x
        for l in range(N_LAYERS):
            wm, wlv, bm, blv = layer_params[l]
            ew, eb = eps[l]
            w = wm + ew[s] * jnp.exp(0.5 * wlv)
            b = bm + eb[s] * jnp.exp(0.5 * blv)
            h = jnp.einsum('bd,de->be', h, w,
                           precision=jax.lax.Precision.HIGHEST) + b
            if l < N_LAYERS - 1:
                h = jnp.maximum(h, 0.0)
        acc = acc + jax.nn.softmax(h, axis=1)
    return acc / MC_N


# ------------------------------ parameter init --------------------------------
def init_params(key):
    """Deterministic mean-field Gaussian parameters for 3 shared layers + N_HEADS heads."""
    log_ipv = math.log(IPV)
    shared, heads = [], []
    for (din, dout) in [(SHARED_DIMS[i], SHARED_DIMS[i + 1]) for i in range(N_SHARED)]:
        key, k = jax.random.split(key)
        wm = 0.1 * jax.random.normal(k, (din, dout), jnp.float32)
        wlv = jnp.full((din, dout), log_ipv, jnp.float32)
        bm = jnp.zeros((1, dout), jnp.float32)
        blv = jnp.full((1, dout), log_ipv, jnp.float32)
        shared.append((wm, wlv, bm, blv))
    for _ in range(N_HEADS):
        key, k = jax.random.split(key)
        wm = 0.1 * jax.random.normal(k, (H_DIM, Y_DIM), jnp.float32)
        wlv = jnp.full((H_DIM, Y_DIM), log_ipv, jnp.float32)
        bm = jnp.zeros((1, Y_DIM), jnp.float32)
        blv = jnp.full((1, Y_DIM), log_ipv, jnp.float32)
        heads.append((wm, wlv, bm, blv))
    return shared, heads, key


def sample_eps(key):
    """Fresh standard-normal eps for every MC iteration and layer (glue, host-side)."""
    eps = []
    for (din, dout) in LAYER_DIMS:
        key, kw, kb = jax.random.split(key, 3)
        ew = jax.random.normal(kw, (MC_N, din, dout), jnp.float32)
        eb = jax.random.normal(kb, (MC_N, 1, dout), jnp.float32)
        eps.append((ew, eb))
    return eps, key


# ------------------------------ main -----------------------------------------
if __name__ == "__main__":
    key = jax.random.PRNGKey(0)
    shared, heads, key = init_params(key)
    layer_params = shared + [heads[HEAD_IDX]]        # head selection (task_idx) is glue

    eps, key = sample_eps(key)
    key, kx = jax.random.split(key)
    x = jax.random.normal(kx, (BATCH, X_DIM), jnp.float32)

    y = vcl_forward(x, layer_params, eps)
    y = jax.block_until_ready(y)

    y_ref = vcl_reference(x, layer_params, eps)
    assert y.shape == (BATCH, Y_DIM)
    assert np.allclose(np.asarray(y).sum(axis=1), 1.0, atol=1e-4), "rows must be probability distributions"
    assert np.allclose(np.asarray(y), np.asarray(y_ref), atol=1e-4), "mismatch vs pure-JAX reference"

    print("KERNEL_OK")
</pallas_src>

<mosaic_0001>
module attributes {stable_mosaic.version = 11 : i64} {
  func.func @_vcl_kernel(%arg0: i32, %arg1: memref<8x32xf32, #tpu.memory_space<vmem>>, %arg2: memref<2x4x32x32xf32, #tpu.memory_space<vmem>>, %arg3: memref<2x4x1x32xf32, #tpu.memory_space<vmem>>, %arg4: memref<4x5x32x32xf32, #tpu.memory_space<vmem>>, %arg5: memref<4x5x1x32xf32, #tpu.memory_space<vmem>>, %arg6: memref<1x8x8xf32, #tpu.memory_space<vmem>>) attributes {dimension_semantics = [#tpu.dimension_semantics<parallel>], iteration_bounds = array<i64: 2>, scalar_prefetch = 0 : i64, scratch_operands = 0 : i64, tpu.core_type = #tpu.core_type<tc>, window_params = [{pipeline_mode = #tpu.pipeline_mode<synchronous>, transform_indices = @transform_0, window_bounds = array<i64: 8, 32>}, {pipeline_mode = #tpu.pipeline_mode<synchronous>, transform_indices = @transform_1, window_bounds = array<i64: 2, 4, 32, 32>}, {pipeline_mode = #tpu.pipeline_mode<synchronous>, transform_indices = @transform_2, window_bounds = array<i64: 2, 4, 1, 32>}, {transform_indices = @transform_3, window_bounds = array<i64: 4, 5, 32, 32>}, {transform_indices = @transform_4, window_bounds = array<i64: 4, 5, 1, 32>}, {transform_indices = @transform_5, window_bounds = array<i64: 1, 8, 8>}]} {
    %c0 = arith.constant 0 : index
    %c0_0 = arith.constant 0 : index
    %0 = vector.load %arg1[%c0, %c0_0] : memref<8x32xf32, #tpu.memory_space<vmem>>, vector<8x32xf32>
    %1 = vector.shape_cast %0 : vector<8x32xf32> to vector<1x8x32xf32>
    %2 = vector.shape_cast %1 : vector<1x8x32xf32> to vector<1x8x32xf32>
    %3 = vector.broadcast %2 : vector<1x8x32xf32> to vector<5x8x32xf32>
    %c1 = arith.constant 1 : index
    %c0_1 = arith.constant 0 : index
    %c0_2 = arith.constant 0 : index
    %c0_3 = arith.constant 0 : index
    %4 = vector.load %arg2[%c1, %c0_1, %c0_2, %c0_3] : memref<2x4x32x32xf32, #tpu.memory_space<vmem>>, vector<1x1x32x32xf32>
    %5 = vector.shape_cast %4 : vector<1x1x32x32xf32> to vector<32x32xf32>
    %cst = arith.constant 5.000000e-01 : f32
    %6 = vector.broadcast %cst : f32 to vector<32x32xf32>
    %7 = arith.mulf %6, %5 : vector<32x32xf32>
    %8 = math.exp %7 : vector<32x32xf32>
    %c1_4 = arith.constant 1 : index
    %c0_5 = arith.constant 0 : index
    %c0_6 = arith.constant 0 : index
    %c0_7 = arith.constant 0 : index
    %9 = vector.load %arg3[%c1_4, %c0_5, %c0_6, %c0_7] : memref<2x4x1x32xf32, #tpu.memory_space<vmem>>, vector<1x1x1x32xf32>
    %10 = vector.shape_cast %9 : vector<1x1x1x32xf32> to vector<1x32xf32>
    %cst_8 = arith.constant 5.000000e-01 : f32
    %11 = vector.broadcast %cst_8 : f32 to vector<1x32xf32>
    %12 = arith.mulf %11, %10 : vector<1x32xf32>
    %13 = math.exp %12 : vector<1x32xf32>
    %c0_9 = arith.constant 0 : index
    %c0_10 = arith.constant 0 : index
    %c0_11 = arith.constant 0 : index
    %c0_12 = arith.constant 0 : index
    %14 = vector.load %arg2[%c0_9, %c0_10, %c0_11, %c0_12] : memref<2x4x32x32xf32, #tpu.memory_space<vmem>>, vector<1x1x32x32xf32>
    %15 = vector.shape_cast %14 : vector<1x1x32x32xf32> to vector<32x32xf32>
    %16 = vector.shape_cast %15 : vector<32x32xf32> to vector<1x32x32xf32>
    %c0_13 = arith.constant 0 : index
    %c0_14 = arith.constant 0 : index
    %c0_15 = arith.constant 0 : index
    %c0_16 = arith.constant 0 : index
    %17 = vector.load %arg4[%c0_13, %c0_14, %c0_15, %c0_16] : memref<4x5x32x32xf32, #tpu.memory_space<vmem>>, vector<1x5x32x32xf32>
    %18 = vector.shape_cast %17 : vector<1x5x32x32xf32> to vector<5x32x32xf32>
    %19 = vector.shape_cast %8 : vector<32x32xf32> to vector<1x32x32xf32>
    %20 = vector.broadcast %19 : vector<1x32x32xf32> to vector<5x32x32xf32>
    %21 = arith.mulf %18, %20 : vector<5x32x32xf32>
    %22 = vector.broadcast %16 : vector<1x32x32xf32> to vector<5x32x32xf32>
    %23 = arith.addf %22, %21 : vector<5x32x32xf32>
    %c0_17 = arith.constant 0 : index
    %c0_18 = arith.constant 0 : index
    %c0_19 = arith.constant 0 : index
    %c0_20 = arith.constant 0 : index
    %24 = vector.load %arg3[%c0_17, %c0_18, %c0_19, %c0_20] : memref<2x4x1x32xf32, #tpu.memory_space<vmem>>, vector<1x1x1x32xf32>
    %25 = vector.shape_cast %24 : vector<1x1x1x32xf32> to vector<1x32xf32>
    %26 = vector.shape_cast %25 : vector<1x32xf32> to vector<1x1x32xf32>
    %c0_21 = arith.constant 0 : index
    %c0_22 = arith.constant 0 : index
    %c0_23 = arith.constant 0 : index
    %c0_24 = arith.constant 0 : index
    %27 = vector.load %arg5[%c0_21, %c0_22, %c0_23, %c0_24] : memref<4x5x1x32xf32, #tpu.memory_space<vmem>>, vector<1x5x1x32xf32>
    %28 = vector.shape_cast %27 : vector<1x5x1x32xf32> to vector<5x1x32xf32>
    %29 = vector.shape_cast %13 : vector<1x32xf32> to vector<1x1x32xf32>
    %30 = vector.broadcast %29 : vector<1x1x32xf32> to vector<5x1x32xf32>
    %31 = arith.mulf %28, %30 : vector<5x1x32xf32>
    %32 = vector.broadcast %26 : vector<1x1x32xf32> to vector<5x1x32xf32>
    %33 = arith.addf %32, %31 : vector<5x1x32xf32>
    "tpu.trace_start"() <{level = 10 : i32, message = "sbd,sde->sbe"}> : () -> ()
    %cst_25 = arith.constant dense<0.000000e+00> : vector<5x8x32xf32>
    %34 = tpu.matmul %3, %23, %cst_25 {dimension_numbers = #tpu.dot_dimension_numbers<[2], [1], [1], [2], [0, 0, 0, 1, 1, 2], [0], [0]>} : vector<5x8x32xf32>, vector<5x32x32xf32>, vector<5x8x32xf32> -> vector<5x8x32xf32>
    "tpu.trace_stop"() : () -> ()
    %35 = vector.broadcast %33 : vector<5x1x32xf32> to vector<5x8x32xf32>
    %36 = arith.addf %34, %35 : vector<5x8x32xf32>
    %cst_26 = arith.constant 0.000000e+00 : f32
    %37 = vector.broadcast %cst_26 : f32 to vector<5x8x32xf32>
    %38 = arith.maximumf %36, %37 : vector<5x8x32xf32>
    %c1_27 = arith.constant 1 : index
    %c1_28 = arith.constant 1 : index
    %c0_29 = arith.constant 0 : index
    %c0_30 = arith.constant 0 : index
    %39 = vector.load %arg2[%c1_27, %c1_28, %c0_29, %c0_30] : memref<2x4x32x32xf32, #tpu.memory_space<vmem>>, vector<1x1x32x32xf32>
    %40 = vector.shape_cast %39 : vector<1x1x32x32xf32> to vector<32x32xf32>
    %cst_31 = arith.constant 5.000000e-01 : f32
    %41 = vector.broadcast %cst_31 : f32 to vector<32x32xf32>
    %42 = arith.mulf %41, %40 : vector<32x32xf32>
    %43 = math.exp %42 : vector<32x32xf32>
    %c1_32 = arith.constant 1 : index
    %c1_33 = arith.constant 1 : index
    %c0_34 = arith.constant 0 : index
    %c0_35 = arith.constant 0 : index
    %44 = vector.load %arg3[%c1_32, %c1_33, %c0_34, %c0_35] : memref<2x4x1x32xf32, #tpu.memory_space<vmem>>, vector<1x1x1x32xf32>
    %45 = vector.shape_cast %44 : vector<1x1x1x32xf32> to vector<1x32xf32>
    %cst_36 = arith.constant 5.000000e-01 : f32
    %46 = vector.broadcast %cst_36 : f32 to vector<1x32xf32>
    %47 = arith.mulf %46, %45 : vector<1x32xf32>
    %48 = math.exp %47 : vector<1x32xf32>
    %c0_37 = arith.constant 0 : index
    %c1_38 = arith.constant 1 : index
    %c0_39 = arith.constant 0 : index
    %c0_40 = arith.constant 0 : index
    %49 = vector.load %arg2[%c0_37, %c1_38, %c0_39, %c0_40] : memref<2x4x32x32xf32, #tpu.memory_space<vmem>>, vector<1x1x32x32xf32>
    %50 = vector.shape_cast %49 : vector<1x1x32x32xf32> to vector<32x32xf32>
    %51 = vector.shape_cast %50 : vector<32x32xf32> to vector<1x32x32xf32>
    %c1_41 = arith.constant 1 : index
    %c0_42 = arith.constant 0 : index
    %c0_43 = arith.constant 0 : index
    %c0_44 = arith.constant 0 : index
    %52 = vector.load %arg4[%c1_41, %c0_42, %c0_43, %c0_44] : memref<4x5x32x32xf32, #tpu.memory_space<vmem>>, vector<1x5x32x32xf32>
    %53 = vector.shape_cast %52 : vector<1x5x32x32xf32> to vector<5x32x32xf32>
    %54 = vector.shape_cast %43 : vector<32x32xf32> to vector<1x32x32xf32>
    %55 = vector.broadcast %54 : vector<1x32x32xf32> to vector<5x32x32xf32>
    %56 = arith.mulf %53, %55 : vector<5x32x32xf32>
    %57 = vector.broadcast %51 : vector<1x32x32xf32> to vector<5x32x32xf32>
    %58 = arith.addf %57, %56 : vector<5x32x32xf32>
    %c0_45 = arith.constant 0 : index
    %c1_46 = arith.constant 1 : index
    %c0_47 = arith.constant 0 : index
    %c0_48 = arith.constant 0 : index
    %59 = vector.load %arg3[%c0_45, %c1_46, %c0_47, %c0_48] : memref<2x4x1x32xf32, #tpu.memory_space<vmem>>, vector<1x1x1x32xf32>
    %60 = vector.shape_cast %59 : vector<1x1x1x32xf32> to vector<1x32xf32>
    %61 = vector.shape_cast %60 : vector<1x32xf32> to vector<1x1x32xf32>
    %c1_49 = arith.constant 1 : index
    %c0_50 = arith.constant 0 : index
    %c0_51 = arith.constant 0 : index
    %c0_52 = arith.constant 0 : index
    %62 = vector.load %arg5[%c1_49, %c0_50, %c0_51, %c0_52] : memref<4x5x1x32xf32, #tpu.memory_space<vmem>>, vector<1x5x1x32xf32>
    %63 = vector.shape_cast %62 : vector<1x5x1x32xf32> to vector<5x1x32xf32>
    %64 = vector.shape_cast %48 : vector<1x32xf32> to vector<1x1x32xf32>
    %65 = vector.broadcast %64 : vector<1x1x32xf32> to vector<5x1x32xf32>
    %66 = arith.mulf %63, %65 : vector<5x1x32xf32>
    %67 = vector.broadcast %61 : vector<1x1x32xf32> to vector<5x1x32xf32>
    %68 = arith.addf %67, %66 : vector<5x1x32xf32>
    "tpu.trace_start"() <{level = 10 : i32, message = "sbd,sde->sbe"}> : () -> ()
    %cst_53 = arith.constant dense<0.000000e+00> : vector<5x8x32xf32>
    %69 = tpu.matmul %38, %58, %cst_53 {dimension_numbers = #tpu.dot_dimension_numbers<[2], [1], [1], [2], [0, 0, 0, 1, 1, 2], [0], [0]>} : vector<5x8x32xf32>, vector<5x32x32xf32>, vector<5x8x32xf32> -> vector<5x8x32xf32>
    "tpu.trace_stop"() : () -> ()
    %70 = vector.broadcast %68 : vector<5x1x32xf32> to vector<5x8x32xf32>
    %71 = arith.addf %69, %70 : vector<5x8x32xf32>
    %cst_54 = arith.constant 0.000000e+00 : f32
    %72 = vector.broadcast %cst_54 : f32 to vector<5x8x32xf32>
    %73 = arith.maximumf %71, %72 : vector<5x8x32xf32>
    %c1_55 = arith.constant 1 : index
    %c2 = arith.constant 2 : index
    %c0_56 = arith.constant 0 : index
    %c0_57 = arith.constant 0 : index
    %74 = vector.load %arg2[%c1_55, %c2, %c0_56, %c0_57] : memref<2x4x32x32xf32, #tpu.memory_space<vmem>>, vector<1x1x32x32xf32>
    %75 = vector.shape_cast %74 : vector<1x1x32x32xf32> to vector<32x32xf32>
    %cst_58 = arith.constant 5.000000e-01 : f32
    %76 = vector.broadcast %cst_58 : f32 to vector<32x32xf32>
    %77 = arith.mulf %76, %75 : vector<32x32xf32>
    %78 = math.exp %77 : vector<32x32xf32>
    %c1_59 = arith.constant 1 : index
    %c2_60 = arith.constant 2 : index
    %c0_61 = arith.constant 0 : index
    %c0_62 = arith.constant 0 : index
    %79 = vector.load %arg3[%c1_59, %c2_60, %c0_61, %c0_62] : memref<2x4x1x32xf32, #tpu.memory_space<vmem>>, vector<1x1x1x32xf32>
    %80 = vector.shape_cast %79 : vector<1x1x1x32xf32> to vector<1x32xf32>
    %cst_63 = arith.constant 5.000000e-01 : f32
    %81 = vector.broadcast %cst_63 : f32 to vector<1x32xf32>
    %82 = arith.mulf %81, %80 : vector<1x32xf32>
    %83 = math.exp %82 : vector<1x32xf32>
    %c0_64 = arith.constant 0 : index
    %c2_65 = arith.constant 2 : index
    %c0_66 = arith.constant 0 : index
    %c0_67 = arith.constant 0 : index
    %84 = vector.load %arg2[%c0_64, %c2_65, %c0_66, %c0_67] : memref<2x4x32x32xf32, #tpu.memory_space<vmem>>, vector<1x1x32x32xf32>
    %85 = vector.shape_cast %84 : vector<1x1x32x32xf32> to vector<32x32xf32>
    %86 = vector.shape_cast %85 : vector<32x32xf32> to vector<1x32x32xf32>
    %c2_68 = arith.constant 2 : index
    %c0_69 = arith.constant 0 : index
    %c0_70 = arith.constant 0 : index
    %c0_71 = arith.constant 0 : index
    %87 = vector.load %arg4[%c2_68, %c0_69, %c0_70, %c0_71] : memref<4x5x32x32xf32, #tpu.memory_space<vmem>>, vector<1x5x32x32xf32>
    %88 = vector.shape_cast %87 : vector<1x5x32x32xf32> to vector<5x32x32xf32>
    %89 = vector.shape_cast %78 : vector<32x32xf32> to vector<1x32x32xf32>
    %90 = vector.broadcast %89 : vector<1x32x32xf32> to vector<5x32x32xf32>
    %91 = arith.mulf %88, %90 : vector<5x32x32xf32>
    %92 = vector.broadcast %86 : vector<1x32x32xf32> to vector<5x32x32xf32>
    %93 = arith.addf %92, %91 : vector<5x32x32xf32>
    %c0_72 = arith.constant 0 : index
    %c2_73 = arith.constant 2 : index
    %c0_74 = arith.constant 0 : index
    %c0_75 = arith.constant 0 : index
    %94 = vector.load %arg3[%c0_72, %c2_73, %c0_74, %c0_75] : memref<2x4x1x32xf32, #tpu.memory_space<vmem>>, vector<1x1x1x32xf32>
    %95 = vector.shape_cast %94 : vector<1x1x1x32xf32> to vector<1x32xf32>
    %96 = vector.shape_cast %95 : vector<1x32xf32> to vector<1x1x32xf32>
    %c2_76 = arith.constant 2 : index
    %c0_77 = arith.constant 0 : index
    %c0_78 = arith.constant 0 : index
    %c0_79 = arith.constant 0 : index
    %97 = vector.load %arg5[%c2_76, %c0_77, %c0_78, %c0_79] : memref<4x5x1x32xf32, #tpu.memory_space<vmem>>, vector<1x5x1x32xf32>
    %98 = vector.shape_cast %97 : vector<1x5x1x32xf32> to vector<5x1x32xf32>
    %99 = vector.shape_cast %83 : vector<1x32xf32> to vector<1x1x32xf32>
    %100 = vector.broadcast %99 : vector<1x1x32xf32> to vector<5x1x32xf32>
    %101 = arith.mulf %98, %100 : vector<5x1x32xf32>
    %102 = vector.broadcast %96 : vector<1x1x32xf32> to vector<5x1x32xf32>
    %103 = arith.addf %102, %101 : vector<5x1x32xf32>
    "tpu.trace_start"() <{level = 10 : i32, message = "sbd,sde->sbe"}> : () -> ()
    %cst_80 = arith.constant dense<0.000000e+00> : vector<5x8x32xf32>
    %104 = tpu.matmul %73, %93, %cst_80 {dimension_numbers = #tpu.dot_dimension_numbers<[2], [1], [1], [2], [0, 0, 0, 1, 1, 2], [0], [0]>} : vector<5x8x32xf32>, vector<5x32x32xf32>, vector<5x8x32xf32> -> vector<5x8x32xf32>
    "tpu.trace_stop"() : () -> ()
    %105 = vector.broadcast %103 : vector<5x1x32xf32> to vector<5x8x32xf32>
    %106 = arith.addf %104, %105 : vector<5x8x32xf32>
    %cst_81 = arith.constant 0.000000e+00 : f32
    %107 = vector.broadcast %cst_81 : f32 to vector<5x8x32xf32>
    %108 = arith.maximumf %106, %107 : vector<5x8x32xf32>
    %c1_82 = arith.constant 1 : index
    %c3 = arith.constant 3 : index
    %c0_83 = arith.constant 0 : index
    %c0_84 = arith.constant 0 : index
    %109 = vector.load %arg2[%c1_82, %c3, %c0_83, %c0_84] : memref<2x4x32x32xf32, #tpu.memory_space<vmem>>, vector<1x1x32x32xf32>
    %110 = vector.shape_cast %109 : vector<1x1x32x32xf32> to vector<32x32xf32>
    %cst_85 = arith.constant 5.000000e-01 : f32
    %111 = vector.broadcast %cst_85 : f32 to vector<32x32xf32>
    %112 = arith.mulf %111, %110 : vector<32x32xf32>
    %113 = math.exp %112 : vector<32x32xf32>
    %c1_86 = arith.constant 1 : index
    %c3_87 = arith.constant 3 : index
    %c0_88 = arith.constant 0 : index
    %c0_89 = arith.constant 0 : index
    %114 = vector.load %arg3[%c1_86, %c3_87, %c0_88, %c0_89] : memref<2x4x1x32xf32, #tpu.memory_space<vmem>>, vector<1x1x1x32xf32>
    %115 = vector.shape_cast %114 : vector<1x1x1x32xf32> to vector<1x32xf32>
    %cst_90 = arith.constant 5.000000e-01 : f32
    %116 = vector.broadcast %cst_90 : f32 to vector<1x32xf32>
    %117 = arith.mulf %116, %115 : vector<1x32xf32>
    %118 = math.exp %117 : vector<1x32xf32>
    %c0_91 = arith.constant 0 : index
    %c3_92 = arith.constant 3 : index
    %c0_93 = arith.constant 0 : index
    %c0_94 = arith.constant 0 : index
    %119 = vector.load %arg2[%c0_91, %c3_92, %c0_93, %c0_94] : memref<2x4x32x32xf32, #tpu.memory_space<vmem>>, vector<1x1x32x32xf32>
    %120 = vector.shape_cast %119 : vector<1x1x32x32xf32> to vector<32x32xf32>
    %121 = vector.shape_cast %120 : vector<32x32xf32> to vector<1x32x32xf32>
    %c3_95 = arith.constant 3 : index
    %c0_96 = arith.constant 0 : index
    %c0_97 = arith.constant 0 : index
    %c0_98 = arith.constant 0 : index
    %122 = vector.load %arg4[%c3_95, %c0_96, %c0_97, %c0_98] : memref<4x5x32x32xf32, #tpu.memory_space<vmem>>, vector<1x5x32x32xf32>
    %123 = vector.shape_cast %122 : vector<1x5x32x32xf32> to vector<5x32x32xf32>
    %124 = vector.shape_cast %113 : vector<32x32xf32> to vector<1x32x32xf32>
    %125 = vector.broadcast %124 : vector<1x32x32xf32> to vector<5x32x32xf32>
    %126 = arith.mulf %123, %125 : vector<5x32x32xf32>
    %127 = vector.broadcast %121 : vector<1x32x32xf32> to vector<5x32x32xf32>
    %128 = arith.addf %127, %126 : vector<5x32x32xf32>
    %c0_99 = arith.constant 0 : index
    %c3_100 = arith.constant 3 : index
    %c0_101 = arith.constant 0 : index
    %c0_102 = arith.constant 0 : index
    %129 = vector.load %arg3[%c0_99, %c3_100, %c0_101, %c0_102] : memref<2x4x1x32xf32, #tpu.memory_space<vmem>>, vector<1x1x1x32xf32>
    %130 = vector.shape_cast %129 : vector<1x1x1x32xf32> to vector<1x32xf32>
    %131 = vector.shape_cast %130 : vector<1x32xf32> to vector<1x1x32xf32>
    %c3_103 = arith.constant 3 : index
    %c0_104 = arith.constant 0 : index
    %c0_105 = arith.constant 0 : index
    %c0_106 = arith.constant 0 : index
    %132 = vector.load %arg5[%c3_103, %c0_104, %c0_105, %c0_106] : memref<4x5x1x32xf32, #tpu.memory_space<vmem>>, vector<1x5x1x32xf32>
    %133 = vector.shape_cast %132 : vector<1x5x1x32xf32> to vector<5x1x32xf32>
    %134 = vector.shape_cast %118 : vector<1x32xf32> to vector<1x1x32xf32>
    %135 = vector.broadcast %134 : vector<1x1x32xf32> to vector<5x1x32xf32>
    %136 = arith.mulf %133, %135 : vector<5x1x32xf32>
    %137 = vector.broadcast %131 : vector<1x1x32xf32> to vector<5x1x32xf32>
    %138 = arith.addf %137, %136 : vector<5x1x32xf32>
    "tpu.trace_start"() <{level = 10 : i32, message = "sbd,sde->sbe"}> : () -> ()
    %cst_107 = arith.constant dense<0.000000e+00> : vector<5x8x32xf32>
    %139 = tpu.matmul %108, %128, %cst_107 {dimension_numbers = #tpu.dot_dimension_numbers<[2], [1], [1], [2], [0, 0, 0, 1, 1, 2], [0], [0]>} : vector<5x8x32xf32>, vector<5x32x32xf32>, vector<5x8x32xf32> -> vector<5x8x32xf32>
    "tpu.trace_stop"() : () -> ()
    %140 = vector.broadcast %138 : vector<5x1x32xf32> to vector<5x8x32xf32>
    %141 = arith.addf %139, %140 : vector<5x8x32xf32>
    %142 = vector.extract_strided_slice %141 {offsets = [0, 0, 0], sizes = [5, 8, 8], strides = [1, 1, 1]} : vector<5x8x32xf32> to vector<5x8x8xf32>
    %cst_108 = arith.constant dense<0xFF800000> : vector<5x8xf32>
    %143 = vector.multi_reduction <maximumf>, %142, %cst_108 [2] : vector<5x8x8xf32> to vector<5x8xf32>
    %144 = vector.shape_cast %143 : vector<5x8xf32> to vector<5x8x1xf32>
    %145 = vector.broadcast %144 : vector<5x8x1xf32> to vector<5x8x8xf32>
    %146 = arith.subf %142, %145 : vector<5x8x8xf32>
    %147 = math.exp %146 : vector<5x8x8xf32>
    %cst_109 = arith.constant dense<0.000000e+00> : vector<5x8xf32>
    %148 = vector.multi_reduction <add>, %147, %cst_109 [2] : vector<5x8x8xf32> to vector<5x8xf32>
    %149 = vector.shape_cast %148 : vector<5x8xf32> to vector<5x8x1xf32>
    %150 = tpu.reciprocal %149 : vector<5x8x1xf32> -> vector<5x8x1xf32>
    %151 = vector.broadcast %150 : vector<5x8x1xf32> to vector<5x8x8xf32>
    %152 = arith.mulf %147, %151 : vector<5x8x8xf32>
    %cst_110 = arith.constant dense<0.000000e+00> : vector<8x8xf32>
    %153 = vector.multi_reduction <add>, %152, %cst_110 [0] : vector<5x8x8xf32> to vector<8x8xf32>
    %154 = vector.shape_cast %153 : vector<8x8xf32> to vector<1x8x8xf32>
    %c0_111 = arith.constant 0 : index
    %c0_112 = arith.constant 0 : index
    %c0_113 = arith.constant 0 : index
    %155 = vector.load %arg6[%c0_111, %c0_112, %c0_113] : memref<1x8x8xf32, #tpu.memory_space<vmem>>, vector<1x8x8xf32>
    tpu.vector_store %arg6[%c0_111, %c0_112, %c0_113], %154 {strides = array<i32>} : memref<1x8x8xf32, #tpu.memory_space<vmem>>, vector<1x8x8xf32>,
    return
  }
  func.func @transform_0(%arg0: i32) -> (i32, i32) {
    %c0_i32 = arith.constant 0 : i32
    %c0_i32_0 = arith.constant 0 : i32
    %c0_i32_1 = arith.constant 0 : i32
    return %c0_i32, %c0_i32_0 : i32, i32
  }
  func.func @transform_1(%arg0: i32) -> (i32, i32, i32, i32) {
    %c0_i32 = arith.constant 0 : i32
    %c0_i32_0 = arith.constant 0 : i32
    %c0_i32_1 = arith.constant 0 : i32
    %c0_i32_2 = arith.constant 0 : i32
    %c0_i32_3 = arith.constant 0 : i32
    return %c0_i32, %c0_i32_0, %c0_i32_1, %c0_i32_2 : i32, i32, i32, i32
  }
  func.func @transform_2(%arg0: i32) -> (i32, i32, i32, i32) {
    %c0_i32 = arith.constant 0 : i32
    %c0_i32_0 = arith.constant 0 : i32
    %c0_i32_1 = arith.constant 0 : i32
    %c0_i32_2 = arith.constant 0 : i32
    %c0_i32_3 = arith.constant 0 : i32
    return %c0_i32, %c0_i32_0, %c0_i32_1, %c0_i32_2 : i32, i32, i32, i32
  }
  func.func @transform_3(%arg0: i32) -> (i32, i32, i32, i32) {
    %c0_i32 = arith.constant 0 : i32
    %c0_i32_0 = arith.constant 0 : i32
    %c0_i32_1 = arith.constant 0 : i32
    %c0_i32_2 = arith.constant 0 : i32
    return %c0_i32, %arg0, %c0_i32_0, %c0_i32_1 : i32, i32, i32, i32
  }
  func.func @transform_4(%arg0: i32) -> (i32, i32, i32, i32) {
    %c0_i32 = arith.constant 0 : i32
    %c0_i32_0 = arith.constant 0 : i32
    %c0_i32_1 = arith.constant 0 : i32
    %c0_i32_2 = arith.constant 0 : i32
    return %c0_i32, %arg0, %c0_i32_0, %c0_i32_1 : i32, i32, i32, i32
  }
  func.func @transform_5(%arg0: i32) -> (i32, i32, i32) {
    %c0_i32 = arith.constant 0 : i32
    %c0_i32_0 = arith.constant 0 : i32
    %c0_i32_1 = arith.constant 0 : i32
    return %arg0, %c0_i32, %c0_i32_0 : i32, i32, i32
  }
}

</mosaic_0001>

<llo_original>
// kernel: vcl_forward.1
$region0: #{vcl_forward.1}
  #allocation0 [shape = 'u32[]', space=smem, size = 0x4, offset = 0x4, fixed_abs, tag = 'smem constant byte address 0x4 - core index']
  #allocation1 [shape = 'u32[144,128]{1,0:T(1,128)}', space=vmem, size = 0x12000, scoped, tag = 'internal scratch']
  %s0 = inlined_call_operand.vmem [shape: f32[8,32], index: 0, kind: input, shape index: {}]
  %s1 = inlined_call_operand.vmem [shape: f32[2,4,32,32], index: 1, kind: input, shape index: {}]
  %s2 = inlined_call_operand.vmem [shape: f32[2,4,1,32], index: 2, kind: input, shape index: {}]
  %s3 = inlined_call_operand.vmem [shape: f32[4,10,32,32], index: 3, kind: input, shape index: {}]
  %s4 = inlined_call_operand.vmem [shape: f32[4,10,1,32], index: 4, kind: input, shape index: {}]
  %s5 = inlined_call_operand.vmem [shape: f32[2,8,8], index: 5, kind: output, shape index: {}]
  %s6 = sld [smem:[#allocation0]]
  $region132: #{vcl_forward.1} parent=0
    _
  %s8 = ssub.s32 1, %s6
  %s9 = scalar_select 0, %s8, %s6
  $region1: #{vcl_forward.1} parent=0
    #allocation2 [shape = 'u8[655360]{0}', space=vmem, size = 0xa0000, scoped, tag = 'input window, operand 3']
    #allocation3 [shape = 'u8[20480]{0}', space=vmem, size = 0x5000, scoped, tag = 'input window, operand 4']
    loop: start=0, step=1, limit=4
    $region2: #{vcl_forward.1} parent=1 // loop_pre_header
      _
    $region3: #{vcl_forward.1} parent=1 // loop_header
      %s11 = sphi 0, %s15
      %p12 = scmp.ge.s32.totalorder %s11, 4
      %s19 = sphi 0, %s19
      %s21 = sphi 0, %s19
      %s22 = sphi 0, %s21
      %s36 = sphi 0, %s22
      %s40 = sphi 0, %s40
      %s42 = sphi 0, %s40
      %s43 = sphi 0, %s42
      %s57 = sphi 0, %s43
      %s61 = sphi 0, %s61
      %s63 = sphi 0, %s61
      %s64 = sphi 0, %s63
      %s78 = sphi 0, %s64
      %s84 = sphi 0, %s86
      %s87 = sphi 0, %s84
      %s88 = sphi 0, %s87
      %s104 = sphi 0, %s88
      %s110 = sphi 0, %s112
      %s113 = sphi 0, %s110
      %s114 = sphi 0, %s113
      %s130 = sphi 0, %s114
      %s136 = sphi 0, %s138
      %s139 = sphi 0, %s136
      %s140 = sphi 0, %s139
      %s156 = sphi 0, %s140
    $region4: #{vcl_forward.1} parent=1 // loop_header_branch
      %14 = sbr.rel (%p12) target = $region8
    $region5: #{vcl_forward.1} parent=1 // loop_body
      %s16 = ssub.s32 %s11, 1
      %s17 = ssub.s32 %s11, 2
      %s18 = sadd.s32 %s11, 1
      %s20 = sadd.s32 %s19, 1
      %p23 = scmp.eq.s32.totalorder %s11, 1
      %p24 = scmp.ne.s32.totalorder %s19, %s21
      %p25 = scmp.eq.s32.totalorder %s11, 0
      %p26 = por %p24, %p25
      %p27 = scmp.ne.s32.totalorder %s19, %s21
      %p28 = scmp.eq.s32.totalorder %s16, 1
      %p29 = por %p27, %p28
      %p30 = scmp.ne.s32.totalorder %s21, %s22
      %p31 = scmp.eq.s32.totalorder %s16, 0
      %p32 = por %p30, %p31
      %p33 = scmp.ne.s32.totalorder %s21, %s22
      %p34 = scmp.eq.s32.totalorder %s17, 1
      %p35 = por %p33, %p34
      %p37 = scmp.ne.s32.totalorder %s22, %s36
      %p38 = scmp.eq.s32.totalorder %s17, 0
      %p39 = por %p37, %p38
      %s41 = sadd.s32 %s40, 1
      %p44 = scmp.eq.s32.totalorder %s11, 1
      %p45 = scmp.ne.s32.totalorder %s40, %s42
      %p46 = scmp.eq.s32.totalorder %s11, 0
      %p47 = por %p45, %p46
      %p48 = scmp.ne.s32.totalorder %s40, %s42
      %p49 = scmp.eq.s32.totalorder %s16, 1
      %p50 = por %p48, %p49
      %p51 = scmp.ne.s32.totalorder %s42, %s43
      %p52 = scmp.eq.s32.totalorder %s16, 0
      %p53 = por %p51, %p52
      %p54 = scmp.ne.s32.totalorder %s42, %s43
      %p55 = scmp.eq.s32.totalorder %s17, 1
      %p56 = por %p54, %p55
      %p58 = scmp.ne.s32.totalorder %s43, %s57
      %p59 = scmp.eq.s32.totalorder %s17, 0
      %p60 = por %p58, %p59
      %s62 = sadd.s32 %s61, 1
      %p65 = scmp.eq.s32.totalorder %s11, 1
      %p66 = scmp.ne.s32.totalorder %s61, %s63
      %p67 = scmp.eq.s32.totalorder %s11, 0
      %p68 = por %p66, %p67
      %p69 = scmp.ne.s32.totalorder %s61, %s63
      %p70 = scmp.eq.s32.totalorder %s16, 1
      %p71 = por %p69, %p70
      %p72 = scmp.ne.s32.totalorder %s63, %s64
      %p73 = scmp.eq.s32.totalorder %s16, 0
      %p74 = por %p72, %p73
      %p75 = scmp.ne.s32.totalorder %s63, %s64
      %p76 = scmp.eq.s32.totalorder %s17, 1
      %p77 = por %p75, %p76
      %p79 = scmp.ne.s32.totalorder %s64, %s78
      %p80 = scmp.eq.s32.totalorder %s17, 0
      %p81 = por %p79, %p80
      %s82 = ssub.s32 %s11, %s18
      %p83 = scmp.eq.s32.totalorder %s82, 0
      %s85 = sadd.s32 %s84, 1
      %s86 = scalar_select %p83, %s84, %s85
      %p89 = pneg %p83
      %p90 = scmp.eq.s32.totalorder %s11, 1
      %p91 = por %p89, %p90
      %p92 = scmp.ne.s32.totalorder %s84, %s87
      %p93 = scmp.eq.s32.totalorder %s11, 0
      %p94 = por %p92, %p93
      %p95 = scmp.ne.s32.totalorder %s84, %s87
      %p96 = scmp.eq.s32.totalorder %s16, 1
      %p97 = por %p95, %p96
      %p98 = scmp.ne.s32.totalorder %s87, %s88
      %p99 = scmp.eq.s32.totalorder %s16, 0
      %p100 = por %p98, %p99
      %p101 = scmp.ne.s32.totalorder %s87, %s88
      %p102 = scmp.eq.s32.totalorder %s17, 1
      %p103 = por %p101, %p102
      %p105 = scmp.ne.s32.totalorder %s88, %s104
      %p106 = scmp.eq.s32.totalorder %s17, 0
      %p107 = por %p105, %p106
      %s108 = ssub.s32 %s11, %s18
      %p109 = scmp.eq.s32.totalorder %s108, 0
      %s111 = sadd.s32 %s110, 1
      %s112 = scalar_select %p109, %s110, %s111
      %p115 = pneg %p109
      %p116 = scmp.eq.s32.totalorder %s11, 1
      %p117 = por %p115, %p116
      %p118 = scmp.ne.s32.totalorder %s110, %s113
      %p119 = scmp.eq.s32.totalorder %s11, 0
      %p120 = por %p118, %p119
      %p121 = scmp.ne.s32.totalorder %s110, %s113
      %p122 = scmp.eq.s32.totalorder %s16, 1
      %p123 = por %p121, %p122
      %p124 = scmp.ne.s32.totalorder %s113, %s114
      %p125 = scmp.eq.s32.totalorder %s16, 0
      %p126 = por %p124, %p125
      %p127 = scmp.ne.s32.totalorder %s113, %s114
      %p128 = scmp.eq.s32.totalorder %s17, 1
      %p129 = por %p127, %p128
      %p131 = scmp.ne.s32.totalorder %s114, %s130
      %p132 = scmp.eq.s32.totalorder %s17, 0
      %p133 = por %p131, %p132
      %s134 = ssub.s32 %s11, %s18
      %p135 = scmp.eq.s32.totalorder %s134, 0
      %s137 = sadd.s32 %s136, 1
      %s138 = scalar_select %p135, %s136, %s137
      %p141 = pneg %p135
      %p142 = scmp.eq.s32.totalorder %s11, 1
      %p143 = por %p141, %p142
      %p144 = scmp.ne.s32.totalorder %s136, %s139
      %p145 = scmp.eq.s32.totalorder %s11, 0
      %p146 = por %p144, %p145
      %p147 = scmp.ne.s32.totalorder %s136, %s139
      %p148 = scmp.eq.s32.totalorder %s16, 1
      %p149 = por %p147, %p148
      %p150 = scmp.ne.s32.totalorder %s139, %s140
      %p151 = scmp.eq.s32.totalorder %s16, 0
      %p152 = por %p150, %p151
      %p153 = scmp.ne.s32.totalorder %s139, %s140
      %p154 = scmp.eq.s32.totalorder %s17, 1
      %p155 = por %p153, %p154
      %p157 = scmp.ne.s32.totalorder %s140, %s156
      %p158 = scmp.eq.s32.totalorder %s17, 0
      %p159 = por %p157, %p158
      %p160 = scmp.le.s32.totalorder 1, %s11
      %p161 = scmp.lt.s32.totalorder %s11, 3
      %p162 = pnand %p160, %p161
      %p163 = pneg %p162
      // Predicated region
      $region9: #{vcl_forward.1} parent=5 // pred_check
        _
      $region10: #{vcl_forward.1} parent=5 // pred_check_branch
        %165 = sbr.rel (%p162) target = $region12
      $region11: #{vcl_forward.1} parent=5 // pred_region
        %s166 = ssub.s32 %s11, 1
        // Predicated region
        $region13: #{vcl_forward.1} parent=11 // pred_check
          %p167 = pneg %p32
        $region14: #{vcl_forward.1} parent=11 // pred_check_branch
          %169 = sbr.rel (%p167) target = $region16
        $region15: #{vcl_forward.1} parent=11 // pred_region
          _
        $region16: #{vcl_forward.1} parent=11 // pred_fallthru
          _
        // Predicated region
        $region17: #{vcl_forward.1} parent=11 // pred_check
          %p170 = pneg %p53
        $region18: #{vcl_forward.1} parent=11 // pred_check_branch
          %172 = sbr.rel (%p170) target = $region20
        $region19: #{vcl_forward.1} parent=11 // pred_region
          _
        $region20: #{vcl_forward.1} parent=11 // pred_fallthru
          _
        // Predicated region
        $region21: #{vcl_forward.1} parent=11 // pred_check
          %p173 = pneg %p74
        $region22: #{vcl_forward.1} parent=11 // pred_check_branch
          %175 = sbr.rel (%p173) target = $region24
        $region23: #{vcl_forward.1} parent=11 // pred_region
          _
        $region24: #{vcl_forward.1} parent=11 // pred_fallthru
          _
      $region12: #{vcl_forward.1} parent=5 // pred_fallthru
        _
      %p176 = scmp.lt.s32.totalorder %s11, 2
      // Predicated region
      $region25: #{vcl_forward.1} parent=5 // pred_check
        %p177 = pneg %p176
      $region26: #{vcl_forward.1} parent=5 // pred_check_branch
        %179 = sbr.rel (%p177) target = $region28
      $region27: #{vcl_forward.1} parent=5 // pred_region
        // Predicated region
        $region29: #{vcl_forward.1} parent=27 // pred_check
          %p180 = pneg %p94
        $region30: #{vcl_forward.1} parent=27 // pred_check_branch
          %182 = sbr.rel (%p180) target = $region32
        $region31: #{vcl_forward.1} parent=27 // pred_region
          %s183 = sand.u32 %s84, 1
          %s184 = sand.u32 %s84, 1
          %s185 = smul.addr %s184, 640
          %s186 = scalar_lea.vmem [#allocation2], %s185
          %s187 = smul.u32 5, %s11
          %s188 = smul.addr %s187, 4
          %s189 = smul.addr %s188, 8
          %s190 = scalar_lea.vmem %s3, %s189
          // Predicated region
          $region33: #{vcl_forward.1} parent=31 // pred_check
            _
          $region34: #{vcl_forward.1} parent=31 // pred_check_branch
            %192 = sbr.rel (0) target = $region36
          $region35: #{vcl_forward.1} parent=31 // pred_region
            // Predicated region
            $region37: #{vcl_forward.1} parent=35 // pred_check
              _
            $region38: #{vcl_forward.1} parent=35 // pred_check_branch
              %194 = sbr.rel (0) target = $region40
            $region39: #{vcl_forward.1} parent=35 // pred_region
              // Predicated region
              $region52: #{vcl_forward.1} parent=39 // pred_check
                _
              $region53: #{vcl_forward.1} parent=39 // pred_check_branch
                %368 = sbr.rel (0) target = $region55
              $region54: #{vcl_forward.1} parent=39 // pred_region
                loop: start=0, step=1, limit=1
                $region56: #{vcl_forward.1} parent=54 // loop_pre_header
                  _
                $region57: #{vcl_forward.1} parent=54 // loop_header
                  %s370 = sphi 0, %s374
                  %p371 = scmp.ge.s32.totalorder %s370, 1
                  %s375 = sphi %s190, %s190
                  %s376 = sphi %s186, %s186
                $region58: #{vcl_forward.1} parent=54 // loop_header_branch
                  %373 = sbr.rel (%p371) target = $region62
                $region59: #{vcl_forward.1} parent=54 // loop_body
                  %v377 = vld [vmem:[%s375] sm:$0xff]
                  %378 = vst [vmem:[%s376] sm:$0xff] %v377
                  %v379 = vld [vmem:[%s375 + $0x8] sm:$0xff]
                  %380 = vst [vmem:[%s376 + $0x8] sm:$0xff] %v379
                  %v381 = vld [vmem:[%s375 + $0x10] sm:$0xff]
                  %382 = vst [vmem:[%s376 + $0x10] sm:$0xff] %v381
                  %v383 = vld [vmem:[%s375 + $0x18] sm:$0xff]
                  %384 = vst [vmem:[%s376 + $0x18] sm:$0xff] %v383
                  %v385 = vld [vmem:[%s375 + $0x20] sm:$0xff]
                  %386 = vst [vmem:[%s376 + $0x20] sm:$0xff] %v385
                  %v387 = vld [vmem:[%s375 + $0x28] sm:$0xff]
                  %388 = vst [vmem:[%s376 + $0x28] sm:$0xff] %v387
                  %v389 = vld [vmem:[%s375 + $0x30] sm:$0xff]
                  %390 = vst [vmem:[%s376 + $0x30] sm:$0xff] %v389
                  %v391 = vld [vmem:[%s375 + $0x38] sm:$0xff]
                  %392 = vst [vmem:[%s376 + $0x38] sm:$0xff] %v391
                  %v393 = vld [vmem:[%s375 + $0x40] sm:$0xff]
                  %394 = vst [vmem:[%s376 + $0x40] sm:$0xff] %v393
                  %v395 = vld [vmem:[%s375 + $0x48] sm:$0xff]
                  %396 = vst [vmem:[%s376 + $0x48] sm:$0xff] %v395
                  %v397 = vld [vmem:[%s375 + $0x50] sm:$0xff]
                  %398 = vst [vmem:[%s376 + $0x50] sm:$0xff] %v397
                  %v399 = vld [vmem:[%s375 + $0x58] sm:$0xff]
                  %400 = vst [vmem:[%s376 + $0x58] sm:$0xff] %v399
                  %v401 = vld [vmem:[%s375 + $0x60] sm:$0xff]
                  %402 = vst [vmem:[%s376 + $0x60] sm:$0xff] %v401
                  %v403 = vld [vmem:[%s375 + $0x68] sm:$0xff]
                  %404 = vst [vmem:[%s376 + $0x68] sm:$0xff] %v403
                  %v405 = vld [vmem:[%s375 + $0x70] sm:$0xff]
                  %406 = vst [vmem:[%s376 + $0x70] sm:$0xff] %v405
                  %v407 = vld [vmem:[%s375 + $0x78] sm:$0xff]
                  %408 = vst [vmem:[%s376 + $0x78] sm:$0xff] %v407
                  %v409 = vld [vmem:[%s375 + $0x80] sm:$0xff]
                  %410 = vst [vmem:[%s376 + $0x80] sm:$0xff] %v409
                  %v411 = vld [vmem:[%s375 + $0x88] sm:$0xff]
                  %412 = vst [vmem:[%s376 + $0x88] sm:$0xff] %v411
                  %v413 = vld [vmem:[%s375 + $0x90] sm:$0xff]
                  %414 = vst [vmem:[%s376 + $0x90] sm:$0xff] %v413
                  %v415 = vld [vmem:[%s375 + $0x98] sm:$0xff]
                  %416 = vst [vmem:[%s376 + $0x98] sm:$0xff] %v415
                  %v417 = vld [vmem:[%s375 + $0x140] sm:$0xff]
                  %418 = vst [vmem:[%s376 + $0xa0] sm:$0xff] %v417
                  %v419 = vld [vmem:[%s375 + $0x148] sm:$0xff]
                  %420 = vst [vmem:[%s376 + $0xa8] sm:$0xff] %v419
                  %v421 = vld [vmem:[%s375 + $0x150] sm:$0xff]
                  %422 = vst [vmem:[%s376 + $0xb0] sm:$0xff] %v421
                  %v423 = vld [vmem:[%s375 + $0x158] sm:$0xff]
                  %424 = vst [vmem:[%s376 + $0xb8] sm:$0xff] %v423
                  %v425 = vld [vmem:[%s375 + $0x160] sm:$0xff]
                  %426 = vst [vmem:[%s376 + $0xc0] sm:$0xff] %v425
                  %v427 = vld [vmem:[%s375 + $0x168] sm:$0xff]
                  %428 = vst [vmem:[%s376 + $0xc8] sm:$0xff] %v427
                  %v429 = vld [vmem:[%s375 + $0x170] sm:$0xff]
                  %430 = vst [vmem:[%s376 + $0xd0] sm:$0xff] %v429
                  %v431 = vld [vmem:[%s375 + $0x178] sm:$0xff]
                  %432 = vst [vmem:[%s376 + $0xd8] sm:$0xff] %v431
                  %v433 = vld [vmem:[%s375 + $0x180] sm:$0xff]
                  %434 = vst [vmem:[%s376 + $0xe0] sm:$0xff] %v433
                  %v435 = vld [vmem:[%s375 + $0x188] sm:$0xff]
                  %436 = vst [vmem:[%s376 + $0xe8] sm:$0xff] %v435
                  %v437 = vld [vmem:[%s375 + $0x190] sm:$0xff]
                  %438 = vst [vmem:[%s376 + $0xf0] sm:$0xff] %v437
                  %v439 = vld [vmem:[%s375 + $0x198] sm:$0xff]
                  %440 = vst [vmem:[%s376 + $0xf8] sm:$0xff] %v439
                  %v441 = vld [vmem:[%s375 + $0x1a0] sm:$0xff]
                  %442 = vst [vmem:[%s376 + $0x100] sm:$0xff] %v441
                  %v443 = vld [vmem:[%s375 + $0x1a8] sm:$0xff]
                  %444 = vst [vmem:[%s376 + $0x108] sm:$0xff] %v443
                  %v445 = vld [vmem:[%s375 + $0x1b0] sm:$0xff]
                  %446 = vst [vmem:[%s376 + $0x110] sm:$0xff] %v445
                  %v447 = vld [vmem:[%s375 + $0x1b8] sm:$0xff]
                  %448 = vst [vmem:[%s376 + $0x118] sm:$0xff] %v447
                  %v449 = vld [vmem:[%s375 + $0x1c0] sm:$0xff]
                  %450 = vst [vmem:[%s376 + $0x120] sm:$0xff] %v449
                  %v451 = vld [vmem:[%s375 + $0x1c8] sm:$0xff]
                  %452 = vst [vmem:[%s376 + $0x128] sm:$0xff] %v451
                  %v453 = vld [vmem:[%s375 + $0x1d0] sm:$0xff]
                  %454 = vst [vmem:[%s376 + $0x130] sm:$0xff] %v453
                  %v455 = vld [vmem:[%s375 + $0x1d8] sm:$0xff]
                  %456 = vst [vmem:[%s376 + $0x138] sm:$0xff] %v455
                  %v457 = vld [vmem:[%s375 + $0x280] sm:$0xff]
                  %458 = vst [vmem:[%s376 + $0x140] sm:$0xff] %v457
                  %v459 = vld [vmem:[%s375 + $0x288] sm:$0xff]
                  %460 = vst [vmem:[%s376 + $0x148] sm:$0xff] %v459
                  %v461 = vld [vmem:[%s375 + $0x290] sm:$0xff]
                  %462 = vst [vmem:[%s376 + $0x150] sm:$0xff] %v461
                  %v463 = vld [vmem:[%s375 + $0x298] sm:$0xff]
                  %464 = vst [vmem:[%s376 + $0x158] sm:$0xff] %v463
                  %v465 = vld [vmem:[%s375 + $0x2a0] sm:$0xff]
                  %466 = vst [vmem:[%s376 + $0x160] sm:$0xff] %v465
                  %v467 = vld [vmem:[%s375 + $0x2a8] sm:$0xff]
                  %468 = vst [vmem:[%s376 + $0x168] sm:$0xff] %v467
                  %v469 = vld [vmem:[%s375 + $0x2b0] sm:$0xff]
                  %470 = vst [vmem:[%s376 + $0x170] sm:$0xff] %v469
                  %v471 = vld [vmem:[%s375 + $0x2b8] sm:$0xff]
                  %472 = vst [vmem:[%s376 + $0x178] sm:$0xff] %v471
                  %v473 = vld [vmem:[%s375 + $0x2c0] sm:$0xff]
                  %474 = vst [vmem:[%s376 + $0x180] sm:$0xff] %v473
                  %v475 = vld [vmem:[%s375 + $0x2c8] sm:$0xff]
                  %476 = vst [vmem:[%s376 + $0x188] sm:$0xff] %v475
                  %v477 = vld [vmem:[%s375 + $0x2d0] sm:$0xff]
                  %478 = vst [vmem:[%s376 + $0x190] sm:$0xff] %v477
                  %v479 = vld [vmem:[%s375 + $0x2d8] sm:$0xff]
                  %480 = vst [vmem:[%s376 + $0x198] sm:$0xff] %v479
                  %v481 = vld [vmem:[%s375 + $0x2e0] sm:$0xff]
                  %482 = vst [vmem:[%s376 + $0x1a0] sm:$0xff] %v481
                  %v483 = vld [vmem:[%s375 + $0x2e8] sm:$0xff]
                  %484 = vst [vmem:[%s376 + $0x1a8] sm:$0xff] %v483
                  %v485 = vld [vmem:[%s375 + $0x2f0] sm:$0xff]
                  %486 = vst [vmem:[%s376 + $0x1b0] sm:$0xff] %v485
                  %v487 = vld [vmem:[%s375 + $0x2f8] sm:$0xff]
                  %488 = vst [vmem:[%s376 + $0x1b8] sm:$0xff] %v487
                  %v489 = vld [vmem:[%s375 + $0x300] sm:$0xff]
                  %490 = vst [vmem:[%s376 + $0x1c0] sm:$0xff] %v489
                  %v491 = vld [vmem:[%s375 + $0x308] sm:$0xff]
                  %492 = vst [vmem:[%s376 + $0x1c8] sm:$0xff] %v491
                  %v493 = vld [vmem:[%s375 + $0x310] sm:$0xff]
                  %494 = vst [vmem:[%s376 + $0x1d0] sm:$0xff] %v493
                  %v495 = vld [vmem:[%s375 + $0x318] sm:$0xff]
                  %496 = vst [vmem:[%s376 + $0x1d8] sm:$0xff] %v495
                  %v497 = vld [vmem:[%s375 + $0x3c0] sm:$0xff]
                  %498 = vst [vmem:[%s376 + $0x1e0] sm:$0xff] %v497
                  %v499 = vld [vmem:[%s375 + $0x3c8] sm:$0xff]
                  %500 = vst [vmem:[%s376 + $0x1e8] sm:$0xff] %v499
                  %v501 = vld [vmem:[%s375 + $0x3d0] sm:$0xff]
                  %502 = vst [vmem:[%s376 + $0x1f0] sm:$0xff] %v501
                  %v503 = vld [vmem:[%s375 + $0x3d8] sm:$0xff]
                  %504 = vst [vmem:[%s376 + $0x1f8] sm:$0xff] %v503
                  %v505 = vld [vmem:[%s375 + $0x3e0] sm:$0xff]
                  %506 = vst [vmem:[%s376 + $0x200] sm:$0xff] %v505
                  %v507 = vld [vmem:[%s375 + $0x3e8] sm:$0xff]
                  %508 = vst [vmem:[%s376 + $0x208] sm:$0xff] %v507
                  %v509 = vld [vmem:[%s375 + $0x3f0] sm:$0xff]
                  %510 = vst [vmem:[%s376 + $0x210] sm:$0xff] %v509
                  %v511 = vld [vmem:[%s375 + $0x3f8] sm:$0xff]
                  %512 = vst [vmem:[%s376 + $0x218] sm:$0xff] %v511
                  %v513 = vld [vmem:[%s375 + $0x400] sm:$0xff]
                  %514 = vst [vmem:[%s376 + $0x220] sm:$0xff] %v513
                  %v515 = vld [vmem:[%s375 + $0x408] sm:$0xff]
                  %516 = vst [vmem:[%s376 + $0x228] sm:$0xff] %v515
                  %v517 = vld [vmem:[%s375 + $0x410] sm:$0xff]
                  %518 = vst [vmem:[%s376 + $0x230] sm:$0xff] %v517
                  %v519 = vld [vmem:[%s375 + $0x418] sm:$0xff]
                  %520 = vst [vmem:[%s376 + $0x238] sm:$0xff] %v519
                  %v521 = vld [vmem:[%s375 + $0x420] sm:$0xff]
                  %522 = vst [vmem:[%s376 + $0x240] sm:$0xff] %v521
                  %v523 = vld [vmem:[%s375 + $0x428] sm:$0xff]
                  %524 = vst [vmem:[%s376 + $0x248] sm:$0xff] %v523
                  %v525 = vld [vmem:[%s375 + $0x430] sm:$0xff]
                  %526 = vst [vmem:[%s376 + $0x250] sm:$0xff] %v525
                  %v527 = vld [vmem:[%s375 + $0x438] sm:$0xff]
                  %528 = vst [vmem:[%s376 + $0x258] sm:$0xff] %v527
                  %v529 = vld [vmem:[%s375 + $0x440] sm:$0xff]
                  %530 = vst [vmem:[%s376 + $0x260] sm:$0xff] %v529
                  %v531 = vld [vmem:[%s375 + $0x448] sm:$0xff]
                  %532 = vst [vmem:[%s376 + $0x268] sm:$0xff] %v531
                  %v533 = vld [vmem:[%s375 + $0x450] sm:$0xff]
                  %534 = vst [vmem:[%s376 + $0x270] sm:$0xff] %v533
                  %v535 = vld [vmem:[%s375 + $0x458] sm:$0xff]
                  %536 = vst [vmem:[%s376 + $0x278] sm:$0xff] %v535
                $region60: #{vcl_forward.1} parent=54 // loop_footer
                  %s374 = sadd.s32 1, %s370
                $region61: #{vcl_forward.1} parent=54 // loop_footer_branch
                  %369 = sbr.rel target = $region57
                $region62: #{vcl_forward.1} parent=54 // loop_exit
                  _
              $region55: #{vcl_forward.1} parent=39 // pred_fallthru
                _
              // Predicated region
              $region63: #{vcl_forward.1} parent=39 // pred_check
                _
              $region64: #{vcl_forward.1} parent=39 // pred_check_branch
                %538 = sbr.rel target = $region66
              $region65: #{vcl_forward.1} parent=39 // pred_region
                _
              $region66: #{vcl_forward.1} parent=39 // pred_fallthru
                _
            $region40: #{vcl_forward.1} parent=35 // pred_fallthru
              _
            // Predicated region
            $region41: #{vcl_forward.1} parent=35 // pred_check
              _
            $region42: #{vcl_forward.1} parent=35 // pred_check_branch
              %196 = sbr.rel target = $region44
            $region43: #{vcl_forward.1} parent=35 // pred_region
              %s198 = ssub.s32 256, 1
              loop: start=0, step=1, limit=1
              $region45: #{vcl_forward.1} parent=43 // loop_pre_header
                _
              $region46: #{vcl_forward.1} parent=43 // loop_header
                %s200 = sphi 0, %s204
                %p201 = scmp.ge.s32.totalorder %s200, 1
                %s205 = sphi %s190, %s190
                %s206 = sphi %s186, %s186
              $region47: #{vcl_forward.1} parent=43 // loop_header_branch
                %203 = sbr.rel (%p201) target = $region51
              $region48: #{vcl_forward.1} parent=43 // loop_body
                %v207 = vld [vmem:[%s205] sm:%s198]
                %208 = vst [vmem:[%s206] sm:%s198] %v207
                %v209 = vld [vmem:[%s205 + $0x8] sm:%s198]
                %210 = vst [vmem:[%s206 + $0x8] sm:%s198] %v209
                %v211 = vld [vmem:[%s205 + $0x10] sm:%s198]
                %212 = vst [vmem:[%s206 + $0x10] sm:%s198] %v211
                %v213 = vld [vmem:[%s205 + $0x18] sm:%s198]
                %214 = vst [vmem:[%s206 + $0x18] sm:%s198] %v213
                %v215 = vld [vmem:[%s205 + $0x20] sm:%s198]
                %216 = vst [vmem:[%s206 + $0x20] sm:%s198] %v215
                %v217 = vld [vmem:[%s205 + $0x28] sm:%s198]
                %218 = vst [vmem:[%s206 + $0x28] sm:%s198] %v217
                %v219 = vld [vmem:[%s205 + $0x30] sm:%s198]
                %220 = vst [vmem:[%s206 + $0x30] sm:%s198] %v219
                %v221 = vld [vmem:[%s205 + $0x38] sm:%s198]
                %222 = vst [vmem:[%s206 + $0x38] sm:%s198] %v221
                %v223 = vld [vmem:[%s205 + $0x40] sm:%s198]
                %224 = vst [vmem:[%s206 + $0x40] sm:%s198] %v223
                %v225 = vld [vmem:[%s205 + $0x48] sm:%s198]
                %226 = vst [vmem:[%s206 + $0x48] sm:%s198] %v225
                %v227 = vld [vmem:[%s205 + $0x50] sm:%s198]
                %228 = vst [vmem:[%s206 + $0x50] sm:%s198] %v227
                %v229 = vld [vmem:[%s205 + $0x58] sm:%s198]
                %230 = vst [vmem:[%s206 + $0x58] sm:%s198] %v229
                %v231 = vld [vmem:[%s205 + $0x60] sm:%s198]
                %232 = vst [vmem:[%s206 + $0x60] sm:%s198] %v231
                %v233 = vld [vmem:[%s205 + $0x68] sm:%s198]
                %234 = vst [vmem:[%s206 + $0x68] sm:%s198] %v233
                %v235 = vld [vmem:[%s205 + $0x70] sm:%s198]
                %236 = vst [vmem:[%s206 + $0x70] sm:%s198] %v235
                %v237 = vld [vmem:[%s205 + $0x78] sm:%s198]
                %238 = vst [vmem:[%s206 + $0x78] sm:%s198] %v237
                %v239 = vld [vmem:[%s205 + $0x80] sm:%s198]
                %240 = vst [vmem:[%s206 + $0x80] sm:%s198] %v239
                %v241 = vld [vmem:[%s205 + $0x88] sm:%s198]
                %242 = vst [vmem:[%s206 + $0x88] sm:%s198] %v241
                %v243 = vld [vmem:[%s205 + $0x90] sm:%s198]
                %244 = vst [vmem:[%s206 + $0x90] sm:%s198] %v243
                %v245 = vld [vmem:[%s205 + $0x98] sm:%s198]
                %246 = vst [vmem:[%s206 + $0x98] sm:%s198] %v245
                %v247 = vld [vmem:[%s205 + $0x140] sm:%s198]
                %248 = vst [vmem:[%s206 + $0xa0] sm:%s198] %v247
                %v249 = vld [vmem:[%s205 + $0x148] sm:%s198]
                %250 = vst [vmem:[%s206 + $0xa8] sm:%s198] %v249
                %v251 = vld [vmem:[%s205 + $0x150] sm:%s198]
                %252 = vst [vmem:[%s206 + $0xb0] sm:%s198] %v251
                %v253 = vld [vmem:[%s205 + $0x158] sm:%s198]
                %254 = vst [vmem:[%s206 + $0xb8] sm:%s198] %v253
                %v255 = vld [vmem:[%s205 + $0x160] sm:%s198]
                %256 = vst [vmem:[%s206 + $0xc0] sm:%s198] %v255
                %v257 = vld [vmem:[%s205 + $0x168] sm:%s198]
                %258 = vst [vmem:[%s206 + $0xc8] sm:%s198] %v257
                %v259 = vld [vmem:[%s205 + $0x170] sm:%s198]
                %260 = vst [vmem:[%s206 + $0xd0] sm:%s198] %v259
                %v261 = vld [vmem:[%s205 + $0x178] sm:%s198]
                %262 = vst [vmem:[%s206 + $0xd8] sm:%s198] %v261
                %v263 = vld [vmem:[%s205 + $0x180] sm:%s198]
                %264 = vst [vmem:[%s206 + $0xe0] sm:%s198] %v263
                %v265 = vld [vmem:[%s205 + $0x188] sm:%s198]
                %266 = vst [vmem:[%s206 + $0xe8] sm:%s198] %v265
                %v267 = vld [vmem:[%s205 + $0x190] sm:%s198]
                %268 = vst [vmem:[%s206 + $0xf0] sm:%s198] %v267
                %v269 = vld [vmem:[%s205 + $0x198] sm:%s198]
                %270 = vst [vmem:[%s206 + $0xf8] sm:%s198] %v269
                %v271 = vld [vmem:[%s205 + $0x1a0] sm:%s198]
                %272 = vst [vmem:[%s206 + $0x100] sm:%s198] %v271
                %v273 = vld [vmem:[%s205 + $0x1a8] sm:%s198]
                %274 = vst [vmem:[%s206 + $0x108] sm:%s198] %v273
                %v275 = vld [vmem:[%s205 + $0x1b0] sm:%s198]
                %276 = vst [vmem:[%s206 + $0x110] sm:%s198] %v275
                %v277 = vld [vmem:[%s205 + $0x1b8] sm:%s198]
                %278 = vst [vmem:[%s206 + $0x118] sm:%s198] %v277
                %v279 = vld [vmem:[%s205 + $0x1c0] sm:%s198]
                %280 = vst [vmem:[%s206 + $0x120] sm:%s198] %v279
                %v281 = vld [vmem:[%s205 + $0x1c8] sm:%s198]
                %282 = vst [vmem:[%s206 + $0x128] sm:%s198] %v281
                %v283 = vld [vmem:[%s205 + $0x1d0] sm:%s198]
                %284 = vst [vmem:[%s206 + $0x130] sm:%s198] %v283
                %v285 = vld [vmem:[%s205 + $0x1d8] sm:%s198]
                %286 = vst [vmem:[%s206 + $0x138] sm:%s198] %v285
                %v287 = vld [vmem:[%s205 + $0x280] sm:%s198]
                %288 = vst [vmem:[%s206 + $0x140] sm:%s198] %v287
                %v289 = vld [vmem:[%s205 + $0x288] sm:%s198]
                %290 = vst [vmem:[%s206 + $0x148] sm:%s198] %v289
                %v291 = vld [vmem:[%s205 + $0x290] sm:%s198]
                %292 = vst [vmem:[%s206 + $0x150] sm:%s198] %v291
                %v293 = vld [vmem:[%s205 + $0x298] sm:%s198]
                %294 = vst [vmem:[%s206 + $0x158] sm:%s198] %v293
                %v295 = vld [vmem:[%s205 + $0x2a0] sm:%s198]
                %296 = vst [vmem:[%s206 + $0x160] sm:%s198] %v295
                %v297 = vld [vmem:[%s205 + $0x2a8] sm:%s198]
                %298 = vst [vmem:[%s206 + $0x168] sm:%s198] %v297
                %v299 = vld [vmem:[%s205 + $0x2b0] sm:%s198]
                %300 = vst [vmem:[%s206 + $0x170] sm:%s198] %v299
                %v301 = vld [vmem:[%s205 + $0x2b8] sm:%s198]
                %302 = vst [vmem:[%s206 + $0x178] sm:%s198] %v301
                %v303 = vld [vmem:[%s205 + $0x2c0] sm:%s198]
                %304 = vst [vmem:[%s206 + $0x180] sm:%s198] %v303
                %v305 = vld [vmem:[%s205 + $0x2c8] sm:%s198]
                %306 = vst [vmem:[%s206 + $0x188] sm:%s198] %v305
                %v307 = vld [vmem:[%s205 + $0x2d0] sm:%s198]
                %308 = vst [vmem:[%s206 + $0x190] sm:%s198] %v307
                %v309 = vld [vmem:[%s205 + $0x2d8] sm:%s198]
                %310 = vst [vmem:[%s206 + $0x198] sm:%s198] %v309
                %v311 = vld [vmem:[%s205 + $0x2e0] sm:%s198]
                %312 = vst [vmem:[%s206 + $0x1a0] sm:%s198] %v311
                %v313 = vld [vmem:[%s205 + $0x2e8] sm:%s198]
                %314 = vst [vmem:[%s206 + $0x1a8] sm:%s198] %v313
                %v315 = vld [vmem:[%s205 + $0x2f0] sm:%s198]
                %316 = vst [vmem:[%s206 + $0x1b0] sm:%s198] %v315
                %v317 = vld [vmem:[%s205 + $0x2f8] sm:%s198]
                %318 = vst [vmem:[%s206 + $0x1b8] sm:%s198] %v317
                %v319 = vld [vmem:[%s205 + $0x300] sm:%s198]
                %320 = vst [vmem:[%s206 + $0x1c0] sm:%s198] %v319
                %v321 = vld [vmem:[%s205 + $0x308] sm:%s198]
                %322 = vst [vmem:[%s206 + $0x1c8] sm:%s198] %v321
                %v323 = vld [vmem:[%s205 + $0x310] sm:%s198]
                %324 = vst [vmem:[%s206 + $0x1d0] sm:%s198] %v323
                %v325 = vld [vmem:[%s205 + $0x318] sm:%s198]
                %326 = vst [vmem:[%s206 + $0x1d8] sm:%s198] %v325
                %v327 = vld [vmem:[%s205 + $0x3c0] sm:%s198]
                %328 = vst [vmem:[%s206 + $0x1e0] sm:%s198] %v327
                %v329 = vld [vmem:[%s205 + $0x3c8] sm:%s198]
                %330 = vst [vmem:[%s206 + $0x1e8] sm:%s198] %v329
                %v331 = vld [vmem:[%s205 + $0x3d0] sm:%s198]
                %332 = vst [vmem:[%s206 + $0x1f0] sm:%s198] %v331
                %v333 = vld [vmem:[%s205 + $0x3d8] sm:%s198]
                %334 = vst [vmem:[%s206 + $0x1f8] sm:%s198] %v333
                %v335 = vld [vmem:[%s205 + $0x3e0] sm:%s198]
                %336 = vst [vmem:[%s206 + $0x200] sm:%s198] %v335
                %v337 = vld [vmem:[%s205 + $0x3e8] sm:%s198]
                %338 = vst [vmem:[%s206 + $0x208] sm:%s198] %v337
                %v339 = vld [vmem:[%s205 + $0x3f0] sm:%s198]
                %340 = vst [vmem:[%s206 + $0x210] sm:%s198] %v339
                %v341 = vld [vmem:[%s205 + $0x3f8] sm:%s198]
                %342 = vst [vmem:[%s206 + $0x218] sm:%s198] %v341
                %v343 = vld [vmem:[%s205 + $0x400] sm:%s198]
                %344 = vst [vmem:[%s206 + $0x220] sm:%s198] %v343
                %v345 = vld [vmem:[%s205 + $0x408] sm:%s198]
                %346 = vst [vmem:[%s206 + $0x228] sm:%s198] %v345
                %v347 = vld [vmem:[%s205 + $0x410] sm:%s198]
                %348 = vst [vmem:[%s206 + $0x230] sm:%s198] %v347
                %v349 = vld [vmem:[%s205 + $0x418] sm:%s198]
                %350 = vst [vmem:[%s206 + $0x238] sm:%s198] %v349
                %v351 = vld [vmem:[%s205 + $0x420] sm:%s198]
                %352 = vst [vmem:[%s206 + $0x240] sm:%s198] %v351
                %v353 = vld [vmem:[%s205 + $0x428] sm:%s198]
                %354 = vst [vmem:[%s206 + $0x248] sm:%s198] %v353
                %v355 = vld [vmem:[%s205 + $0x430] sm:%s198]
                %356 = vst [vmem:[%s206 + $0x250] sm:%s198] %v355
                %v357 = vld [vmem:[%s205 + $0x438] sm:%s198]
                %358 = vst [vmem:[%s206 + $0x258] sm:%s198] %v357
                %v359 = vld [vmem:[%s205 + $0x440] sm:%s198]
                %360 = vst [vmem:[%s206 + $0x260] sm:%s198] %v359
                %v361 = vld [vmem:[%s205 + $0x448] sm:%s198]
                %362 = vst [vmem:[%s206 + $0x268] sm:%s198] %v361
                %v363 = vld [vmem:[%s205 + $0x450] sm:%s198]
                %364 = vst [vmem:[%s206 + $0x270] sm:%s198] %v363
                %v365 = vld [vmem:[%s205 + $0x458] sm:%s198]
                %366 = vst [vmem:[%s206 + $0x278] sm:%s198] %v365
              $region49: #{vcl_forward.1} parent=43 // loop_footer
                %s204 = sadd.s32 1, %s200
              $region50: #{vcl_forward.1} parent=43 // loop_footer_branch
                %199 = sbr.rel target = $region46
              $region51: #{vcl_forward.1} parent=43 // loop_exit
                _
            $region44: #{vcl_forward.1} parent=35 // pred_fallthru
              _
          $region36: #{vcl_forward.1} parent=31 // pred_fallthru
            _
          %539 = vnop
        $region32: #{vcl_forward.1} parent=27 // pred_fallthru
          _
        // Predicated region
        $region67: #{vcl_forward.1} parent=27 // pred_check
          %p540 = pneg %p120
        $region68: #{vcl_forward.1} parent=27 // pred_check_branch
          %542 = sbr.rel (%p540) target = $region70
        $region69: #{vcl_forward.1} parent=27 // pred_region
          %s543 = sand.u32 %s110, 1
          %s544 = sand.u32 %s110, 1
          %s545 = smul.addr %s544, 20
          %s546 = scalar_lea.vmem [#allocation3], %s545
          %s547 = smul.u32 5, %s11
          %s548 = scalar_lea.vmem %s4, %s547
          // Predicated region
          $region71: #{vcl_forward.1} parent=69 // pred_check
            _
          $region72: #{vcl_forward.1} parent=69 // pred_check_branch
            %550 = sbr.rel (0) target = $region74
          $region73: #{vcl_forward.1} parent=69 // pred_region
            // Predicated region
            $region75: #{vcl_forward.1} parent=73 // pred_check
              _
            $region76: #{vcl_forward.1} parent=73 // pred_check_branch
              %552 = sbr.rel target = $region78
            $region77: #{vcl_forward.1} parent=73 // pred_region
              // Predicated region
              $region90: #{vcl_forward.1} parent=77 // pred_check
                _
              $region91: #{vcl_forward.1} parent=77 // pred_check_branch
                %574 = sbr.rel (0) target = $region93
              $region92: #{vcl_forward.1} parent=77 // pred_region
                loop: start=0, step=1, limit=1
                $region94: #{vcl_forward.1} parent=92 // loop_pre_header
                  _
                $region95: #{vcl_forward.1} parent=92 // loop_header
                  %s576 = sphi 0, %s580
                  %p577 = scmp.ge.s32.totalorder %s576, 1
                  %s581 = sphi %s548, %s548
                  %s582 = sphi %s546, %s546
                $region96: #{vcl_forward.1} parent=92 // loop_header_branch
                  %579 = sbr.rel (%p577) target = $region100
                $region97: #{vcl_forward.1} parent=92 // loop_body
                  _
                $region98: #{vcl_forward.1} parent=92 // loop_footer
                  %s580 = sadd.s32 1, %s576
                $region99: #{vcl_forward.1} parent=92 // loop_footer_branch
                  %575 = sbr.rel target = $region95
                $region100: #{vcl_forward.1} parent=92 // loop_exit
                  _
                %s584 = ssub.s32 32, 1
                loop: start=0, step=1, limit=1
                $region101: #{vcl_forward.1} parent=92 // loop_pre_header
                  _
                $region102: #{vcl_forward.1} parent=92 // loop_header
                  %s586 = sphi 0, %s590
                  %p587 = scmp.ge.s32.totalorder %s586, 1
                  %s591 = sphi %s548, %s548
                  %s592 = sphi %s546, %s546
                $region103: #{vcl_forward.1} parent=92 // loop_header_branch
                  %589 = sbr.rel (%p587) target = $region107
                $region104: #{vcl_forward.1} parent=92 // loop_body
                  %v593 = vld [vmem:[%s591] sm:%s584]
                  %594 = vst [vmem:[%s592] sm:%s584] %v593
                  %v595 = vld [vmem:[%s591 + $0xa] sm:%s584]
                  %596 = vst [vmem:[%s592 + $0x5] sm:%s584] %v595
                  %v597 = vld [vmem:[%s591 + $0x14] sm:%s584]
                  %598 = vst [vmem:[%s592 + $0xa] sm:%s584] %v597
                  %v599 = vld [vmem:[%s591 + $0x1e] sm:%s584]
                  %600 = vst [vmem:[%s592 + $0xf] sm:%s584] %v599
                $region105: #{vcl_forward.1} parent=92 // loop_footer
                  %s590 = sadd.s32 1, %s586
                $region106: #{vcl_forward.1} parent=92 // loop_footer_branch
                  %585 = sbr.rel target = $region102
                $region107: #{vcl_forward.1} parent=92 // loop_exit
                  _
              $region93: #{vcl_forward.1} parent=77 // pred_fallthru
                _
            $region78: #{vcl_forward.1} parent=73 // pred_fallthru
              _
            // Predicated region
            $region79: #{vcl_forward.1} parent=73 // pred_check
              _
            $region80: #{vcl_forward.1} parent=73 // pred_check_branch
              %554 = sbr.rel (0) target = $region82
            $region81: #{vcl_forward.1} parent=73 // pred_region
              %s556 = ssub.s32 32, 1
              loop: start=0, step=1, limit=1
              $region83: #{vcl_forward.1} parent=81 // loop_pre_header
                _
              $region84: #{vcl_forward.1} parent=81 // loop_header
                %s558 = sphi 0, %s562
                %p559 = scmp.ge.s32.totalorder %s558, 1
                %s563 = sphi %s548, %s548
                %s564 = sphi %s546, %s546
              $region85: #{vcl_forward.1} parent=81 // loop_header_branch
                %561 = sbr.rel (%p559) target = $region89
              $region86: #{vcl_forward.1} parent=81 // loop_body
                %v565 = vld [vmem:[%s563] sm:%s556]
                %566 = vst [vmem:[%s564] sm:%s556] %v565
                %v567 = vld [vmem:[%s563 + $0xa] sm:%s556]
                %568 = vst [vmem:[%s564 + $0x5] sm:%s556] %v567
                %v569 = vld [vmem:[%s563 + $0x14] sm:%s556]
                %570 = vst [vmem:[%s564 + $0xa] sm:%s556] %v569
                %v571 = vld [vmem:[%s563 + $0x1e] sm:%s556]
                %572 = vst [vmem:[%s564 + $0xf] sm:%s556] %v571
              $region87: #{vcl_forward.1} parent=81 // loop_footer
                %s562 = sadd.s32 1, %s558
              $region88: #{vcl_forward.1} parent=81 // loop_footer_branch
                %557 = sbr.rel target = $region84
              $region89: #{vcl_forward.1} parent=81 // loop_exit
                _
            $region82: #{vcl_forward.1} parent=73 // pred_fallthru
              _
          $region74: #{vcl_forward.1} parent=69 // pred_fallthru
            _
          %601 = vnop
        $region70: #{vcl_forward.1} parent=27 // pred_fallthru
          _
      $region28: #{vcl_forward.1} parent=5 // pred_fallthru
        _
      %p602 = scmp.le.s32.totalorder 1, %s11
      %p603 = scmp.lt.s32.totalorder %s11, 3
      %p604 = pnand %p602, %p603
      %p605 = pneg %p604
      // Predicated region
      $region108: #{vcl_forward.1} parent=5 // pred_check
        _
      $region109: #{vcl_forward.1} parent=5 // pred_check_branch
        %607 = sbr.rel (%p604) target = $region111
      $region110: #{vcl_forward.1} parent=5 // pred_region
        %s608 = ssub.s32 %s11, 1
        %s609 = sand.u32 %s87, 1
        %s610 = sand.u32 %s87, 1
        %s611 = smul.addr %s610, 640
        %s612 = scalar_lea.vmem [#allocation2], %s611
        // Predicated region
        $region112: #{vcl_forward.1} parent=110 // pred_check
          %p613 = pneg %p100
        $region113: #{vcl_forward.1} parent=110 // pred_check_branch
          %615 = sbr.rel (%p613) target = $region115
        $region114: #{vcl_forward.1} parent=110 // pred_region
          _
        $region115: #{vcl_forward.1} parent=110 // pred_fallthru
          _
        %s616 = sand.u32 %s113, 1
        %s617 = sand.u32 %s113, 1
        %s618 = smul.addr %s617, 20
        %s619 = scalar_lea.vmem [#allocation3], %s618
        // Predicated region
        $region116: #{vcl_forward.1} parent=110 // pred_check
          %p620 = pneg %p126
        $region117: #{vcl_forward.1} parent=110 // pred_check_branch
          %622 = sbr.rel (%p620) target = $region119
        $region118: #{vcl_forward.1} parent=110 // pred_region
          _
        $region119: #{vcl_forward.1} parent=110 // pred_fallthru
          _
        %p623 = pneg %p32
        %p624 = pneg %p29
        %p625 = pneg %p53
        %p626 = pneg %p50
        %p627 = pneg %p74
        %p628 = pneg %p71
        %s629 = sand.u32 %s87, 1
        %s630 = sand.u32 %s87, 1
        %s631 = smul.addr %s630, 640
        %s632 = scalar_lea.vmem [#allocation2], %s631
        %p633 = pneg %p100
        %p634 = pneg %p97
        %s635 = sand.u32 %s113, 1
        %s636 = sand.u32 %s113, 1
        %s637 = smul.addr %s636, 20
        %s638 = scalar_lea.vmem [#allocation3], %s637
        %p639 = pneg %p126
        %p640 = pneg %p123
        %p641 = pneg %p152
        %p642 = pneg %p149
        %p643 = scmp.lt.s32.totalorder %s16, 1
        %s644 = scalar_select %p643, %s16, 1
        %s645 = smul.addr %s644, 8
        %s646 = scalar_lea.vmem %s5, %s645
        %s647 = smul.u32 5, %s16
        %s648 = smul.u32 5, %s16
        %p649 = scmp.lt.s32.totalorder %s16, 1
        %s650 = scalar_select %p649, %s16, 1
        %s651 = smul.addr %s650, 8
        %s652 = scalar_lea.vmem %s5, %s651
        %v653 = vld [vmem:[%s0] sm:$0xff]
        %s654 = scalar_lea.vmem %s1, 128
        %v655 = vld [vmem:[%s654] sm:$0xff]
        %v656 = vld [vmem:[%s654 + $0x8] sm:$0xff]
        %v657 = vld [vmem:[%s654 + $0x10] sm:$0xff]
        %v658 = vld [vmem:[%s654 + $0x18] sm:$0xff]
        %v659 = vmul.f32 %v655, 0.5
        %v660 = vmul.f32 %v656, 0.5
        %v661 = vmul.f32 %v657, 0.5
        %v662 = vmul.f32 %v658, 0.5
        %v663 = vmul.f32 %v659, 1.442695
        %v664 = vpow.pop %v663
        %v665 = vmul.f32 %v660, 1.442695
        %v666 = vpow.pop %v665
        %v667 = vmul.f32 %v661, 1.442695
        %v668 = vpow.pop %v667
        %v669 = vmul.f32 %v662, 1.442695
        %v670 = vpow.pop %v669
        %s671 = scalar_lea.vmem %s2, 4
        %v672 = vld [vmem:[%s671] sm:$0x1]
        %v673 = vmul.f32 %v672, 0.5
        %v674 = vmul.f32 %v673, 1.442695
        %v675 = vpow.pop %v674
        %v676 = vld [vmem:[%s1] sm:$0xff]
        %v677 = vld [vmem:[%s1 + $0x8] sm:$0xff]
        %v678 = vld [vmem:[%s1 + $0x10] sm:$0xff]
        %v679 = vld [vmem:[%s1 + $0x18] sm:$0xff]
        %v680 = vld [vmem:[%s612] sm:$0xff]
        %v681 = vld [vmem:[%s612 + $0x8] sm:$0xff]
        %v682 = vld [vmem:[%s612 + $0x10] sm:$0xff]
        %v683 = vld [vmem:[%s612 + $0x18] sm:$0xff]
        %v684 = vld [vmem:[%s612 + $0x20] sm:$0xff]
        %v685 = vld [vmem:[%s612 + $0x28] sm:$0xff]
        %v686 = vld [vmem:[%s612 + $0x30] sm:$0xff]
        %v687 = vld [vmem:[%s612 + $0x38] sm:$0xff]
        %v688 = vld [vmem:[%s612 + $0x40] sm:$0xff]
        %v689 = vld [vmem:[%s612 + $0x48] sm:$0xff]
        %v690 = vld [vmem:[%s612 + $0x50] sm:$0xff]
        %v691 = vld [vmem:[%s612 + $0x58] sm:$0xff]
        %v692 = vld [vmem:[%s612 + $0x60] sm:$0xff]
        %v693 = vld [vmem:[%s612 + $0x68] sm:$0xff]
        %v694 = vld [vmem:[%s612 + $0x70] sm:$0xff]
        %v695 = vld [vmem:[%s612 + $0x78] sm:$0xff]
        %v696 = vld [vmem:[%s612 + $0x80] sm:$0xff]
        %v697 = vld [vmem:[%s612 + $0x88] sm:$0xff]
        %v698 = vld [vmem:[%s612 + $0x90] sm:$0xff]
        %v699 = vld [vmem:[%s612 + $0x98] sm:$0xff]
        %v700 = vmul.f32 %v680, %v664
        %v701 = vmul.f32 %v681, %v666
        %v702 = vmul.f32 %v682, %v668
        %v703 = vmul.f32 %v683, %v670
        %v704 = vmul.f32 %v684, %v664
        %v705 = vmul.f32 %v685, %v666
        %v706 = vmul.f32 %v686, %v668
        %v707 = vmul.f32 %v687, %v670
        %v708 = vmul.f32 %v688, %v664
        %v709 = vmul.f32 %v689, %v666
        %v710 = vmul.f32 %v690, %v668
        %v711 = vmul.f32 %v691, %v670
        %v712 = vmul.f32 %v692, %v664
        %v713 = vmul.f32 %v693, %v666
        %v714 = vmul.f32 %v694, %v668
        %v715 = vmul.f32 %v695, %v670
        %v716 = vmul.f32 %v696, %v664
        %v717 = vmul.f32 %v697, %v666
        %v718 = vmul.f32 %v698, %v668
        %v719 = vmul.f32 %v699, %v670
        %v720 = vadd.f32 %v676, %v700
        %v721 = vadd.f32 %v677, %v701
        %v722 = vadd.f32 %v678, %v702
        %v723 = vadd.f32 %v679, %v703
        %v724 = vadd.f32 %v676, %v704
        %v725 = vadd.f32 %v677, %v705
        %v726 = vadd.f32 %v678, %v706
        %v727 = vadd.f32 %v679, %v707
        %v728 = vadd.f32 %v676, %v708
        %v729 = vadd.f32 %v677, %v709
        %v730 = vadd.f32 %v678, %v710
        %v731 = vadd.f32 %v679, %v711
        %v732 = vadd.f32 %v676, %v712
        %v733 = vadd.f32 %v677, %v713
        %v734 = vadd.f32 %v678, %v714
        %v735 = vadd.f32 %v679, %v715
        %v736 = vadd.f32 %v676, %v716
        %v737 = vadd.f32 %v677, %v717
        %v738 = vadd.f32 %v678, %v718
        %v739 = vadd.f32 %v679, %v719
        %v740 = vld [vmem:[%s2] sm:$0x1]
        %v741 = vld [vmem:[%s619] sm:$0x1]
        %v742 = vld [vmem:[%s619 + $0x1] sm:$0x1]
        %v743 = vld [vmem:[%s619 + $0x2] sm:$0x1]
        %v744 = vld [vmem:[%s619 + $0x3] sm:$0x1]
        %v745 = vld [vmem:[%s619 + $0x4] sm:$0x1]
        %v746 = vmul.f32 %v741, %v675
        %v747 = vmul.f32 %v742, %v675
        %v748 = vmul.f32 %v743, %v675
        %v749 = vmul.f32 %v744, %v675
        %v750 = vmul.f32 %v745, %v675
        %v751 = vadd.f32 %v740, %v746
        %v752 = vadd.f32 %v740, %v747
        %v753 = vadd.f32 %v740, %v748
        %v754 = vadd.f32 %v740, %v749
        %v755 = vadd.f32 %v740, %v750
        %v761 = vlaneseq
        %v762 = vshrl.u32 %v761, 7
        %v763 = vsub.s32 0, %v762
        %v764 = vrot.slane %v751, %v763
        %v765 = vlaneseq
        %v766 = vshrl.u32 %v765, 7
        %v767 = vsub.s32 0, %v766
        %v768 = vrot.slane %v752, %v767
        %v769 = vlaneseq
        %v770 = vshrl.u32 %v769, 7
        %v771 = vsub.s32 0, %v770
        %v772 = vrot.slane %v753, %v771
        %v773 = vlaneseq
        %v774 = vshrl.u32 %v773, 7
        %v775 = vsub.s32 0, %v774
        %v776 = vrot.slane %v754, %v775
        %v777 = vlaneseq
        %v778 = vshrl.u32 %v777, 7
        %v779 = vsub.s32 0, %v778
        %v780 = vrot.slane %v755, %v779
        %vm786 = vcmask 261120
        %v788 = vsel %vm786, %v653, 0
        %790 = vmatprep.subr.mxu0 0.0
        %791 = vmatpush1.msra.mxu0 0.0
        %792 = vmatprep.subr.mxu0 0.0
        %793 = vmatpush1.msra.mxu0 0.0
        %794 = vmatprep.subr.mxu0 0.0
        %795 = vmatpush1.msra.mxu0 0.0
        %796 = vmatprep.subr.mxu0 0.0
        %797 = vmatpush1.msra.mxu0 0.0
        %798 = vmatprep.subr.mxu0 0.0
        %799 = vmatpush1.msra.mxu0 0.0
        %800 = vmatprep.subr.mxu0 0.0
        %801 = vmatpush1.msra.mxu0 0.0
        %802 = vmatprep.subr.mxu0 0.0
        %803 = vmatpush1.msra.mxu0 0.0
        %804 = vmatprep.subr.mxu0 0.0
        %805 = vmatpush1.msra.mxu0 0.0
        %806 = vmatprep.subr.mxu0 0.0
        %807 = vmatpush1.msra.mxu0 0.0
        %808 = vmatprep.subr.mxu0 0.0
        %809 = vmatpush1.msra.mxu0 0.0
        %810 = vmatprep.subr.mxu0 0.0
        %811 = vmatpush1.msra.mxu0 0.0
        %812 = vmatprep.subr.mxu0 0.0
        %813 = vmatpush1.msra.mxu0 0.0
        %814 = vmatprep.subr.mxu0 0.0
        %815 = vmatpush1.msra.mxu0 %v723
        %816 = vmatprep.subr.mxu0 0.0
        %817 = vmatpush1.msra.mxu0 %v722
        %818 = vmatprep.subr.mxu0 0.0
        %819 = vmatpush1.msra.mxu0 %v721
        %820 = vmatprep.subr.mxu0 0.0
        %821 = vmatpush1.msra.mxu0 %v720
        %822 = vmatprep.subr.mxu0 0.0
        %823 = vmatpush2.msra.mxu0 0.0
        %824 = vmatprep.subr.mxu0 0.0
        %825 = vmatpush2.msra.mxu0 0.0
        %826 = vmatprep.subr.mxu0 0.0
        %827 = vmatpush2.msra.mxu0 0.0
        %828 = vmatprep.subr.mxu0 0.0
        %829 = vmatpush2.msra.mxu0 0.0
        %830 = vmatprep.subr.mxu0 0.0
        %831 = vmatpush2.msra.mxu0 0.0
        %832 = vmatprep.subr.mxu0 0.0
        %833 = vmatpush2.msra.mxu0 0.0
        %834 = vmatprep.subr.mxu0 0.0
        %835 = vmatpush2.msra.mxu0 0.0
        %836 = vmatprep.subr.mxu0 0.0
        %837 = vmatpush2.msra.mxu0 0.0
        %838 = vmatprep.subr.mxu0 0.0
        %839 = vmatpush2.msra.mxu0 0.0
        %840 = vmatprep.subr.mxu0 0.0
        %841 = vmatpush2.msra.mxu0 0.0
        %842 = vmatprep.subr.mxu0 0.0
        %843 = vmatpush2.msra.mxu0 0.0
        %844 = vmatprep.subr.mxu0 0.0
        %845 = vmatpush2.msra.mxu0 0.0
        %846 = vmatprep.subr.mxu0 0.0
        %847 = vmatpush2.msra.mxu0 0.0
        %848 = vmatprep.subr.mxu0 0.0
        %849 = vmatpush2.msra.mxu0 0.0
        %850 = vmatprep.subr.mxu0 0.0
        %851 = vmatpush2.msra.mxu0 0.0
        %852 = vmatprep.subr.mxu0 0.0
        %853 = vmatpush2.msra.mxu0 0.0
        %854 = vmatprep.mubr.f32.mxu0 0.0
        %855 = vmatmul.mubr.f32.gmra.mxu0 %v788
        %v856 = vpop.f32.mrf.mxu0
        %v857 = vadd.f32 %v764, %v856
        %v858 = vpop.f32.mrf.mxu0
        %859 = vdwg.mxu0
        %860 = vmatprep.subr.mxu0 0.0
        %861 = vmatpush1.msra.mxu0 0.0
        %862 = vmatprep.subr.mxu0 0.0
        %863 = vmatpush1.msra.mxu0 0.0
        %864 = vmatprep.subr.mxu0 0.0
        %865 = vmatpush1.msra.mxu0 0.0
        %866 = vmatprep.subr.mxu0 0.0
        %867 = vmatpush1.msra.mxu0 0.0
        %868 = vmatprep.subr.mxu0 0.0
        %869 = vmatpush1.msra.mxu0 0.0
        %870 = vmatprep.subr.mxu0 0.0
        %871 = vmatpush1.msra.mxu0 0.0
        %872 = vmatprep.subr.mxu0 0.0
        %873 = vmatpush1.msra.mxu0 0.0
        %874 = vmatprep.subr.mxu0 0.0
        %875 = vmatpush1.msra.mxu0 0.0
        %876 = vmatprep.subr.mxu0 0.0
        %877 = vmatpush1.msra.mxu0 0.0
        %878 = vmatprep.subr.mxu0 0.0
        %879 = vmatpush1.msra.mxu0 0.0
        %880 = vmatprep.subr.mxu0 0.0
        %881 = vmatpush1.msra.mxu0 0.0
        %882 = vmatprep.subr.mxu0 0.0
        %883 = vmatpush1.msra.mxu0 0.0
        %884 = vmatprep.subr.mxu0 0.0
        %885 = vmatpush1.msra.mxu0 %v727
        %886 = vmatprep.subr.mxu0 0.0
        %887 = vmatpush1.msra.mxu0 %v726
        %888 = vmatprep.subr.mxu0 0.0
        %889 = vmatpush1.msra.mxu0 %v725
        %890 = vmatprep.subr.mxu0 0.0
        %891 = vmatpush1.msra.mxu0 %v724
        %892 = vmatprep.subr.mxu0 0.0
        %893 = vmatpush2.msra.mxu0 0.0
        %894 = vmatprep.subr.mxu0 0.0
        %895 = vmatpush2.msra.mxu0 0.0
        %896 = vmatprep.subr.mxu0 0.0
        %897 = vmatpush2.msra.mxu0 0.0
        %898 = vmatprep.subr.mxu0 0.0
        %899 = vmatpush2.msra.mxu0 0.0
        %900 = vmatprep.subr.mxu0 0.0
        %901 = vmatpush2.msra.mxu0 0.0
        %902 = vmatprep.subr.mxu0 0.0
        %903 = vmatpush2.msra.mxu0 0.0
        %904 = vmatprep.subr.mxu0 0.0
        %905 = vmatpush2.msra.mxu0 0.0
        %906 = vmatprep.subr.mxu0 0.0
        %907 = vmatpush2.msra.mxu0 0.0
        %908 = vmatprep.subr.mxu0 0.0
        %909 = vmatpush2.msra.mxu0 0.0
        %910 = vmatprep.subr.mxu0 0.0
        %911 = vmatpush2.msra.mxu0 0.0
        %912 = vmatprep.subr.mxu0 0.0
        %913 = vmatpush2.msra.mxu0 0.0
        %914 = vmatprep.subr.mxu0 0.0
        %915 = vmatpush2.msra.mxu0 0.0
        %916 = vmatprep.subr.mxu0 0.0
        %917 = vmatpush2.msra.mxu0 0.0
        %918 = vmatprep.subr.mxu0 0.0
        %919 = vmatpush2.msra.mxu0 0.0
        %920 = vmatprep.subr.mxu0 0.0
        %921 = vmatpush2.msra.mxu0 0.0
        %922 = vmatprep.subr.mxu0 0.0
        %923 = vmatpush2.msra.mxu0 0.0
        %924 = vmatprep.mubr.f32.mxu0 0.0
        %925 = vmatmul.mubr.f32.gmra.mxu0 %v788
        %v926 = vpop.f32.mrf.mxu0
        %v927 = vadd.f32 %v768, %v926
        %v928 = vpop.f32.mrf.mxu0
        %929 = vdwg.mxu0
        %930 = vmatprep.subr.mxu0 0.0
        %931 = vmatpush1.msra.mxu0 0.0
        %932 = vmatprep.subr.mxu0 0.0
        %933 = vmatpush1.msra.mxu0 0.0
        %934 = vmatprep.subr.mxu0 0.0
        %935 = vmatpush1.msra.mxu0 0.0
        %936 = vmatprep.subr.mxu0 0.0
        %937 = vmatpush1.msra.mxu0 0.0
        %938 = vmatprep.subr.mxu0 0.0
        %939 = vmatpush1.msra.mxu0 0.0
        %940 = vmatprep.subr.mxu0 0.0
        %941 = vmatpush1.msra.mxu0 0.0
        %942 = vmatprep.subr.mxu0 0.0
        %943 = vmatpush1.msra.mxu0 0.0
        %944 = vmatprep.subr.mxu0 0.0
        %945 = vmatpush1.msra.mxu0 0.0
        %946 = vmatprep.subr.mxu0 0.0
        %947 = vmatpush1.msra.mxu0 0.0
        %948 = vmatprep.subr.mxu0 0.0
        %949 = vmatpush1.msra.mxu0 0.0
        %950 = vmatprep.subr.mxu0 0.0
        %951 = vmatpush1.msra.mxu0 0.0
        %952 = vmatprep.subr.mxu0 0.0
        %953 = vmatpush1.msra.mxu0 0.0
        %954 = vmatprep.subr.mxu0 0.0
        %955 = vmatpush1.msra.mxu0 %v731
        %956 = vmatprep.subr.mxu0 0.0
        %957 = vmatpush1.msra.mxu0 %v730
        %958 = vmatprep.subr.mxu0 0.0
        %959 = vmatpush1.msra.mxu0 %v729
        %960 = vmatprep.subr.mxu0 0.0
        %961 = vmatpush1.msra.mxu0 %v728
        %962 = vmatprep.subr.mxu0 0.0
        %963 = vmatpush2.msra.mxu0 0.0
        %964 = vmatprep.subr.mxu0 0.0
        %965 = vmatpush2.msra.mxu0 0.0
        %966 = vmatprep.subr.mxu0 0.0
        %967 = vmatpush2.msra.mxu0 0.0
        %968 = vmatprep.subr.mxu0 0.0
        %969 = vmatpush2.msra.mxu0 0.0
        %970 = vmatprep.subr.mxu0 0.0
        %971 = vmatpush2.msra.mxu0 0.0
        %972 = vmatprep.subr.mxu0 0.0
        %973 = vmatpush2.msra.mxu0 0.0
        %974 = vmatprep.subr.mxu0 0.0
        %975 = vmatpush2.msra.mxu0 0.0
        %976 = vmatprep.subr.mxu0 0.0
        %977 = vmatpush2.msra.mxu0 0.0
        %978 = vmatprep.subr.mxu0 0.0
        %979 = vmatpush2.msra.mxu0 0.0
        %980 = vmatprep.subr.mxu0 0.0
        %981 = vmatpush2.msra.mxu0 0.0
        %982 = vmatprep.subr.mxu0 0.0
        %983 = vmatpush2.msra.mxu0 0.0
        %984 = vmatprep.subr.mxu0 0.0
        %985 = vmatpush2.msra.mxu0 0.0
        %986 = vmatprep.subr.mxu0 0.0
        %987 = vmatpush2.msra.mxu0 0.0
        %988 = vmatprep.subr.mxu0 0.0
        %989 = vmatpush2.msra.mxu0 0.0
        %990 = vmatprep.subr.mxu0 0.0
        %991 = vmatpush2.msra.mxu0 0.0
        %992 = vmatprep.subr.mxu0 0.0
        %993 = vmatpush2.msra.mxu0 0.0
        %994 = vmatprep.mubr.f32.mxu0 0.0
        %995 = vmatmul.mubr.f32.gmra.mxu0 %v788
        %v996 = vpop.f32.mrf.mxu0
        %v997 = vadd.f32 %v772, %v996
        %v998 = vpop.f32.mrf.mxu0
        %999 = vdwg.mxu0
        %1000 = vmatprep.subr.mxu0 0.0
        %1001 = vmatpush1.msra.mxu0 0.0
        %1002 = vmatprep.subr.mxu0 0.0
        %1003 = vmatpush1.msra.mxu0 0.0
        %1004 = vmatprep.subr.mxu0 0.0
        %1005 = vmatpush1.msra.mxu0 0.0
        %1006 = vmatprep.subr.mxu0 0.0
        %1007 = vmatpush1.msra.mxu0 0.0
        %1008 = vmatprep.subr.mxu0 0.0
        %1009 = vmatpush1.msra.mxu0 0.0
        %1010 = vmatprep.subr.mxu0 0.0
        %1011 = vmatpush1.msra.mxu0 0.0
        %1012 = vmatprep.subr.mxu0 0.0
        %1013 = vmatpush1.msra.mxu0 0.0
        %1014 = vmatprep.subr.mxu0 0.0
        %1015 = vmatpush1.msra.mxu0 0.0
        %1016 = vmatprep.subr.mxu0 0.0
        %1017 = vmatpush1.msra.mxu0 0.0
        %1018 = vmatprep.subr.mxu0 0.0
        %1019 = vmatpush1.msra.mxu0 0.0
        %1020 = vmatprep.subr.mxu0 0.0
        %1021 = vmatpush1.msra.mxu0 0.0
        %1022 = vmatprep.subr.mxu0 0.0
        %1023 = vmatpush1.msra.mxu0 0.0
        %1024 = vmatprep.subr.mxu0 0.0
        %1025 = vmatpush1.msra.mxu0 %v735
        %1026 = vmatprep.subr.mxu0 0.0
        %1027 = vmatpush1.msra.mxu0 %v734
        %1028 = vmatprep.subr.mxu0 0.0
        %1029 = vmatpush1.msra.mxu0 %v733
        %1030 = vmatprep.subr.mxu0 0.0
        %1031 = vmatpush1.msra.mxu0 %v732
        %1032 = vmatprep.subr.mxu0 0.0
        %1033 = vmatpush2.msra.mxu0 0.0
        %1034 = vmatprep.subr.mxu0 0.0
        %1035 = vmatpush2.msra.mxu0 0.0
        %1036 = vmatprep.subr.mxu0 0.0
        %1037 = vmatpush2.msra.mxu0 0.0
        %1038 = vmatprep.subr.mxu0 0.0
        %1039 = vmatpush2.msra.mxu0 0.0
        %1040 = vmatprep.subr.mxu0 0.0
        %1041 = vmatpush2.msra.mxu0 0.0
        %1042 = vmatprep.subr.mxu0 0.0
        %1043 = vmatpush2.msra.mxu0 0.0
        %1044 = vmatprep.subr.mxu0 0.0
        %1045 = vmatpush2.msra.mxu0 0.0
        %1046 = vmatprep.subr.mxu0 0.0
        %1047 = vmatpush2.msra.mxu0 0.0
        %1048 = vmatprep.subr.mxu0 0.0
        %1049 = vmatpush2.msra.mxu0 0.0
        %1050 = vmatprep.subr.mxu0 0.0
        %1051 = vmatpush2.msra.mxu0 0.0
        %1052 = vmatprep.subr.mxu0 0.0
        %1053 = vmatpush2.msra.mxu0 0.0
        %1054 = vmatprep.subr.mxu0 0.0
        %1055 = vmatpush2.msra.mxu0 0.0
        %1056 = vmatprep.subr.mxu0 0.0
        %1057 = vmatpush2.msra.mxu0 0.0
        %1058 = vmatprep.subr.mxu0 0.0
        %1059 = vmatpush2.msra.mxu0 0.0
        %1060 = vmatprep.subr.mxu0 0.0
        %1061 = vmatpush2.msra.mxu0 0.0
        %1062 = vmatprep.subr.mxu0 0.0
        %1063 = vmatpush2.msra.mxu0 0.0
        %1064 = vmatprep.mubr.f32.mxu0 0.0
        %1065 = vmatmul.mubr.f32.gmra.mxu0 %v788
        %v1066 = vpop.f32.mrf.mxu0
        %v1067 = vadd.f32 %v776, %v1066
        %v1068 = vpop.f32.mrf.mxu0
        %1069 = vdwg.mxu0
        %1070 = vmatprep.subr.mxu0 0.0
        %1071 = vmatpush1.msra.mxu0 0.0
        %1072 = vmatprep.subr.mxu0 0.0
        %1073 = vmatpush1.msra.mxu0 0.0
        %1074 = vmatprep.subr.mxu0 0.0
        %1075 = vmatpush1.msra.mxu0 0.0
        %1076 = vmatprep.subr.mxu0 0.0
        %1077 = vmatpush1.msra.mxu0 0.0
        %1078 = vmatprep.subr.mxu0 0.0
        %1079 = vmatpush1.msra.mxu0 0.0
        %1080 = vmatprep.subr.mxu0 0.0
        %1081 = vmatpush1.msra.mxu0 0.0
        %1082 = vmatprep.subr.mxu0 0.0
        %1083 = vmatpush1.msra.mxu0 0.0
        %1084 = vmatprep.subr.mxu0 0.0
        %1085 = vmatpush1.msra.mxu0 0.0
        %1086 = vmatprep.subr.mxu0 0.0
        %1087 = vmatpush1.msra.mxu0 0.0
        %1088 = vmatprep.subr.mxu0 0.0
        %1089 = vmatpush1.msra.mxu0 0.0
        %1090 = vmatprep.subr.mxu0 0.0
        %1091 = vmatpush1.msra.mxu0 0.0
        %1092 = vmatprep.subr.mxu0 0.0
        %1093 = vmatpush1.msra.mxu0 0.0
        %1094 = vmatprep.subr.mxu0 0.0
        %1095 = vmatpush1.msra.mxu0 %v739
        %1096 = vmatprep.subr.mxu0 0.0
        %1097 = vmatpush1.msra.mxu0 %v738
        %1098 = vmatprep.subr.mxu0 0.0
        %1099 = vmatpush1.msra.mxu0 %v737
        %1100 = vmatprep.subr.mxu0 0.0
        %1101 = vmatpush1.msra.mxu0 %v736
        %1102 = vmatprep.subr.mxu0 0.0
        %1103 = vmatpush2.msra.mxu0 0.0
        %1104 = vmatprep.subr.mxu0 0.0
        %1105 = vmatpush2.msra.mxu0 0.0
        %1106 = vmatprep.subr.mxu0 0.0
        %1107 = vmatpush2.msra.mxu0 0.0
        %1108 = vmatprep.subr.mxu0 0.0
        %1109 = vmatpush2.msra.mxu0 0.0
        %1110 = vmatprep.subr.mxu0 0.0
        %1111 = vmatpush2.msra.mxu0 0.0
        %1112 = vmatprep.subr.mxu0 0.0
        %1113 = vmatpush2.msra.mxu0 0.0
        %1114 = vmatprep.subr.mxu0 0.0
        %1115 = vmatpush2.msra.mxu0 0.0
        %1116 = vmatprep.subr.mxu0 0.0
        %1117 = vmatpush2.msra.mxu0 0.0
        %1118 = vmatprep.subr.mxu0 0.0
        %1119 = vmatpush2.msra.mxu0 0.0
        %1120 = vmatprep.subr.mxu0 0.0
        %1121 = vmatpush2.msra.mxu0 0.0
        %1122 = vmatprep.subr.mxu0 0.0
        %1123 = vmatpush2.msra.mxu0 0.0
        %1124 = vmatprep.subr.mxu0 0.0
        %1125 = vmatpush2.msra.mxu0 0.0
        %1126 = vmatprep.subr.mxu0 0.0
        %1127 = vmatpush2.msra.mxu0 0.0
        %1128 = vmatprep.subr.mxu0 0.0
        %1129 = vmatpush2.msra.mxu0 0.0
        %1130 = vmatprep.subr.mxu0 0.0
        %1131 = vmatpush2.msra.mxu0 0.0
        %1132 = vmatprep.subr.mxu0 0.0
        %1133 = vmatpush2.msra.mxu0 0.0
        %1134 = vmatprep.mubr.f32.mxu0 0.0
        %1135 = vmatmul.mubr.f32.gmra.mxu0 %v788
        %v1136 = vpop.f32.mrf.mxu0
        %v1137 = vadd.f32 %v780, %v1136
        %v1138 = vpop.f32.mrf.mxu0
        %1139 = vdwg.mxu0
        %v1140 = vmax.f32 %v857, 0.0
        %v1141 = vmax.f32 %v927, 0.0
        %v1142 = vmax.f32 %v997, 0.0
        %v1143 = vmax.f32 %v1067, 0.0
        %v1144 = vmax.f32 %v1137, 0.0
        %s1145 = scalar_lea.vmem %s1, 160
        %v1146 = vld [vmem:[%s1145] sm:$0xff]
        %v1147 = vld [vmem:[%s1145 + $0x8] sm:$0xff]
        %v1148 = vld [vmem:[%s1145 + $0x10] sm:$0xff]
        %v1149 = vld [vmem:[%s1145 + $0x18] sm:$0xff]
        %v1150 = vmul.f32 %v1146, 0.5
        %v1151 = vmul.f32 %v1147, 0.5
        %v1152 = vmul.f32 %v1148, 0.5
        %v1153 = vmul.f32 %v1149, 0.5
        %v1154 = vmul.f32 %v1150, 1.442695
        %v1155 = vpow.pop %v1154
        %v1156 = vmul.f32 %v1151, 1.442695
        %v1157 = vpow.pop %v1156
        %v1158 = vmul.f32 %v1152, 1.442695
        %v1159 = vpow.pop %v1158
        %v1160 = vmul.f32 %v1153, 1.442695
        %v1161 = vpow.pop %v1160
        %s1162 = scalar_lea.vmem %s2, 5
        %v1163 = vld [vmem:[%s1162] sm:$0x1]
        %v1164 = vmul.f32 %v1163, 0.5
        %v1165 = vmul.f32 %v1164, 1.442695
        %v1166 = vpow.pop %v1165
        %s1167 = scalar_lea.vmem %s1, 32
        %v1168 = vld [vmem:[%s1167] sm:$0xff]
        %v1169 = vld [vmem:[%s1167 + $0x8] sm:$0xff]
        %v1170 = vld [vmem:[%s1167 + $0x10] sm:$0xff]
        %v1171 = vld [vmem:[%s1167 + $0x18] sm:$0xff]
        %s1172 = scalar_lea.vmem %s612, 160 [#allocation2]
        %v1173 = vld [vmem:[%s1172] sm:$0xff]
        %v1174 = vld [vmem:[%s1172 + $0x8] sm:$0xff]
        %v1175 = vld [vmem:[%s1172 + $0x10] sm:$0xff]
        %v1176 = vld [vmem:[%s1172 + $0x18] sm:$0xff]
        %v1177 = vld [vmem:[%s1172 + $0x20] sm:$0xff]
        %v1178 = vld [vmem:[%s1172 + $0x28] sm:$0xff]
        %v1179 = vld [vmem:[%s1172 + $0x30] sm:$0xff]
        %v1180 = vld [vmem:[%s1172 + $0x38] sm:$0xff]
        %v1181 = vld [vmem:[%s1172 + $0x40] sm:$0xff]
        %v1182 = vld [vmem:[%s1172 + $0x48] sm:$0xff]
        %v1183 = vld [vmem:[%s1172 + $0x50] sm:$0xff]
        %v1184 = vld [vmem:[%s1172 + $0x58] sm:$0xff]
        %v1185 = vld [vmem:[%s1172 + $0x60] sm:$0xff]
        %v1186 = vld [vmem:[%s1172 + $0x68] sm:$0xff]
        %v1187 = vld [vmem:[%s1172 + $0x70] sm:$0xff]
        %v1188 = vld [vmem:[%s1172 + $0x78] sm:$0xff]
        %v1189 = vld [vmem:[%s1172 + $0x80] sm:$0xff]
        %v1190 = vld [vmem:[%s1172 + $0x88] sm:$0xff]
        %v1191 = vld [vmem:[%s1172 + $0x90] sm:$0xff]
        %v1192 = vld [vmem:[%s1172 + $0x98] sm:$0xff]
        %v1193 = vmul.f32 %v1173, %v1155
        %v1194 = vmul.f32 %v1174, %v1157
        %v1195 = vmul.f32 %v1175, %v1159
        %v1196 = vmul.f32 %v1176, %v1161
        %v1197 = vmul.f32 %v1177, %v1155
        %v1198 = vmul.f32 %v1178, %v1157
        %v1199 = vmul.f32 %v1179, %v1159
        %v1200 = vmul.f32 %v1180, %v1161
        %v1201 = vmul.f32 %v1181, %v1155
        %v1202 = vmul.f32 %v1182, %v1157
        %v1203 = vmul.f32 %v1183, %v1159
        %v1204 = vmul.f32 %v1184, %v1161
        %v1205 = vmul.f32 %v1185, %v1155
        %v1206 = vmul.f32 %v1186, %v1157
        %v1207 = vmul.f32 %v1187, %v1159
        %v1208 = vmul.f32 %v1188, %v1161
        %v1209 = vmul.f32 %v1189, %v1155
        %v1210 = vmul.f32 %v1190, %v1157
        %v1211 = vmul.f32 %v1191, %v1159
        %v1212 = vmul.f32 %v1192, %v1161
        %v1213 = vadd.f32 %v1168, %v1193
        %v1214 = vadd.f32 %v1169, %v1194
        %v1215 = vadd.f32 %v1170, %v1195
        %v1216 = vadd.f32 %v1171, %v1196
        %v1217 = vadd.f32 %v1168, %v1197
        %v1218 = vadd.f32 %v1169, %v1198
        %v1219 = vadd.f32 %v1170, %v1199
        %v1220 = vadd.f32 %v1171, %v1200
        %v1221 = vadd.f32 %v1168, %v1201
        %v1222 = vadd.f32 %v1169, %v1202
        %v1223 = vadd.f32 %v1170, %v1203
        %v1224 = vadd.f32 %v1171, %v1204
        %v1225 = vadd.f32 %v1168, %v1205
        %v1226 = vadd.f32 %v1169, %v1206
        %v1227 = vadd.f32 %v1170, %v1207
        %v1228 = vadd.f32 %v1171, %v1208
        %v1229 = vadd.f32 %v1168, %v1209
        %v1230 = vadd.f32 %v1169, %v1210
        %v1231 = vadd.f32 %v1170, %v1211
        %v1232 = vadd.f32 %v1171, %v1212
        %s1233 = scalar_lea.vmem %s2, 1
        %v1234 = vld [vmem:[%s1233] sm:$0x1]
        %s1235 = scalar_lea.vmem %s619, 5 [#allocation3]
        %v1236 = vld [vmem:[%s1235] sm:$0x1]
        %v1237 = vld [vmem:[%s1235 + $0x1] sm:$0x1]
        %v1238 = vld [vmem:[%s1235 + $0x2] sm:$0x1]
        %v1239 = vld [vmem:[%s1235 + $0x3] sm:$0x1]
        %v1240 = vld [vmem:[%s1235 + $0x4] sm:$0x1]
        %v1241 = vmul.f32 %v1236, %v1166
        %v1242 = vmul.f32 %v1237, %v1166
        %v1243 = vmul.f32 %v1238, %v1166
        %v1244 = vmul.f32 %v1239, %v1166
        %v1245 = vmul.f32 %v1240, %v1166
        %v1246 = vadd.f32 %v1234, %v1241
        %v1247 = vadd.f32 %v1234, %v1242
        %v1248 = vadd.f32 %v1234, %v1243
        %v1249 = vadd.f32 %v1234, %v1244
        %v1250 = vadd.f32 %v1234, %v1245
        %v1256 = vlaneseq
        %v1257 = vshrl.u32 %v1256, 7
        %v1258 = vsub.s32 0, %v1257
        %v1259 = vrot.slane %v1246, %v1258
        %v1260 = vlaneseq
        %v1261 = vshrl.u32 %v1260, 7
        %v1262 = vsub.s32 0, %v1261
        %v1263 = vrot.slane %v1247, %v1262
        %v1264 = vlaneseq
        %v1265 = vshrl.u32 %v1264, 7
        %v1266 = vsub.s32 0, %v1265
        %v1267 = vrot.slane %v1248, %v1266
        %v1268 = vlaneseq
        %v1269 = vshrl.u32 %v1268, 7
        %v1270 = vsub.s32 0, %v1269
        %v1271 = vrot.slane %v1249, %v1270
        %v1272 = vlaneseq
        %v1273 = vshrl.u32 %v1272, 7
        %v1274 = vsub.s32 0, %v1273
        %v1275 = vrot.slane %v1250, %v1274
        %v1282 = vsel %vm786, %v1140, 0
        %1284 = vmatprep.subr.mxu0 0.0
        %1285 = vmatpush1.msra.mxu0 0.0
        %1286 = vmatprep.subr.mxu0 0.0
        %1287 = vmatpush1.msra.mxu0 0.0
        %1288 = vmatprep.subr.mxu0 0.0
        %1289 = vmatpush1.msra.mxu0 0.0
        %1290 = vmatprep.subr.mxu0 0.0
        %1291 = vmatpush1.msra.mxu0 0.0
        %1292 = vmatprep.subr.mxu0 0.0
        %1293 = vmatpush1.msra.mxu0 0.0
        %1294 = vmatprep.subr.mxu0 0.0
        %1295 = vmatpush1.msra.mxu0 0.0
        %1296 = vmatprep.subr.mxu0 0.0
        %1297 = vmatpush1.msra.mxu0 0.0
        %1298 = vmatprep.subr.mxu0 0.0
        %1299 = vmatpush1.msra.mxu0 0.0
        %1300 = vmatprep.subr.mxu0 0.0
        %1301 = vmatpush1.msra.mxu0 0.0
        %1302 = vmatprep.subr.mxu0 0.0
        %1303 = vmatpush1.msra.mxu0 0.0
        %1304 = vmatprep.subr.mxu0 0.0
        %1305 = vmatpush1.msra.mxu0 0.0
        %1306 = vmatprep.subr.mxu0 0.0
        %1307 = vmatpush1.msra.mxu0 0.0
        %1308 = vmatprep.subr.mxu0 0.0
        %1309 = vmatpush1.msra.mxu0 %v1216
        %1310 = vmatprep.subr.mxu0 0.0
        %1311 = vmatpush1.msra.mxu0 %v1215
        %1312 = vmatprep.subr.mxu0 0.0
        %1313 = vmatpush1.msra.mxu0 %v1214
        %1314 = vmatprep.subr.mxu0 0.0
        %1315 = vmatpush1.msra.mxu0 %v1213
        %1316 = vmatprep.subr.mxu0 0.0
        %1317 = vmatpush2.msra.mxu0 0.0
        %1318 = vmatprep.subr.mxu0 0.0
        %1319 = vmatpush2.msra.mxu0 0.0
        %1320 = vmatprep.subr.mxu0 0.0
        %1321 = vmatpush2.msra.mxu0 0.0
        %1322 = vmatprep.subr.mxu0 0.0
        %1323 = vmatpush2.msra.mxu0 0.0
        %1324 = vmatprep.subr.mxu0 0.0
        %1325 = vmatpush2.msra.mxu0 0.0
        %1326 = vmatprep.subr.mxu0 0.0
        %1327 = vmatpush2.msra.mxu0 0.0
        %1328 = vmatprep.subr.mxu0 0.0
        %1329 = vmatpush2.msra.mxu0 0.0
        %1330 = vmatprep.subr.mxu0 0.0
        %1331 = vmatpush2.msra.mxu0 0.0
        %1332 = vmatprep.subr.mxu0 0.0
        %1333 = vmatpush2.msra.mxu0 0.0
        %1334 = vmatprep.subr.mxu0 0.0
        %1335 = vmatpush2.msra.mxu0 0.0
        %1336 = vmatprep.subr.mxu0 0.0
        %1337 = vmatpush2.msra.mxu0 0.0
        %1338 = vmatprep.subr.mxu0 0.0
        %1339 = vmatpush2.msra.mxu0 0.0
        %1340 = vmatprep.subr.mxu0 0.0
        %1341 = vmatpush2.msra.mxu0 0.0
        %1342 = vmatprep.subr.mxu0 0.0
        %1343 = vmatpush2.msra.mxu0 0.0
        %1344 = vmatprep.subr.mxu0 0.0
        %1345 = vmatpush2.msra.mxu0 0.0
        %1346 = vmatprep.subr.mxu0 0.0
        %1347 = vmatpush2.msra.mxu0 0.0
        %1348 = vmatprep.mubr.f32.mxu0 0.0
        %1349 = vmatmul.mubr.f32.gmra.mxu0 %v1282
        %v1350 = vpop.f32.mrf.mxu0
        %v1351 = vadd.f32 %v1259, %v1350
        %v1352 = vpop.f32.mrf.mxu0
        %1353 = vdwg.mxu0
        %v1355 = vsel %vm786, %v1141, 0
        %1357 = vmatprep.subr.mxu0 0.0
        %1358 = vmatpush1.msra.mxu0 0.0
        %1359 = vmatprep.subr.mxu0 0.0
        %1360 = vmatpush1.msra.mxu0 0.0
        %1361 = vmatprep.subr.mxu0 0.0
        %1362 = vmatpush1.msra.mxu0 0.0
        %1363 = vmatprep.subr.mxu0 0.0
        %1364 = vmatpush1.msra.mxu0 0.0
        %1365 = vmatprep.subr.mxu0 0.0
        %1366 = vmatpush1.msra.mxu0 0.0
        %1367 = vmatprep.subr.mxu0 0.0
        %1368 = vmatpush1.msra.mxu0 0.0
        %1369 = vmatprep.subr.mxu0 0.0
        %1370 = vmatpush1.msra.mxu0 0.0
        %1371 = vmatprep.subr.mxu0 0.0
        %1372 = vmatpush1.msra.mxu0 0.0
        %1373 = vmatprep.subr.mxu0 0.0
        %1374 = vmatpush1.msra.mxu0 0.0
        %1375 = vmatprep.subr.mxu0 0.0
        %1376 = vmatpush1.msra.mxu0 0.0
        %1377 = vmatprep.subr.mxu0 0.0
        %1378 = vmatpush1.msra.mxu0 0.0
        %1379 = vmatprep.subr.mxu0 0.0
        %1380 = vmatpush1.msra.mxu0 0.0
        %1381 = vmatprep.subr.mxu0 0.0
        %1382 = vmatpush1.msra.mxu0 %v1220
        %1383 = vmatprep.subr.mxu0 0.0
        %1384 = vmatpush1.msra.mxu0 %v1219
        %1385 = vmatprep.subr.mxu0 0.0
        %1386 = vmatpush1.msra.mxu0 %v1218
        %1387 = vmatprep.subr.mxu0 0.0
        %1388 = vmatpush1.msra.mxu0 %v1217
        %1389 = vmatprep.subr.mxu0 0.0
        %1390 = vmatpush2.msra.mxu0 0.0
        %1391 = vmatprep.subr.mxu0 0.0
        %1392 = vmatpush2.msra.mxu0 0.0
        %1393 = vmatprep.subr.mxu0 0.0
        %1394 = vmatpush2.msra.mxu0 0.0
        %1395 = vmatprep.subr.mxu0 0.0
        %1396 = vmatpush2.msra.mxu0 0.0
        %1397 = vmatprep.subr.mxu0 0.0
        %1398 = vmatpush2.msra.mxu0 0.0
        %1399 = vmatprep.subr.mxu0 0.0
        %1400 = vmatpush2.msra.mxu0 0.0
        %1401 = vmatprep.subr.mxu0 0.0
        %1402 = vmatpush2.msra.mxu0 0.0
        %1403 = vmatprep.subr.mxu0 0.0
        %1404 = vmatpush2.msra.mxu0 0.0
        %1405 = vmatprep.subr.mxu0 0.0
        %1406 = vmatpush2.msra.mxu0 0.0
        %1407 = vmatprep.subr.mxu0 0.0
        %1408 = vmatpush2.msra.mxu0 0.0
        %1409 = vmatprep.subr.mxu0 0.0
        %1410 = vmatpush2.msra.mxu0 0.0
        %1411 = vmatprep.subr.mxu0 0.0
        %1412 = vmatpush2.msra.mxu0 0.0
        %1413 = vmatprep.subr.mxu0 0.0
        %1414 = vmatpush2.msra.mxu0 0.0
        %1415 = vmatprep.subr.mxu0 0.0
        %1416 = vmatpush2.msra.mxu0 0.0
        %1417 = vmatprep.subr.mxu0 0.0
        %1418 = vmatpush2.msra.mxu0 0.0
        %1419 = vmatprep.subr.mxu0 0.0
        %1420 = vmatpush2.msra.mxu0 0.0
        %1421 = vmatprep.mubr.f32.mxu0 0.0
        %1422 = vmatmul.mubr.f32.gmra.mxu0 %v1355
        %v1423 = vpop.f32.mrf.mxu0
        %v1424 = vadd.f32 %v1263, %v1423
        %v1425 = vpop.f32.mrf.mxu0
        %1426 = vdwg.mxu0
        %v1428 = vsel %vm786, %v1142, 0
        %1430 = vmatprep.subr.mxu0 0.0
        %1431 = vmatpush1.msra.mxu0 0.0
        %1432 = vmatprep.subr.mxu0 0.0
        %1433 = vmatpush1.msra.mxu0 0.0
        %1434 = vmatprep.subr.mxu0 0.0
        %1435 = vmatpush1.msra.mxu0 0.0
        %1436 = vmatprep.subr.mxu0 0.0
        %1437 = vmatpush1.msra.mxu0 0.0
        %1438 = vmatprep.subr.mxu0 0.0
        %1439 = vmatpush1.msra.mxu0 0.0
        %1440 = vmatprep.subr.mxu0 0.0
        %1441 = vmatpush1.msra.mxu0 0.0
        %1442 = vmatprep.subr.mxu0 0.0
        %1443 = vmatpush1.msra.mxu0 0.0
        %1444 = vmatprep.subr.mxu0 0.0
        %1445 = vmatpush1.msra.mxu0 0.0
        %1446 = vmatprep.subr.mxu0 0.0
        %1447 = vmatpush1.msra.mxu0 0.0
        %1448 = vmatprep.subr.mxu0 0.0
        %1449 = vmatpush1.msra.mxu0 0.0
        %1450 = vmatprep.subr.mxu0 0.0
        %1451 = vmatpush1.msra.mxu0 0.0
        %1452 = vmatprep.subr.mxu0 0.0
        %1453 = vmatpush1.msra.mxu0 0.0
        %1454 = vmatprep.subr.mxu0 0.0
        %1455 = vmatpush1.msra.mxu0 %v1224
        %1456 = vmatprep.subr.mxu0 0.0
        %1457 = vmatpush1.msra.mxu0 %v1223
        %1458 = vmatprep.subr.mxu0 0.0
        %1459 = vmatpush1.msra.mxu0 %v1222
        %1460 = vmatprep.subr.mxu0 0.0
        %1461 = vmatpush1.msra.mxu0 %v1221
        %1462 = vmatprep.subr.mxu0 0.0
        %1463 = vmatpush2.msra.mxu0 0.0
        %1464 = vmatprep.subr.mxu0 0.0
        %1465 = vmatpush2.msra.mxu0 0.0
        %1466 = vmatprep.subr.mxu0 0.0
        %1467 = vmatpush2.msra.mxu0 0.0
        %1468 = vmatprep.subr.mxu0 0.0
        %1469 = vmatpush2.msra.mxu0 0.0
        %1470 = vmatprep.subr.mxu0 0.0
        %1471 = vmatpush2.msra.mxu0 0.0
        %1472 = vmatprep.subr.mxu0 0.0
        %1473 = vmatpush2.msra.mxu0 0.0
        %1474 = vmatprep.subr.mxu0 0.0
        %1475 = vmatpush2.msra.mxu0 0.0
        %1476 = vmatprep.subr.mxu0 0.0
        %1477 = vmatpush2.msra.mxu0 0.0
        %1478 = vmatprep.subr.mxu0 0.0
        %1479 = vmatpush2.msra.mxu0 0.0
        %1480 = vmatprep.subr.mxu0 0.0
        %1481 = vmatpush2.msra.mxu0 0.0
        %1482 = vmatprep.subr.mxu0 0.0
        %1483 = vmatpush2.msra.mxu0 0.0
        %1484 = vmatprep.subr.mxu0 0.0
        %1485 = vmatpush2.msra.mxu0 0.0
        %1486 = vmatprep.subr.mxu0 0.0
        %1487 = vmatpush2.msra.mxu0 0.0
        %1488 = vmatprep.subr.mxu0 0.0
        %1489 = vmatpush2.msra.mxu0 0.0
        %1490 = vmatprep.subr.mxu0 0.0
        %1491 = vmatpush2.msra.mxu0 0.0
        %1492 = vmatprep.subr.mxu0 0.0
        %1493 = vmatpush2.msra.mxu0 0.0
        %1494 = vmatprep.mubr.f32.mxu0 0.0
        %1495 = vmatmul.mubr.f32.gmra.mxu0 %v1428
        %v1496 = vpop.f32.mrf.mxu0
        %v1497 = vadd.f32 %v1267, %v1496
        %v1498 = vpop.f32.mrf.mxu0
        %1499 = vdwg.mxu0
        %v1501 = vsel %vm786, %v1143, 0
        %1503 = vmatprep.subr.mxu0 0.0
        %1504 = vmatpush1.msra.mxu0 0.0
        %1505 = vmatprep.subr.mxu0 0.0
        %1506 = vmatpush1.msra.mxu0 0.0
        %1507 = vmatprep.subr.mxu0 0.0
        %1508 = vmatpush1.msra.mxu0 0.0
        %1509 = vmatprep.subr.mxu0 0.0
        %1510 = vmatpush1.msra.mxu0 0.0
        %1511 = vmatprep.subr.mxu0 0.0
        %1512 = vmatpush1.msra.mxu0 0.0
        %1513 = vmatprep.subr.mxu0 0.0
        %1514 = vmatpush1.msra.mxu0 0.0
        %1515 = vmatprep.subr.mxu0 0.0
        %1516 = vmatpush1.msra.mxu0 0.0
        %1517 = vmatprep.subr.mxu0 0.0
        %1518 = vmatpush1.msra.mxu0 0.0
        %1519 = vmatprep.subr.mxu0 0.0
        %1520 = vmatpush1.msra.mxu0 0.0
        %1521 = vmatprep.subr.mxu0 0.0
        %1522 = vmatpush1.msra.mxu0 0.0
        %1523 = vmatprep.subr.mxu0 0.0
        %1524 = vmatpush1.msra.mxu0 0.0
        %1525 = vmatprep.subr.mxu0 0.0
        %1526 = vmatpush1.msra.mxu0 0.0
        %1527 = vmatprep.subr.mxu0 0.0
        %1528 = vmatpush1.msra.mxu0 %v1228
        %1529 = vmatprep.subr.mxu0 0.0
        %1530 = vmatpush1.msra.mxu0 %v1227
        %1531 = vmatprep.subr.mxu0 0.0
        %1532 = vmatpush1.msra.mxu0 %v1226
        %1533 = vmatprep.subr.mxu0 0.0
        %1534 = vmatpush1.msra.mxu0 %v1225
        %1535 = vmatprep.subr.mxu0 0.0
        %1536 = vmatpush2.msra.mxu0 0.0
        %1537 = vmatprep.subr.mxu0 0.0
        %1538 = vmatpush2.msra.mxu0 0.0
        %1539 = vmatprep.subr.mxu0 0.0
        %1540 = vmatpush2.msra.mxu0 0.0
        %1541 = vmatprep.subr.mxu0 0.0
        %1542 = vmatpush2.msra.mxu0 0.0
        %1543 = vmatprep.subr.mxu0 0.0
        %1544 = vmatpush2.msra.mxu0 0.0
        %1545 = vmatprep.subr.mxu0 0.0
        %1546 = vmatpush2.msra.mxu0 0.0
        %1547 = vmatprep.subr.mxu0 0.0
        %1548 = vmatpush2.msra.mxu0 0.0
        %1549 = vmatprep.subr.mxu0 0.0
        %1550 = vmatpush2.msra.mxu0 0.0
        %1551 = vmatprep.subr.mxu0 0.0
        %1552 = vmatpush2.msra.mxu0 0.0
        %1553 = vmatprep.subr.mxu0 0.0
        %1554 = vmatpush2.msra.mxu0 0.0
        %1555 = vmatprep.subr.mxu0 0.0
        %1556 = vmatpush2.msra.mxu0 0.0
        %1557 = vmatprep.subr.mxu0 0.0
        %1558 = vmatpush2.msra.mxu0 0.0
        %1559 = vmatprep.subr.mxu0 0.0
        %1560 = vmatpush2.msra.mxu0 0.0
        %1561 = vmatprep.subr.mxu0 0.0
        %1562 = vmatpush2.msra.mxu0 0.0
        %1563 = vmatprep.subr.mxu0 0.0
        %1564 = vmatpush2.msra.mxu0 0.0
        %1565 = vmatprep.subr.mxu0 0.0
        %1566 = vmatpush2.msra.mxu0 0.0
        %1567 = vmatprep.mubr.f32.mxu0 0.0
        %1568 = vmatmul.mubr.f32.gmra.mxu0 %v1501
        %v1569 = vpop.f32.mrf.mxu0
        %v1570 = vadd.f32 %v1271, %v1569
        %v1571 = vpop.f32.mrf.mxu0
        %1572 = vdwg.mxu0
        %v1574 = vsel %vm786, %v1144, 0
        %1576 = vmatprep.subr.mxu0 0.0
        %1577 = vmatpush1.msra.mxu0 0.0
        %1578 = vmatprep.subr.mxu0 0.0
        %1579 = vmatpush1.msra.mxu0 0.0
        %1580 = vmatprep.subr.mxu0 0.0
        %1581 = vmatpush1.msra.mxu0 0.0
        %1582 = vmatprep.subr.mxu0 0.0
        %1583 = vmatpush1.msra.mxu0 0.0
        %1584 = vmatprep.subr.mxu0 0.0
        %1585 = vmatpush1.msra.mxu0 0.0
        %1586 = vmatprep.subr.mxu0 0.0
        %1587 = vmatpush1.msra.mxu0 0.0
        %1588 = vmatprep.subr.mxu0 0.0
        %1589 = vmatpush1.msra.mxu0 0.0
        %1590 = vmatprep.subr.mxu0 0.0
        %1591 = vmatpush1.msra.mxu0 0.0
        %1592 = vmatprep.subr.mxu0 0.0
        %1593 = vmatpush1.msra.mxu0 0.0
        %1594 = vmatprep.subr.mxu0 0.0
        %1595 = vmatpush1.msra.mxu0 0.0
        %1596 = vmatprep.subr.mxu0 0.0
        %1597 = vmatpush1.msra.mxu0 0.0
        %1598 = vmatprep.subr.mxu0 0.0
        %1599 = vmatpush1.msra.mxu0 0.0
        %1600 = vmatprep.subr.mxu0 0.0
        %1601 = vmatpush1.msra.mxu0 %v1232
        %1602 = vmatprep.subr.mxu0 0.0
        %1603 = vmatpush1.msra.mxu0 %v1231
        %1604 = vmatprep.subr.mxu0 0.0
        %1605 = vmatpush1.msra.mxu0 %v1230
        %1606 = vmatprep.subr.mxu0 0.0
        %1607 = vmatpush1.msra.mxu0 %v1229
        %1608 = vmatprep.subr.mxu0 0.0
        %1609 = vmatpush2.msra.mxu0 0.0
        %1610 = vmatprep.subr.mxu0 0.0
        %1611 = vmatpush2.msra.mxu0 0.0
        %1612 = vmatprep.subr.mxu0 0.0
        %1613 = vmatpush2.msra.mxu0 0.0
        %1614 = vmatprep.subr.mxu0 0.0
        %1615 = vmatpush2.msra.mxu0 0.0
        %1616 = vmatprep.subr.mxu0 0.0
        %1617 = vmatpush2.msra.mxu0 0.0
        %1618 = vmatprep.subr.mxu0 0.0
        %1619 = vmatpush2.msra.mxu0 0.0
        %1620 = vmatprep.subr.mxu0 0.0
        %1621 = vmatpush2.msra.mxu0 0.0
        %1622 = vmatprep.subr.mxu0 0.0
        %1623 = vmatpush2.msra.mxu0 0.0
        %1624 = vmatprep.subr.mxu0 0.0
        %1625 = vmatpush2.msra.mxu0 0.0
        %1626 = vmatprep.subr.mxu0 0.0
        %1627 = vmatpush2.msra.mxu0 0.0
        %1628 = vmatprep.subr.mxu0 0.0
        %1629 = vmatpush2.msra.mxu0 0.0
        %1630 = vmatprep.subr.mxu0 0.0
        %1631 = vmatpush2.msra.mxu0 0.0
        %1632 = vmatprep.subr.mxu0 0.0
        %1633 = vmatpush2.msra.mxu0 0.0
        %1634 = vmatprep.subr.mxu0 0.0
        %1635 = vmatpush2.msra.mxu0 0.0
        %1636 = vmatprep.subr.mxu0 0.0
        %1637 = vmatpush2.msra.mxu0 0.0
        %1638 = vmatprep.subr.mxu0 0.0
        %1639 = vmatpush2.msra.mxu0 0.0
        %1640 = vmatprep.mubr.f32.mxu0 0.0
        %1641 = vmatmul.mubr.f32.gmra.mxu0 %v1574
        %v1642 = vpop.f32.mrf.mxu0
        %v1643 = vadd.f32 %v1275, %v1642
        %v1644 = vpop.f32.mrf.mxu0
        %1645 = vdwg.mxu0
        %v1646 = vmax.f32 %v1351, 0.0
        %v1647 = vmax.f32 %v1424, 0.0
        %v1648 = vmax.f32 %v1497, 0.0
        %v1649 = vmax.f32 %v1570, 0.0
        %v1650 = vmax.f32 %v1643, 0.0
        %s1651 = scalar_lea.vmem %s1, 192
        %v1652 = vld [vmem:[%s1651] sm:$0xff]
        %v1653 = vld [vmem:[%s1651 + $0x8] sm:$0xff]
        %v1654 = vld [vmem:[%s1651 + $0x10] sm:$0xff]
        %v1655 = vld [vmem:[%s1651 + $0x18] sm:$0xff]
        %v1656 = vmul.f32 %v1652, 0.5
        %v1657 = vmul.f32 %v1653, 0.5
        %v1658 = vmul.f32 %v1654, 0.5
        %v1659 = vmul.f32 %v1655, 0.5
        %v1660 = vmul.f32 %v1656, 1.442695
        %v1661 = vpow.pop %v1660
        %v1662 = vmul.f32 %v1657, 1.442695
        %v1663 = vpow.pop %v1662
        %v1664 = vmul.f32 %v1658, 1.442695
        %v1665 = vpow.pop %v1664
        %v1666 = vmul.f32 %v1659, 1.442695
        %v1667 = vpow.pop %v1666
        %s1668 = scalar_lea.vmem %s2, 6
        %v1669 = vld [vmem:[%s1668] sm:$0x1]
        %v1670 = vmul.f32 %v1669, 0.5
        %v1671 = vmul.f32 %v1670, 1.442695
        %v1672 = vpow.pop %v1671
        %s1673 = scalar_lea.vmem %s1, 64
        %v1674 = vld [vmem:[%s1673] sm:$0xff]
        %v1675 = vld [vmem:[%s1673 + $0x8] sm:$0xff]
        %v1676 = vld [vmem:[%s1673 + $0x10] sm:$0xff]
        %v1677 = vld [vmem:[%s1673 + $0x18] sm:$0xff]
        %s1678 = scalar_lea.vmem %s612, 320 [#allocation2]
        %v1679 = vld [vmem:[%s1678] sm:$0xff]
        %v1680 = vld [vmem:[%s1678 + $0x8] sm:$0xff]
        %v1681 = vld [vmem:[%s1678 + $0x10] sm:$0xff]
        %v1682 = vld [vmem:[%s1678 + $0x18] sm:$0xff]
        %v1683 = vld [vmem:[%s1678 + $0x20] sm:$0xff]
        %v1684 = vld [vmem:[%s1678 + $0x28] sm:$0xff]
        %v1685 = vld [vmem:[%s1678 + $0x30] sm:$0xff]
        %v1686 = vld [vmem:[%s1678 + $0x38] sm:$0xff]
        %v1687 = vld [vmem:[%s1678 + $0x40] sm:$0xff]
        %v1688 = vld [vmem:[%s1678 + $0x48] sm:$0xff]
        %v1689 = vld [vmem:[%s1678 + $0x50] sm:$0xff]
        %v1690 = vld [vmem:[%s1678 + $0x58] sm:$0xff]
        %v1691 = vld [vmem:[%s1678 + $0x60] sm:$0xff]
        %v1692 = vld [vmem:[%s1678 + $0x68] sm:$0xff]
        %v1693 = vld [vmem:[%s1678 + $0x70] sm:$0xff]
        %v1694 = vld [vmem:[%s1678 + $0x78] sm:$0xff]
        %v1695 = vld [vmem:[%s1678 + $0x80] sm:$0xff]
        %v1696 = vld [vmem:[%s1678 + $0x88] sm:$0xff]
        %v1697 = vld [vmem:[%s1678 + $0x90] sm:$0xff]
        %v1698 = vld [vmem:[%s1678 + $0x98] sm:$0xff]
        %v1699 = vmul.f32 %v1679, %v1661
        %v1700 = vmul.f32 %v1680, %v1663
        %v1701 = vmul.f32 %v1681, %v1665
        %v1702 = vmul.f32 %v1682, %v1667
        %v1703 = vmul.f32 %v1683, %v1661
        %v1704 = vmul.f32 %v1684, %v1663
        %v1705 = vmul.f32 %v1685, %v1665
        %v1706 = vmul.f32 %v1686, %v1667
        %v1707 = vmul.f32 %v1687, %v1661
        %v1708 = vmul.f32 %v1688, %v1663
        %v1709 = vmul.f32 %v1689, %v1665
        %v1710 = vmul.f32 %v1690, %v1667
        %v1711 = vmul.f32 %v1691, %v1661
        %v1712 = vmul.f32 %v1692, %v1663
        %v1713 = vmul.f32 %v1693, %v1665
        %v1714 = vmul.f32 %v1694, %v1667
        %v1715 = vmul.f32 %v1695, %v1661
        %v1716 = vmul.f32 %v1696, %v1663
        %v1717 = vmul.f32 %v1697, %v1665
        %v1718 = vmul.f32 %v1698, %v1667
        %v1719 = vadd.f32 %v1674, %v1699
        %v1720 = vadd.f32 %v1675, %v1700
        %v1721 = vadd.f32 %v1676, %v1701
        %v1722 = vadd.f32 %v1677, %v1702
        %v1723 = vadd.f32 %v1674, %v1703
        %v1724 = vadd.f32 %v1675, %v1704
        %v1725 = vadd.f32 %v1676, %v1705
        %v1726 = vadd.f32 %v1677, %v1706
        %v1727 = vadd.f32 %v1674, %v1707
        %v1728 = vadd.f32 %v1675, %v1708
        %v1729 = vadd.f32 %v1676, %v1709
        %v1730 = vadd.f32 %v1677, %v1710
        %v1731 = vadd.f32 %v1674, %v1711
        %v1732 = vadd.f32 %v1675, %v1712
        %v1733 = vadd.f32 %v1676, %v1713
        %v1734 = vadd.f32 %v1677, %v1714
        %v1735 = vadd.f32 %v1674, %v1715
        %v1736 = vadd.f32 %v1675, %v1716
        %v1737 = vadd.f32 %v1676, %v1717
        %v1738 = vadd.f32 %v1677, %v1718
        %s1739 = scalar_lea.vmem %s2, 2
        %v1740 = vld [vmem:[%s1739] sm:$0x1]
        %s1741 = scalar_lea.vmem %s619, 10 [#allocation3]
        %v1742 = vld [vmem:[%s1741] sm:$0x1]
        %v1743 = vld [vmem:[%s1741 + $0x1] sm:$0x1]
        %v1744 = vld [vmem:[%s1741 + $0x2] sm:$0x1]
        %v1745 = vld [vmem:[%s1741 + $0x3] sm:$0x1]
        %v1746 = vld [vmem:[%s1741 + $0x4] sm:$0x1]
        %v1747 = vmul.f32 %v1742, %v1672
        %v1748 = vmul.f32 %v1743, %v1672
        %v1749 = vmul.f32 %v1744, %v1672
        %v1750 = vmul.f32 %v1745, %v1672
        %v1751 = vmul.f32 %v1746, %v1672
        %v1752 = vadd.f32 %v1740, %v1747
        %v1753 = vadd.f32 %v1740, %v1748
        %v1754 = vadd.f32 %v1740, %v1749
        %v1755 = vadd.f32 %v1740, %v1750
        %v1756 = vadd.f32 %v1740, %v1751
        %v1762 = vlaneseq
        %v1763 = vshrl.u32 %v1762, 7
        %v1764 = vsub.s32 0, %v1763
        %v1765 = vrot.slane %v1752, %v1764
        %v1766 = vlaneseq
        %v1767 = vshrl.u32 %v1766, 7
        %v1768 = vsub.s32 0, %v1767
        %v1769 = vrot.slane %v1753, %v1768
        %v1770 = vlaneseq
        %v1771 = vshrl.u32 %v1770, 7
        %v1772 = vsub.s32 0, %v1771
        %v1773 = vrot.slane %v1754, %v1772
        %v1774 = vlaneseq
        %v1775 = vshrl.u32 %v1774, 7
        %v1776 = vsub.s32 0, %v1775
        %v1777 = vrot.slane %v1755, %v1776
        %v1778 = vlaneseq
        %v1779 = vshrl.u32 %v1778, 7
        %v1780 = vsub.s32 0, %v1779
        %v1781 = vrot.slane %v1756, %v1780
        %v1788 = vsel %vm786, %v1646, 0
        %1790 = vmatprep.subr.mxu0 0.0
        %1791 = vmatpush1.msra.mxu0 0.0
        %1792 = vmatprep.subr.mxu0 0.0
        %1793 = vmatpush1.msra.mxu0 0.0
        %1794 = vmatprep.subr.mxu0 0.0
        %1795 = vmatpush1.msra.mxu0 0.0
        %1796 = vmatprep.subr.mxu0 0.0
        %1797 = vmatpush1.msra.mxu0 0.0
        %1798 = vmatprep.subr.mxu0 0.0
        %1799 = vmatpush1.msra.mxu0 0.0
        %1800 = vmatprep.subr.mxu0 0.0
        %1801 = vmatpush1.msra.mxu0 0.0
        %1802 = vmatprep.subr.mxu0 0.0
        %1803 = vmatpush1.msra.mxu0 0.0
        %1804 = vmatprep.subr.mxu0 0.0
        %1805 = vmatpush1.msra.mxu0 0.0
        %1806 = vmatprep.subr.mxu0 0.0
        %1807 = vmatpush1.msra.mxu0 0.0
        %1808 = vmatprep.subr.mxu0 0.0
        %1809 = vmatpush1.msra.mxu0 0.0
        %1810 = vmatprep.subr.mxu0 0.0
        %1811 = vmatpush1.msra.mxu0 0.0
        %1812 = vmatprep.subr.mxu0 0.0
        %1813 = vmatpush1.msra.mxu0 0.0
        %1814 = vmatprep.subr.mxu0 0.0
        %1815 = vmatpush1.msra.mxu0 %v1722
        %1816 = vmatprep.subr.mxu0 0.0
        %1817 = vmatpush1.msra.mxu0 %v1721
        %1818 = vmatprep.subr.mxu0 0.0
        %1819 = vmatpush1.msra.mxu0 %v1720
        %1820 = vmatprep.subr.mxu0 0.0
        %1821 = vmatpush1.msra.mxu0 %v1719
        %1822 = vmatprep.subr.mxu0 0.0
        %1823 = vmatpush2.msra.mxu0 0.0
        %1824 = vmatprep.subr.mxu0 0.0
        %1825 = vmatpush2.msra.mxu0 0.0
        %1826 = vmatprep.subr.mxu0 0.0
        %1827 = vmatpush2.msra.mxu0 0.0
        %1828 = vmatprep.subr.mxu0 0.0
        %1829 = vmatpush2.msra.mxu0 0.0
        %1830 = vmatprep.subr.mxu0 0.0
        %1831 = vmatpush2.msra.mxu0 0.0
        %1832 = vmatprep.subr.mxu0 0.0
        %1833 = vmatpush2.msra.mxu0 0.0
        %1834 = vmatprep.subr.mxu0 0.0
        %1835 = vmatpush2.msra.mxu0 0.0
        %1836 = vmatprep.subr.mxu0 0.0
        %1837 = vmatpush2.msra.mxu0 0.0
        %1838 = vmatprep.subr.mxu0 0.0
        %1839 = vmatpush2.msra.mxu0 0.0
        %1840 = vmatprep.subr.mxu0 0.0
        %1841 = vmatpush2.msra.mxu0 0.0
        %1842 = vmatprep.subr.mxu0 0.0
        %1843 = vmatpush2.msra.mxu0 0.0
        %1844 = vmatprep.subr.mxu0 0.0
        %1845 = vmatpush2.msra.mxu0 0.0
        %1846 = vmatprep.subr.mxu0 0.0
        %1847 = vmatpush2.msra.mxu0 0.0
        %1848 = vmatprep.subr.mxu0 0.0
        %1849 = vmatpush2.msra.mxu0 0.0
        %1850 = vmatprep.subr.mxu0 0.0
        %1851 = vmatpush2.msra.mxu0 0.0
        %1852 = vmatprep.subr.mxu0 0.0
        %1853 = vmatpush2.msra.mxu0 0.0
        %1854 = vmatprep.mubr.f32.mxu0 0.0
        %1855 = vmatmul.mubr.f32.gmra.mxu0 %v1788
        %v1856 = vpop.f32.mrf.mxu0
        %v1857 = vadd.f32 %v1765, %v1856
        %v1858 = vpop.f32.mrf.mxu0
        %1859 = vdwg.mxu0
        %v1861 = vsel %vm786, %v1647, 0
        %1863 = vmatprep.subr.mxu0 0.0
        %1864 = vmatpush1.msra.mxu0 0.0
        %1865 = vmatprep.subr.mxu0 0.0
        %1866 = vmatpush1.msra.mxu0 0.0
        %1867 = vmatprep.subr.mxu0 0.0
        %1868 = vmatpush1.msra.mxu0 0.0
        %1869 = vmatprep.subr.mxu0 0.0
        %1870 = vmatpush1.msra.mxu0 0.0
        %1871 = vmatprep.subr.mxu0 0.0
        %1872 = vmatpush1.msra.mxu0 0.0
        %1873 = vmatprep.subr.mxu0 0.0
        %1874 = vmatpush1.msra.mxu0 0.0
        %1875 = vmatprep.subr.mxu0 0.0
        %1876 = vmatpush1.msra.mxu0 0.0
        %1877 = vmatprep.subr.mxu0 0.0
        %1878 = vmatpush1.msra.mxu0 0.0
        %1879 = vmatprep.subr.mxu0 0.0
        %1880 = vmatpush1.msra.mxu0 0.0
        %1881 = vmatprep.subr.mxu0 0.0
        %1882 = vmatpush1.msra.mxu0 0.0
        %1883 = vmatprep.subr.mxu0 0.0
        %1884 = vmatpush1.msra.mxu0 0.0
        %1885 = vmatprep.subr.mxu0 0.0
        %1886 = vmatpush1.msra.mxu0 0.0
        %1887 = vmatprep.subr.mxu0 0.0
        %1888 = vmatpush1.msra.mxu0 %v1726
        %1889 = vmatprep.subr.mxu0 0.0
        %1890 = vmatpush1.msra.mxu0 %v1725
        %1891 = vmatprep.subr.mxu0 0.0
        %1892 = vmatpush1.msra.mxu0 %v1724
        %1893 = vmatprep.subr.mxu0 0.0
        %1894 = vmatpush1.msra.mxu0 %v1723
        %1895 = vmatprep.subr.mxu0 0.0
        %1896 = vmatpush2.msra.mxu0 0.0
        %1897 = vmatprep.subr.mxu0 0.0
        %1898 = vmatpush2.msra.mxu0 0.0
        %1899 = vmatprep.subr.mxu0 0.0
        %1900 = vmatpush2.msra.mxu0 0.0
        %1901 = vmatprep.subr.mxu0 0.0
        %1902 = vmatpush2.msra.mxu0 0.0
        %1903 = vmatprep.subr.mxu0 0.0
        %1904 = vmatpush2.msra.mxu0 0.0
        %1905 = vmatprep.subr.mxu0 0.0
        %1906 = vmatpush2.msra.mxu0 0.0
        %1907 = vmatprep.subr.mxu0 0.0
        %1908 = vmatpush2.msra.mxu0 0.0
        %1909 = vmatprep.subr.mxu0 0.0
        %1910 = vmatpush2.msra.mxu0 0.0
        %1911 = vmatprep.subr.mxu0 0.0
        %1912 = vmatpush2.msra.mxu0 0.0
        %1913 = vmatprep.subr.mxu0 0.0
        %1914 = vmatpush2.msra.mxu0 0.0
        %1915 = vmatprep.subr.mxu0 0.0
        %1916 = vmatpush2.msra.mxu0 0.0
        %1917 = vmatprep.subr.mxu0 0.0
        %1918 = vmatpush2.msra.mxu0 0.0
        %1919 = vmatprep.subr.mxu0 0.0
        %1920 = vmatpush2.msra.mxu0 0.0
        %1921 = vmatprep.subr.mxu0 0.0
        %1922 = vmatpush2.msra.mxu0 0.0
        %1923 = vmatprep.subr.mxu0 0.0
        %1924 = vmatpush2.msra.mxu0 0.0
        %1925 = vmatprep.subr.mxu0 0.0
        %1926 = vmatpush2.msra.mxu0 0.0
        %1927 = vmatprep.mubr.f32.mxu0 0.0
        %1928 = vmatmul.mubr.f32.gmra.mxu0 %v1861
        %v1929 = vpop.f32.mrf.mxu0
        %v1930 = vadd.f32 %v1769, %v1929
        %v1931 = vpop.f32.mrf.mxu0
        %1932 = vdwg.mxu0
        %v1934 = vsel %vm786, %v1648, 0
        %1936 = vmatprep.subr.mxu0 0.0
        %1937 = vmatpush1.msra.mxu0 0.0
        %1938 = vmatprep.subr.mxu0 0.0
        %1939 = vmatpush1.msra.mxu0 0.0
        %1940 = vmatprep.subr.mxu0 0.0
        %1941 = vmatpush1.msra.mxu0 0.0
        %1942 = vmatprep.subr.mxu0 0.0
        %1943 = vmatpush1.msra.mxu0 0.0
        %1944 = vmatprep.subr.mxu0 0.0
        %1945 = vmatpush1.msra.mxu0 0.0
        %1946 = vmatprep.subr.mxu0 0.0
        %1947 = vmatpush1.msra.mxu0 0.0
        %1948 = vmatprep.subr.mxu0 0.0
        %1949 = vmatpush1.msra.mxu0 0.0
        %1950 = vmatprep.subr.mxu0 0.0
        %1951 = vmatpush1.msra.mxu0 0.0
        %1952 = vmatprep.subr.mxu0 0.0
        %1953 = vmatpush1.msra.mxu0 0.0
        %1954 = vmatprep.subr.mxu0 0.0
        %1955 = vmatpush1.msra.mxu0 0.0
        %1956 = vmatprep.subr.mxu0 0.0
        %1957 = vmatpush1.msra.mxu0 0.0
        %1958 = vmatprep.subr.mxu0 0.0
        %1959 = vmatpush1.msra.mxu0 0.0
        %1960 = vmatprep.subr.mxu0 0.0
        %1961 = vmatpush1.msra.mxu0 %v1730
        %1962 = vmatprep.subr.mxu0 0.0
        %1963 = vmatpush1.msra.mxu0 %v1729
        %1964 = vmatprep.subr.mxu0 0.0
        %1965 = vmatpush1.msra.mxu0 %v1728
        %1966 = vmatprep.subr.mxu0 0.0
        %1967 = vmatpush1.msra.mxu0 %v1727
        %1968 = vmatprep.subr.mxu0 0.0
        %1969 = vmatpush2.msra.mxu0 0.0
        %1970 = vmatprep.subr.mxu0 0.0
        %1971 = vmatpush2.msra.mxu0 0.0
        %1972 = vmatprep.subr.mxu0 0.0
        %1973 = vmatpush2.msra.mxu0 0.0
        %1974 = vmatprep.subr.mxu0 0.0
        %1975 = vmatpush2.msra.mxu0 0.0
        %1976 = vmatprep.subr.mxu0 0.0
        %1977 = vmatpush2.msra.mxu0 0.0
        %1978 = vmatprep.subr.mxu0 0.0
        %1979 = vmatpush2.msra.mxu0 0.0
        %1980 = vmatprep.subr.mxu0 0.0
        %1981 = vmatpush2.msra.mxu0 0.0
        %1982 = vmatprep.subr.mxu0 0.0
        %1983 = vmatpush2.msra.mxu0 0.0
        %1984 = vmatprep.subr.mxu0 0.0
        %1985 = vmatpush2.msra.mxu0 0.0
        %1986 = vmatprep.subr.mxu0 0.0
        %1987 = vmatpush2.msra.mxu0 0.0
        %1988 = vmatprep.subr.mxu0 0.0
        %1989 = vmatpush2.msra.mxu0 0.0
        %1990 = vmatprep.subr.mxu0 0.0
        %1991 = vmatpush2.msra.mxu0 0.0
        %1992 = vmatprep.subr.mxu0 0.0
        %1993 = vmatpush2.msra.mxu0 0.0
        %1994 = vmatprep.subr.mxu0 0.0
        %1995 = vmatpush2.msra.mxu0 0.0
        %1996 = vmatprep.subr.mxu0 0.0
        %1997 = vmatpush2.msra.mxu0 0.0
        %1998 = vmatprep.subr.mxu0 0.0
        %1999 = vmatpush2.msra.mxu0 0.0
        %2000 = vmatprep.mubr.f32.mxu0 0.0
        %2001 = vmatmul.mubr.f32.gmra.mxu0 %v1934
        %v2002 = vpop.f32.mrf.mxu0
        %v2003 = vadd.f32 %v1773, %v2002
        %v2004 = vpop.f32.mrf.mxu0
        %2005 = vdwg.mxu0
        %v2007 = vsel %vm786, %v1649, 0
        %2009 = vmatprep.subr.mxu0 0.0
        %2010 = vmatpush1.msra.mxu0 0.0
        %2011 = vmatprep.subr.mxu0 0.0
        %2012 = vmatpush1.msra.mxu0 0.0
        %2013 = vmatprep.subr.mxu0 0.0
        %2014 = vmatpush1.msra.mxu0 0.0
        %2015 = vmatprep.subr.mxu0 0.0
        %2016 = vmatpush1.msra.mxu0 0.0
        %2017 = vmatprep.subr.mxu0 0.0
        %2018 = vmatpush1.msra.mxu0 0.0
        %2019 = vmatprep.subr.mxu0 0.0
        %2020 = vmatpush1.msra.mxu0 0.0
        %2021 = vmatprep.subr.mxu0 0.0
        %2022 = vmatpush1.msra.mxu0 0.0
        %2023 = vmatprep.subr.mxu0 0.0
        %2024 = vmatpush1.msra.mxu0 0.0
        %2025 = vmatprep.subr.mxu0 0.0
        %2026 = vmatpush1.msra.mxu0 0.0
        %2027 = vmatprep.subr.mxu0 0.0
        %2028 = vmatpush1.msra.mxu0 0.0
        %2029 = vmatprep.subr.mxu0 0.0
        %2030 = vmatpush1.msra.mxu0 0.0
        %2031 = vmatprep.subr.mxu0 0.0
        %2032 = vmatpush1.msra.mxu0 0.0
        %2033 = vmatprep.subr.mxu0 0.0
        %2034 = vmatpush1.msra.mxu0 %v1734
        %2035 = vmatprep.subr.mxu0 0.0
        %2036 = vmatpush1.msra.mxu0 %v1733
        %2037 = vmatprep.subr.mxu0 0.0
        %2038 = vmatpush1.msra.mxu0 %v1732
        %2039 = vmatprep.subr.mxu0 0.0
        %2040 = vmatpush1.msra.mxu0 %v1731
        %2041 = vmatprep.subr.mxu0 0.0
        %2042 = vmatpush2.msra.mxu0 0.0
        %2043 = vmatprep.subr.mxu0 0.0
        %2044 = vmatpush2.msra.mxu0 0.0
        %2045 = vmatprep.subr.mxu0 0.0
        %2046 = vmatpush2.msra.mxu0 0.0
        %2047 = vmatprep.subr.mxu0 0.0
        %2048 = vmatpush2.msra.mxu0 0.0
        %2049 = vmatprep.subr.mxu0 0.0
        %2050 = vmatpush2.msra.mxu0 0.0
        %2051 = vmatprep.subr.mxu0 0.0
        %2052 = vmatpush2.msra.mxu0 0.0
        %2053 = vmatprep.subr.mxu0 0.0
        %2054 = vmatpush2.msra.mxu0 0.0
        %2055 = vmatprep.subr.mxu0 0.0
        %2056 = vmatpush2.msra.mxu0 0.0
        %2057 = vmatprep.subr.mxu0 0.0
        %2058 = vmatpush2.msra.mxu0 0.0
        %2059 = vmatprep.subr.mxu0 0.0
        %2060 = vmatpush2.msra.mxu0 0.0
        %2061 = vmatprep.subr.mxu0 0.0
        %2062 = vmatpush2.msra.mxu0 0.0
        %2063 = vmatprep.subr.mxu0 0.0
        %2064 = vmatpush2.msra.mxu0 0.0
        %2065 = vmatprep.subr.mxu0 0.0
        %2066 = vmatpush2.msra.mxu0 0.0
        %2067 = vmatprep.subr.mxu0 0.0
        %2068 = vmatpush2.msra.mxu0 0.0
        %2069 = vmatprep.subr.mxu0 0.0
        %2070 = vmatpush2.msra.mxu0 0.0
        %2071 = vmatprep.subr.mxu0 0.0
        %2072 = vmatpush2.msra.mxu0 0.0
        %2073 = vmatprep.mubr.f32.mxu0 0.0
        %2074 = vmatmul.mubr.f32.gmra.mxu0 %v2007
        %v2075 = vpop.f32.mrf.mxu0
        %v2076 = vadd.f32 %v1777, %v2075
        %v2077 = vpop.f32.mrf.mxu0
        %2078 = vdwg.mxu0
        %v2080 = vsel %vm786, %v1650, 0
        %2082 = vmatprep.subr.mxu0 0.0
        %2083 = vmatpush1.msra.mxu0 0.0
        %2084 = vmatprep.subr.mxu0 0.0
        %2085 = vmatpush1.msra.mxu0 0.0
        %2086 = vmatprep.subr.mxu0 0.0
        %2087 = vmatpush1.msra.mxu0 0.0
        %2088 = vmatprep.subr.mxu0 0.0
        %2089 = vmatpush1.msra.mxu0 0.0
        %2090 = vmatprep.subr.mxu0 0.0
        %2091 = vmatpush1.msra.mxu0 0.0
        %2092 = vmatprep.subr.mxu0 0.0
        %2093 = vmatpush1.msra.mxu0 0.0
        %2094 = vmatprep.subr.mxu0 0.0
        %2095 = vmatpush1.msra.mxu0 0.0
        %2096 = vmatprep.subr.mxu0 0.0
        %2097 = vmatpush1.msra.mxu0 0.0
        %2098 = vmatprep.subr.mxu0 0.0
        %2099 = vmatpush1.msra.mxu0 0.0
        %2100 = vmatprep.subr.mxu0 0.0
        %2101 = vmatpush1.msra.mxu0 0.0
        %2102 = vmatprep.subr.mxu0 0.0
        %2103 = vmatpush1.msra.mxu0 0.0
        %2104 = vmatprep.subr.mxu0 0.0
        %2105 = vmatpush1.msra.mxu0 0.0
        %2106 = vmatprep.subr.mxu0 0.0
        %2107 = vmatpush1.msra.mxu0 %v1738
        %2108 = vmatprep.subr.mxu0 0.0
        %2109 = vmatpush1.msra.mxu0 %v1737
        %2110 = vmatprep.subr.mxu0 0.0
        %2111 = vmatpush1.msra.mxu0 %v1736
        %2112 = vmatprep.subr.mxu0 0.0
        %2113 = vmatpush1.msra.mxu0 %v1735
        %2114 = vmatprep.subr.mxu0 0.0
        %2115 = vmatpush2.msra.mxu0 0.0
        %2116 = vmatprep.subr.mxu0 0.0
        %2117 = vmatpush2.msra.mxu0 0.0
        %2118 = vmatprep.subr.mxu0 0.0
        %2119 = vmatpush2.msra.mxu0 0.0
        %2120 = vmatprep.subr.mxu0 0.0
        %2121 = vmatpush2.msra.mxu0 0.0
        %2122 = vmatprep.subr.mxu0 0.0
        %2123 = vmatpush2.msra.mxu0 0.0
        %2124 = vmatprep.subr.mxu0 0.0
        %2125 = vmatpush2.msra.mxu0 0.0
        %2126 = vmatprep.subr.mxu0 0.0
        %2127 = vmatpush2.msra.mxu0 0.0
        %2128 = vmatprep.subr.mxu0 0.0
        %2129 = vmatpush2.msra.mxu0 0.0
        %2130 = vmatprep.subr.mxu0 0.0
        %2131 = vmatpush2.msra.mxu0 0.0
        %2132 = vmatprep.subr.mxu0 0.0
        %2133 = vmatpush2.msra.mxu0 0.0
        %2134 = vmatprep.subr.mxu0 0.0
        %2135 = vmatpush2.msra.mxu0 0.0
        %2136 = vmatprep.subr.mxu0 0.0
        %2137 = vmatpush2.msra.mxu0 0.0
        %2138 = vmatprep.subr.mxu0 0.0
        %2139 = vmatpush2.msra.mxu0 0.0
        %2140 = vmatprep.subr.mxu0 0.0
        %2141 = vmatpush2.msra.mxu0 0.0
        %2142 = vmatprep.subr.mxu0 0.0
        %2143 = vmatpush2.msra.mxu0 0.0
        %2144 = vmatprep.subr.mxu0 0.0
        %2145 = vmatpush2.msra.mxu0 0.0
        %2146 = vmatprep.mubr.f32.mxu0 0.0
        %2147 = vmatmul.mubr.f32.gmra.mxu0 %v2080
        %v2148 = vpop.f32.mrf.mxu0
        %v2149 = vadd.f32 %v1781, %v2148
        %v2150 = vpop.f32.mrf.mxu0
        %2151 = vdwg.mxu0
        %v2152 = vmax.f32 %v1857, 0.0
        %v2153 = vmax.f32 %v1930, 0.0
        %v2154 = vmax.f32 %v2003, 0.0
        %v2155 = vmax.f32 %v2076, 0.0
        %v2156 = vmax.f32 %v2149, 0.0
        %s2157 = scalar_lea.vmem %s1, 224
        %v2158 = vld [vmem:[%s2157] sm:$0xff]
        %v2159 = vld [vmem:[%s2157 + $0x8] sm:$0xff]
        %v2160 = vld [vmem:[%s2157 + $0x10] sm:$0xff]
        %v2161 = vld [vmem:[%s2157 + $0x18] sm:$0xff]
        %v2162 = vmul.f32 %v2158, 0.5
        %v2163 = vmul.f32 %v2159, 0.5
        %v2164 = vmul.f32 %v2160, 0.5
        %v2165 = vmul.f32 %v2161, 0.5
        %v2166 = vmul.f32 %v2162, 1.442695
        %v2167 = vpow.pop %v2166
        %v2168 = vmul.f32 %v2163, 1.442695
        %v2169 = vpow.pop %v2168
        %v2170 = vmul.f32 %v2164, 1.442695
        %v2171 = vpow.pop %v2170
        %v2172 = vmul.f32 %v2165, 1.442695
        %v2173 = vpow.pop %v2172
        %s2174 = scalar_lea.vmem %s2, 7
        %v2175 = vld [vmem:[%s2174] sm:$0x1]
        %v2176 = vmul.f32 %v2175, 0.5
        %v2177 = vmul.f32 %v2176, 1.442695
        %v2178 = vpow.pop %v2177
        %s2179 = scalar_lea.vmem %s1, 96
        %v2180 = vld [vmem:[%s2179] sm:$0xff]
        %v2181 = vld [vmem:[%s2179 + $0x8] sm:$0xff]
        %v2182 = vld [vmem:[%s2179 + $0x10] sm:$0xff]
        %v2183 = vld [vmem:[%s2179 + $0x18] sm:$0xff]
        %s2184 = scalar_lea.vmem %s612, 480 [#allocation2]
        %v2185 = vld [vmem:[%s2184] sm:$0xff]
        %v2186 = vld [vmem:[%s2184 + $0x8] sm:$0xff]
        %v2187 = vld [vmem:[%s2184 + $0x10] sm:$0xff]
        %v2188 = vld [vmem:[%s2184 + $0x18] sm:$0xff]
        %v2189 = vld [vmem:[%s2184 + $0x20] sm:$0xff]
        %v2190 = vld [vmem:[%s2184 + $0x28] sm:$0xff]
        %v2191 = vld [vmem:[%s2184 + $0x30] sm:$0xff]
        %v2192 = vld [vmem:[%s2184 + $0x38] sm:$0xff]
        %v2193 = vld [vmem:[%s2184 + $0x40] sm:$0xff]
        %v2194 = vld [vmem:[%s2184 + $0x48] sm:$0xff]
        %v2195 = vld [vmem:[%s2184 + $0x50] sm:$0xff]
        %v2196 = vld [vmem:[%s2184 + $0x58] sm:$0xff]
        %v2197 = vld [vmem:[%s2184 + $0x60] sm:$0xff]
        %v2198 = vld [vmem:[%s2184 + $0x68] sm:$0xff]
        %v2199 = vld [vmem:[%s2184 + $0x70] sm:$0xff]
        %v2200 = vld [vmem:[%s2184 + $0x78] sm:$0xff]
        %v2201 = vld [vmem:[%s2184 + $0x80] sm:$0xff]
        %v2202 = vld [vmem:[%s2184 + $0x88] sm:$0xff]
        %v2203 = vld [vmem:[%s2184 + $0x90] sm:$0xff]
        %v2204 = vld [vmem:[%s2184 + $0x98] sm:$0xff]
        %v2205 = vmul.f32 %v2185, %v2167
        %v2206 = vmul.f32 %v2186, %v2169
        %v2207 = vmul.f32 %v2187, %v2171
        %v2208 = vmul.f32 %v2188, %v2173
        %v2209 = vmul.f32 %v2189, %v2167
        %v2210 = vmul.f32 %v2190, %v2169
        %v2211 = vmul.f32 %v2191, %v2171
        %v2212 = vmul.f32 %v2192, %v2173
        %v2213 = vmul.f32 %v2193, %v2167
        %v2214 = vmul.f32 %v2194, %v2169
        %v2215 = vmul.f32 %v2195, %v2171
        %v2216 = vmul.f32 %v2196, %v2173
        %v2217 = vmul.f32 %v2197, %v2167
        %v2218 = vmul.f32 %v2198, %v2169
        %v2219 = vmul.f32 %v2199, %v2171
        %v2220 = vmul.f32 %v2200, %v2173
        %v2221 = vmul.f32 %v2201, %v2167
        %v2222 = vmul.f32 %v2202, %v2169
        %v2223 = vmul.f32 %v2203, %v2171
        %v2224 = vmul.f32 %v2204, %v2173
        %v2225 = vadd.f32 %v2180, %v2205
        %v2226 = vadd.f32 %v2181, %v2206
        %v2227 = vadd.f32 %v2182, %v2207
        %v2228 = vadd.f32 %v2183, %v2208
        %v2229 = vadd.f32 %v2180, %v2209
        %v2230 = vadd.f32 %v2181, %v2210
        %v2231 = vadd.f32 %v2182, %v2211
        %v2232 = vadd.f32 %v2183, %v2212
        %v2233 = vadd.f32 %v2180, %v2213
        %v2234 = vadd.f32 %v2181, %v2214
        %v2235 = vadd.f32 %v2182, %v2215
        %v2236 = vadd.f32 %v2183, %v2216
        %v2237 = vadd.f32 %v2180, %v2217
        %v2238 = vadd.f32 %v2181, %v2218
        %v2239 = vadd.f32 %v2182, %v2219
        %v2240 = vadd.f32 %v2183, %v2220
        %v2241 = vadd.f32 %v2180, %v2221
        %v2242 = vadd.f32 %v2181, %v2222
        %v2243 = vadd.f32 %v2182, %v2223
        %v2244 = vadd.f32 %v2183, %v2224
        %s2245 = scalar_lea.vmem %s2, 3
        %v2246 = vld [vmem:[%s2245] sm:$0x1]
        %s2247 = scalar_lea.vmem %s619, 15 [#allocation3]
        %v2248 = vld [vmem:[%s2247] sm:$0x1]
        %v2249 = vld [vmem:[%s2247 + $0x1] sm:$0x1]
        %v2250 = vld [vmem:[%s2247 + $0x2] sm:$0x1]
        %v2251 = vld [vmem:[%s2247 + $0x3] sm:$0x1]
        %v2252 = vld [vmem:[%s2247 + $0x4] sm:$0x1]
        %v2253 = vmul.f32 %v2248, %v2178
        %v2254 = vmul.f32 %v2249, %v2178
        %v2255 = vmul.f32 %v2250, %v2178
        %v2256 = vmul.f32 %v2251, %v2178
        %v2257 = vmul.f32 %v2252, %v2178
        %v2258 = vadd.f32 %v2246, %v2253
        %v2259 = vadd.f32 %v2246, %v2254
        %v2260 = vadd.f32 %v2246, %v2255
        %v2261 = vadd.f32 %v2246, %v2256
        %v2262 = vadd.f32 %v2246, %v2257
        %v2268 = vlaneseq
        %v2269 = vshrl.u32 %v2268, 7
        %v2270 = vsub.s32 0, %v2269
        %v2271 = vrot.slane %v2258, %v2270
        %v2272 = vlaneseq
        %v2273 = vshrl.u32 %v2272, 7
        %v2274 = vsub.s32 0, %v2273
        %v2275 = vrot.slane %v2259, %v2274
        %v2276 = vlaneseq
        %v2277 = vshrl.u32 %v2276, 7
        %v2278 = vsub.s32 0, %v2277
        %v2279 = vrot.slane %v2260, %v2278
        %v2280 = vlaneseq
        %v2281 = vshrl.u32 %v2280, 7
        %v2282 = vsub.s32 0, %v2281
        %v2283 = vrot.slane %v2261, %v2282
        %v2284 = vlaneseq
        %v2285 = vshrl.u32 %v2284, 7
        %v2286 = vsub.s32 0, %v2285
        %v2287 = vrot.slane %v2262, %v2286
        %v2294 = vsel %vm786, %v2152, 0
        %2296 = vmatprep.subr.mxu0 0.0
        %2297 = vmatpush1.msra.mxu0 0.0
        %2298 = vmatprep.subr.mxu0 0.0
        %2299 = vmatpush1.msra.mxu0 0.0
        %2300 = vmatprep.subr.mxu0 0.0
        %2301 = vmatpush1.msra.mxu0 0.0
        %2302 = vmatprep.subr.mxu0 0.0
        %2303 = vmatpush1.msra.mxu0 0.0
        %2304 = vmatprep.subr.mxu0 0.0
        %2305 = vmatpush1.msra.mxu0 0.0
        %2306 = vmatprep.subr.mxu0 0.0
        %2307 = vmatpush1.msra.mxu0 0.0
        %2308 = vmatprep.subr.mxu0 0.0
        %2309 = vmatpush1.msra.mxu0 0.0
        %2310 = vmatprep.subr.mxu0 0.0
        %2311 = vmatpush1.msra.mxu0 0.0
        %2312 = vmatprep.subr.mxu0 0.0
        %2313 = vmatpush1.msra.mxu0 0.0
        %2314 = vmatprep.subr.mxu0 0.0
        %2315 = vmatpush1.msra.mxu0 0.0
        %2316 = vmatprep.subr.mxu0 0.0
        %2317 = vmatpush1.msra.mxu0 0.0
        %2318 = vmatprep.subr.mxu0 0.0
        %2319 = vmatpush1.msra.mxu0 0.0
        %2320 = vmatprep.subr.mxu0 0.0
        %2321 = vmatpush1.msra.mxu0 %v2228
        %2322 = vmatprep.subr.mxu0 0.0
        %2323 = vmatpush1.msra.mxu0 %v2227
        %2324 = vmatprep.subr.mxu0 0.0
        %2325 = vmatpush1.msra.mxu0 %v2226
        %2326 = vmatprep.subr.mxu0 0.0
        %2327 = vmatpush1.msra.mxu0 %v2225
        %2328 = vmatprep.subr.mxu0 0.0
        %2329 = vmatpush2.msra.mxu0 0.0
        %2330 = vmatprep.subr.mxu0 0.0
        %2331 = vmatpush2.msra.mxu0 0.0
        %2332 = vmatprep.subr.mxu0 0.0
        %2333 = vmatpush2.msra.mxu0 0.0
        %2334 = vmatprep.subr.mxu0 0.0
        %2335 = vmatpush2.msra.mxu0 0.0
        %2336 = vmatprep.subr.mxu0 0.0
        %2337 = vmatpush2.msra.mxu0 0.0
        %2338 = vmatprep.subr.mxu0 0.0
        %2339 = vmatpush2.msra.mxu0 0.0
        %2340 = vmatprep.subr.mxu0 0.0
        %2341 = vmatpush2.msra.mxu0 0.0
        %2342 = vmatprep.subr.mxu0 0.0
        %2343 = vmatpush2.msra.mxu0 0.0
        %2344 = vmatprep.subr.mxu0 0.0
        %2345 = vmatpush2.msra.mxu0 0.0
        %2346 = vmatprep.subr.mxu0 0.0
        %2347 = vmatpush2.msra.mxu0 0.0
        %2348 = vmatprep.subr.mxu0 0.0
        %2349 = vmatpush2.msra.mxu0 0.0
        %2350 = vmatprep.subr.mxu0 0.0
        %2351 = vmatpush2.msra.mxu0 0.0
        %2352 = vmatprep.subr.mxu0 0.0
        %2353 = vmatpush2.msra.mxu0 0.0
        %2354 = vmatprep.subr.mxu0 0.0
        %2355 = vmatpush2.msra.mxu0 0.0
        %2356 = vmatprep.subr.mxu0 0.0
        %2357 = vmatpush2.msra.mxu0 0.0
        %2358 = vmatprep.subr.mxu0 0.0
        %2359 = vmatpush2.msra.mxu0 0.0
        %2360 = vmatprep.mubr.f32.mxu0 0.0
        %2361 = vmatmul.mubr.f32.gmra.mxu0 %v2294
        %v2362 = vpop.f32.mrf.mxu0
        %v2363 = vadd.f32 %v2271, %v2362
        %v2364 = vpop.f32.mrf.mxu0
        %2365 = vdwg.mxu0
        %v2367 = vsel %vm786, %v2153, 0
        %2369 = vmatprep.subr.mxu0 0.0
        %2370 = vmatpush1.msra.mxu0 0.0
        %2371 = vmatprep.subr.mxu0 0.0
        %2372 = vmatpush1.msra.mxu0 0.0
        %2373 = vmatprep.subr.mxu0 0.0
        %2374 = vmatpush1.msra.mxu0 0.0
        %2375 = vmatprep.subr.mxu0 0.0
        %2376 = vmatpush1.msra.mxu0 0.0
        %2377 = vmatprep.subr.mxu0 0.0
        %2378 = vmatpush1.msra.mxu0 0.0
        %2379 = vmatprep.subr.mxu0 0.0
        %2380 = vmatpush1.msra.mxu0 0.0
        %2381 = vmatprep.subr.mxu0 0.0
        %2382 = vmatpush1.msra.mxu0 0.0
        %2383 = vmatprep.subr.mxu0 0.0
        %2384 = vmatpush1.msra.mxu0 0.0
        %2385 = vmatprep.subr.mxu0 0.0
        %2386 = vmatpush1.msra.mxu0 0.0
        %2387 = vmatprep.subr.mxu0 0.0
        %2388 = vmatpush1.msra.mxu0 0.0
        %2389 = vmatprep.subr.mxu0 0.0
        %2390 = vmatpush1.msra.mxu0 0.0
        %2391 = vmatprep.subr.mxu0 0.0
        %2392 = vmatpush1.msra.mxu0 0.0
        %2393 = vmatprep.subr.mxu0 0.0
        %2394 = vmatpush1.msra.mxu0 %v2232
        %2395 = vmatprep.subr.mxu0 0.0
        %2396 = vmatpush1.msra.mxu0 %v2231
        %2397 = vmatprep.subr.mxu0 0.0
        %2398 = vmatpush1.msra.mxu0 %v2230
        %2399 = vmatprep.subr.mxu0 0.0
        %2400 = vmatpush1.msra.mxu0 %v2229
        %2401 = vmatprep.subr.mxu0 0.0
        %2402 = vmatpush2.msra.mxu0 0.0
        %2403 = vmatprep.subr.mxu0 0.0
        %2404 = vmatpush2.msra.mxu0 0.0
        %2405 = vmatprep.subr.mxu0 0.0
        %2406 = vmatpush2.msra.mxu0 0.0
        %2407 = vmatprep.subr.mxu0 0.0
        %2408 = vmatpush2.msra.mxu0 0.0
        %2409 = vmatprep.subr.mxu0 0.0
        %2410 = vmatpush2.msra.mxu0 0.0
        %2411 = vmatprep.subr.mxu0 0.0
        %2412 = vmatpush2.msra.mxu0 0.0
        %2413 = vmatprep.subr.mxu0 0.0
        %2414 = vmatpush2.msra.mxu0 0.0
        %2415 = vmatprep.subr.mxu0 0.0
        %2416 = vmatpush2.msra.mxu0 0.0
        %2417 = vmatprep.subr.mxu0 0.0
        %2418 = vmatpush2.msra.mxu0 0.0
        %2419 = vmatprep.subr.mxu0 0.0
        %2420 = vmatpush2.msra.mxu0 0.0
        %2421 = vmatprep.subr.mxu0 0.0
        %2422 = vmatpush2.msra.mxu0 0.0
        %2423 = vmatprep.subr.mxu0 0.0
        %2424 = vmatpush2.msra.mxu0 0.0
        %2425 = vmatprep.subr.mxu0 0.0
        %2426 = vmatpush2.msra.mxu0 0.0
        %2427 = vmatprep.subr.mxu0 0.0
        %2428 = vmatpush2.msra.mxu0 0.0
        %2429 = vmatprep.subr.mxu0 0.0
        %2430 = vmatpush2.msra.mxu0 0.0
        %2431 = vmatprep.subr.mxu0 0.0
        %2432 = vmatpush2.msra.mxu0 0.0
        %2433 = vmatprep.mubr.f32.mxu0 0.0
        %2434 = vmatmul.mubr.f32.gmra.mxu0 %v2367
        %v2435 = vpop.f32.mrf.mxu0
        %v2436 = vadd.f32 %v2275, %v2435
        %v2437 = vpop.f32.mrf.mxu0
        %2438 = vdwg.mxu0
        %v2440 = vsel %vm786, %v2154, 0
        %2442 = vmatprep.subr.mxu0 0.0
        %2443 = vmatpush1.msra.mxu0 0.0
        %2444 = vmatprep.subr.mxu0 0.0
        %2445 = vmatpush1.msra.mxu0 0.0
        %2446 = vmatprep.subr.mxu0 0.0
        %2447 = vmatpush1.msra.mxu0 0.0
        %2448 = vmatprep.subr.mxu0 0.0
        %2449 = vmatpush1.msra.mxu0 0.0
        %2450 = vmatprep.subr.mxu0 0.0
        %2451 = vmatpush1.msra.mxu0 0.0
        %2452 = vmatprep.subr.mxu0 0.0
        %2453 = vmatpush1.msra.mxu0 0.0
        %2454 = vmatprep.subr.mxu0 0.0
        %2455 = vmatpush1.msra.mxu0 0.0
        %2456 = vmatprep.subr.mxu0 0.0
        %2457 = vmatpush1.msra.mxu0 0.0
        %2458 = vmatprep.subr.mxu0 0.0
        %2459 = vmatpush1.msra.mxu0 0.0
        %2460 = vmatprep.subr.mxu0 0.0
        %2461 = vmatpush1.msra.mxu0 0.0
        %2462 = vmatprep.subr.mxu0 0.0
        %2463 = vmatpush1.msra.mxu0 0.0
        %2464 = vmatprep.subr.mxu0 0.0
        %2465 = vmatpush1.msra.mxu0 0.0
        %2466 = vmatprep.subr.mxu0 0.0
        %2467 = vmatpush1.msra.mxu0 %v2236
        %2468 = vmatprep.subr.mxu0 0.0
        %2469 = vmatpush1.msra.mxu0 %v2235
        %2470 = vmatprep.subr.mxu0 0.0
        %2471 = vmatpush1.msra.mxu0 %v2234
        %2472 = vmatprep.subr.mxu0 0.0
        %2473 = vmatpush1.msra.mxu0 %v2233
        %2474 = vmatprep.subr.mxu0 0.0
        %2475 = vmatpush2.msra.mxu0 0.0
        %2476 = vmatprep.subr.mxu0 0.0
        %2477 = vmatpush2.msra.mxu0 0.0
        %2478 = vmatprep.subr.mxu0 0.0
        %2479 = vmatpush2.msra.mxu0 0.0
        %2480 = vmatprep.subr.mxu0 0.0
        %2481 = vmatpush2.msra.mxu0 0.0
        %2482 = vmatprep.subr.mxu0 0.0
        %2483 = vmatpush2.msra.mxu0 0.0
        %2484 = vmatprep.subr.mxu0 0.0
        %2485 = vmatpush2.msra.mxu0 0.0
        %2486 = vmatprep.subr.mxu0 0.0
        %2487 = vmatpush2.msra.mxu0 0.0
        %2488 = vmatprep.subr.mxu0 0.0
        %2489 = vmatpush2.msra.mxu0 0.0
        %2490 = vmatprep.subr.mxu0 0.0
        %2491 = vmatpush2.msra.mxu0 0.0
        %2492 = vmatprep.subr.mxu0 0.0
        %2493 = vmatpush2.msra.mxu0 0.0
        %2494 = vmatprep.subr.mxu0 0.0
        %2495 = vmatpush2.msra.mxu0 0.0
        %2496 = vmatprep.subr.mxu0 0.0
        %2497 = vmatpush2.msra.mxu0 0.0
        %2498 = vmatprep.subr.mxu0 0.0
        %2499 = vmatpush2.msra.mxu0 0.0
        %2500 = vmatprep.subr.mxu0 0.0
        %2501 = vmatpush2.msra.mxu0 0.0
        %2502 = vmatprep.subr.mxu0 0.0
        %2503 = vmatpush2.msra.mxu0 0.0
        %2504 = vmatprep.subr.mxu0 0.0
        %2505 = vmatpush2.msra.mxu0 0.0
        %2506 = vmatprep.mubr.f32.mxu0 0.0
        %2507 = vmatmul.mubr.f32.gmra.mxu0 %v2440
        %v2508 = vpop.f32.mrf.mxu0
        %v2509 = vadd.f32 %v2279, %v2508
        %v2510 = vpop.f32.mrf.mxu0
        %2511 = vdwg.mxu0
        %v2513 = vsel %vm786, %v2155, 0
        %2515 = vmatprep.subr.mxu0 0.0
        %2516 = vmatpush1.msra.mxu0 0.0
        %2517 = vmatprep.subr.mxu0 0.0
        %2518 = vmatpush1.msra.mxu0 0.0
        %2519 = vmatprep.subr.mxu0 0.0
        %2520 = vmatpush1.msra.mxu0 0.0
        %2521 = vmatprep.subr.mxu0 0.0
        %2522 = vmatpush1.msra.mxu0 0.0
        %2523 = vmatprep.subr.mxu0 0.0
        %2524 = vmatpush1.msra.mxu0 0.0
        %2525 = vmatprep.subr.mxu0 0.0
        %2526 = vmatpush1.msra.mxu0 0.0
        %2527 = vmatprep.subr.mxu0 0.0
        %2528 = vmatpush1.msra.mxu0 0.0
        %2529 = vmatprep.subr.mxu0 0.0
        %2530 = vmatpush1.msra.mxu0 0.0
        %2531 = vmatprep.subr.mxu0 0.0
        %2532 = vmatpush1.msra.mxu0 0.0
        %2533 = vmatprep.subr.mxu0 0.0
        %2534 = vmatpush1.msra.mxu0 0.0
        %2535 = vmatprep.subr.mxu0 0.0
        %2536 = vmatpush1.msra.mxu0 0.0
        %2537 = vmatprep.subr.mxu0 0.0
        %2538 = vmatpush1.msra.mxu0 0.0
        %2539 = vmatprep.subr.mxu0 0.0
        %2540 = vmatpush1.msra.mxu0 %v2240
        %2541 = vmatprep.subr.mxu0 0.0
        %2542 = vmatpush1.msra.mxu0 %v2239
        %2543 = vmatprep.subr.mxu0 0.0
        %2544 = vmatpush1.msra.mxu0 %v2238
        %2545 = vmatprep.subr.mxu0 0.0
        %2546 = vmatpush1.msra.mxu0 %v2237
        %2547 = vmatprep.subr.mxu0 0.0
        %2548 = vmatpush2.msra.mxu0 0.0
        %2549 = vmatprep.subr.mxu0 0.0
        %2550 = vmatpush2.msra.mxu0 0.0
        %2551 = vmatprep.subr.mxu0 0.0
        %2552 = vmatpush2.msra.mxu0 0.0
        %2553 = vmatprep.subr.mxu0 0.0
        %2554 = vmatpush2.msra.mxu0 0.0
        %2555 = vmatprep.subr.mxu0 0.0
        %2556 = vmatpush2.msra.mxu0 0.0
        %2557 = vmatprep.subr.mxu0 0.0
        %2558 = vmatpush2.msra.mxu0 0.0
        %2559 = vmatprep.subr.mxu0 0.0
        %2560 = vmatpush2.msra.mxu0 0.0
        %2561 = vmatprep.subr.mxu0 0.0
        %2562 = vmatpush2.msra.mxu0 0.0
        %2563 = vmatprep.subr.mxu0 0.0
        %2564 = vmatpush2.msra.mxu0 0.0
        %2565 = vmatprep.subr.mxu0 0.0
        %2566 = vmatpush2.msra.mxu0 0.0
        %2567 = vmatprep.subr.mxu0 0.0
        %2568 = vmatpush2.msra.mxu0 0.0
        %2569 = vmatprep.subr.mxu0 0.0
        %2570 = vmatpush2.msra.mxu0 0.0
        %2571 = vmatprep.subr.mxu0 0.0
        %2572 = vmatpush2.msra.mxu0 0.0
        %2573 = vmatprep.subr.mxu0 0.0
        %2574 = vmatpush2.msra.mxu0 0.0
        %2575 = vmatprep.subr.mxu0 0.0
        %2576 = vmatpush2.msra.mxu0 0.0
        %2577 = vmatprep.subr.mxu0 0.0
        %2578 = vmatpush2.msra.mxu0 0.0
        %2579 = vmatprep.mubr.f32.mxu0 0.0
        %2580 = vmatmul.mubr.f32.gmra.mxu0 %v2513
        %v2581 = vpop.f32.mrf.mxu0
        %v2582 = vadd.f32 %v2283, %v2581
        %v2583 = vpop.f32.mrf.mxu0
        %2584 = vdwg.mxu0
        %v2586 = vsel %vm786, %v2156, 0
        %2588 = vmatprep.subr.mxu0 0.0
        %2589 = vmatpush1.msra.mxu0 0.0
        %2590 = vmatprep.subr.mxu0 0.0
        %2591 = vmatpush1.msra.mxu0 0.0
        %2592 = vmatprep.subr.mxu0 0.0
        %2593 = vmatpush1.msra.mxu0 0.0
        %2594 = vmatprep.subr.mxu0 0.0
        %2595 = vmatpush1.msra.mxu0 0.0
        %2596 = vmatprep.subr.mxu0 0.0
        %2597 = vmatpush1.msra.mxu0 0.0
        %2598 = vmatprep.subr.mxu0 0.0
        %2599 = vmatpush1.msra.mxu0 0.0
        %2600 = vmatprep.subr.mxu0 0.0
        %2601 = vmatpush1.msra.mxu0 0.0
        %2602 = vmatprep.subr.mxu0 0.0
        %2603 = vmatpush1.msra.mxu0 0.0
        %2604 = vmatprep.subr.mxu0 0.0
        %2605 = vmatpush1.msra.mxu0 0.0
        %2606 = vmatprep.subr.mxu0 0.0
        %2607 = vmatpush1.msra.mxu0 0.0
        %2608 = vmatprep.subr.mxu0 0.0
        %2609 = vmatpush1.msra.mxu0 0.0
        %2610 = vmatprep.subr.mxu0 0.0
        %2611 = vmatpush1.msra.mxu0 0.0
        %2612 = vmatprep.subr.mxu0 0.0
        %2613 = vmatpush1.msra.mxu0 %v2244
        %2614 = vmatprep.subr.mxu0 0.0
        %2615 = vmatpush1.msra.mxu0 %v2243
        %2616 = vmatprep.subr.mxu0 0.0
        %2617 = vmatpush1.msra.mxu0 %v2242
        %2618 = vmatprep.subr.mxu0 0.0
        %2619 = vmatpush1.msra.mxu0 %v2241
        %2620 = vmatprep.subr.mxu0 0.0
        %2621 = vmatpush2.msra.mxu0 0.0
        %2622 = vmatprep.subr.mxu0 0.0
        %2623 = vmatpush2.msra.mxu0 0.0
        %2624 = vmatprep.subr.mxu0 0.0
        %2625 = vmatpush2.msra.mxu0 0.0
        %2626 = vmatprep.subr.mxu0 0.0
        %2627 = vmatpush2.msra.mxu0 0.0
        %2628 = vmatprep.subr.mxu0 0.0
        %2629 = vmatpush2.msra.mxu0 0.0
        %2630 = vmatprep.subr.mxu0 0.0
        %2631 = vmatpush2.msra.mxu0 0.0
        %2632 = vmatprep.subr.mxu0 0.0
        %2633 = vmatpush2.msra.mxu0 0.0
        %2634 = vmatprep.subr.mxu0 0.0
        %2635 = vmatpush2.msra.mxu0 0.0
        %2636 = vmatprep.subr.mxu0 0.0
        %2637 = vmatpush2.msra.mxu0 0.0
        %2638 = vmatprep.subr.mxu0 0.0
        %2639 = vmatpush2.msra.mxu0 0.0
        %2640 = vmatprep.subr.mxu0 0.0
        %2641 = vmatpush2.msra.mxu0 0.0
        %2642 = vmatprep.subr.mxu0 0.0
        %2643 = vmatpush2.msra.mxu0 0.0
        %2644 = vmatprep.subr.mxu0 0.0
        %2645 = vmatpush2.msra.mxu0 0.0
        %2646 = vmatprep.subr.mxu0 0.0
        %2647 = vmatpush2.msra.mxu0 0.0
        %2648 = vmatprep.subr.mxu0 0.0
        %2649 = vmatpush2.msra.mxu0 0.0
        %2650 = vmatprep.subr.mxu0 0.0
        %2651 = vmatpush2.msra.mxu0 0.0
        %2652 = vmatprep.mubr.f32.mxu0 0.0
        %2653 = vmatmul.mubr.f32.gmra.mxu0 %v2586
        %v2654 = vpop.f32.mrf.mxu0
        %v2655 = vadd.f32 %v2287, %v2654
        %v2656 = vpop.f32.mrf.mxu0
        %2657 = vdwg.mxu0
        %vm2658 = vcmask 64512
        %v2659 = vsel %vm2658, %v2363, -inf
        %2660 = vmax.xlane.f32.xlu0 %v2659
        %v2661 = vpop.xlane.xlu0 %2660
        %v2662 = vsel %vm2658, %v2436, -inf
        %2663 = vmax.xlane.f32.xlu0 %v2662
        %v2664 = vpop.xlane.xlu0 %2663
        %v2665 = vsel %vm2658, %v2509, -inf
        %2666 = vmax.xlane.f32.xlu0 %v2665
        %v2667 = vpop.xlane.xlu0 %2666
        %v2668 = vsel %vm2658, %v2582, -inf
        %2669 = vmax.xlane.f32.xlu0 %v2668
        %v2670 = vpop.xlane.xlu0 %2669
        %v2671 = vsel %vm2658, %v2655, -inf
        %2672 = vmax.xlane.f32.xlu0 %v2671
        %v2673 = vpop.xlane.xlu0 %2672
        %v2674 = vsub.f32 %v2363, %v2661
        %v2675 = vsub.f32 %v2436, %v2664
        %v2676 = vsub.f32 %v2509, %v2667
        %v2677 = vsub.f32 %v2582, %v2670
        %v2678 = vsub.f32 %v2655, %v2673
        %v2679 = vmul.f32 %v2674, 1.442695
        %v2680 = vpow.pop %v2679
        %v2681 = vmul.f32 %v2675, 1.442695
        %v2682 = vpow.pop %v2681
        %v2683 = vmul.f32 %v2676, 1.442695
        %v2684 = vpow.pop %v2683
        %v2685 = vmul.f32 %v2677, 1.442695
        %v2686 = vpow.pop %v2685
        %v2687 = vmul.f32 %v2678, 1.442695
        %v2688 = vpow.pop %v2687
        %v2689 = vsel %vm2658, %v2680, 0.0
        %2690 = vadd.xlane.f32.xlu0 %v2689
        %v2691 = vpop.xlane.xlu0 %2690
        %v2692 = vsel %vm2658, %v2682, 0.0
        %2693 = vadd.xlane.f32.xlu0 %v2692
        %v2694 = vpop.xlane.xlu0 %2693
        %v2695 = vsel %vm2658, %v2684, 0.0
        %2696 = vadd.xlane.f32.xlu0 %v2695
        %v2697 = vpop.xlane.xlu0 %2696
        %v2698 = vsel %vm2658, %v2686, 0.0
        %2699 = vadd.xlane.f32.xlu0 %v2698
        %v2700 = vpop.xlane.xlu0 %2699
        %v2701 = vsel %vm2658, %v2688, 0.0
        %2702 = vadd.xlane.f32.xlu0 %v2701
        %v2703 = vpop.xlane.xlu0 %2702
        %v2704 = vrcp.pop %v2691
        %v2705 = vrcp.pop %v2694
        %v2706 = vrcp.pop %v2697
        %v2707 = vrcp.pop %v2700
        %v2708 = vrcp.pop %v2703
        %v2709 = vmul.f32 %v2680, %v2704
        %v2710 = vmul.f32 %v2682, %v2705
        %v2711 = vmul.f32 %v2684, %v2706
        %v2712 = vmul.f32 %v2686, %v2707
        %v2713 = vmul.f32 %v2688, %v2708
        %v2714 = vsel %vm2658, %v2709, 0.0
        %v2715 = vsel %vm2658, %v2710, 0.0
        %v2716 = vadd.f32 %v2714, %v2715
        %v2717 = vsel %vm2658, %v2711, 0.0
        %v2718 = vadd.f32 %v2716, %v2717
        %v2719 = vsel %vm2658, %v2712, 0.0
        %v2720 = vadd.f32 %v2718, %v2719
        %v2721 = vsel %vm2658, %v2713, 0.0
        %v2722 = vadd.f32 %v2720, %v2721
        %2723 = vst.msk [vmem:[%s652] sm:$0xff] %vm2658, %v2722
        %p2724 = scmp.lt.s32.totalorder %s16, 1
        %s2725 = scalar_select %p2724, %s16, 1
        %s2726 = smul.addr %s2725, 8
        %s2727 = scalar_lea.vmem %s5, %s2726
        // Predicated region
        $region120: #{vcl_forward.1} parent=110 // pred_check
          %p2728 = pneg %p149
        $region121: #{vcl_forward.1} parent=110 // pred_check_branch
          %2730 = sbr.rel (%p2728) target = $region123
        $region122: #{vcl_forward.1} parent=110 // pred_region
          _
        $region123: #{vcl_forward.1} parent=110 // pred_fallthru
          _
      $region111: #{vcl_forward.1} parent=5 // pred_fallthru
        _
      %p2731 = scmp.le.s32.totalorder 2, %s11
      // Predicated region
      $region124: #{vcl_forward.1} parent=5 // pred_check
        %p2732 = pneg %p2731
      $region125: #{vcl_forward.1} parent=5 // pred_check_branch
        %2734 = sbr.rel (%p2732) target = $region127
      $region126: #{vcl_forward.1} parent=5 // pred_region
        %s2735 = ssub.s32 %s11, 2
        // Predicated region
        $region128: #{vcl_forward.1} parent=126 // pred_check
          %p2736 = pneg %p155
        $region129: #{vcl_forward.1} parent=126 // pred_check_branch
          %2738 = sbr.rel (%p2736) target = $region131
        $region130: #{vcl_forward.1} parent=126 // pred_region
          %p2739 = scmp.lt.s32.totalorder %s17, 1
          %s2740 = scalar_select %p2739, %s17, 1
          %s2741 = smul.addr %s2740, 8
          %s2742 = scalar_lea.vmem %s5, %s2741
        $region131: #{vcl_forward.1} parent=126 // pred_fallthru
          _
      $region127: #{vcl_forward.1} parent=5 // pred_fallthru
        _
    $region6: #{vcl_forward.1} parent=1 // loop_footer
      %s15 = sadd.s32 1, %s11
    $region7: #{vcl_forward.1} parent=1 // loop_footer_branch
      %10 = sbr.rel target = $region3
    $region8: #{vcl_forward.1} parent=1 // loop_exit
      _

</llo_original>
